<compile_context>
chip_gen: v5e
topology: v5e:2x2
jax: 0.10.0
libtpu: 0.0.40
codegen_flags: <defaults>
</compile_context>

<pallas_src>
import functools

import jax
import jax.numpy as jnp
import numpy as np
from jax import lax
from jax.experimental import pallas as pl
from jax.experimental.pallas import tpu as pltpu

FEAT_DIM = 128
D_HIDDEN = 128
N_FREQS = 3                       # spherical-harmonic levels
SH_DIM = N_FREQS * N_FREQS        # 9
GEO_DIM = 3 + 3 + SH_DIM + 3      # x (3) + v (3) + sh(v) (9) + n (3) = 18
GEO_PACKED = 16                   # [x | v | n | 1 | xy yz xz xx yy zz]
LEAKY_SLOPE = 0.2
EPS_SQ = 1e-24                    # eps inside the sqrt (module adds 1e-12 to
                                  # the norm); identical for near-unit quats.

# real spherical-harmonic constants (degrees 0..2)
_C0 = 0.28209479177387814
_C1 = 0.4886025119029199
_C2 = (1.0925484305920792, -1.0925484305920792, 0.31539156525252005,
       -1.0925484305920792, 0.5462742152960396)


def _sh_columns(vx, vy, vz):
    """9 real-SH basis columns (levels=3).  Works for numpy and jnp inputs."""
    xx, yy, zz = vx * vx, vy * vy, vz * vz
    one = vx * 0.0 + 1.0
    # TODO(synk): exact sign convention of the original SphericalEncoder is
    # unknown; the standard real SH basis (levels=3 -> 9 coeffs) is used here.
    return [
        _C0 * one,
        -_C1 * vy,
        _C1 * vz,
        -_C1 * vx,
        _C2[0] * vx * vy,
        _C2[1] * vy * vz,
        _C2[2] * (2.0 * zz - xx - yy),
        _C2[3] * vx * vz,
        _C2[4] * (xx - yy),
    ]


def _repack_params(params):
    """Fold SH constants + first-layer bias into one packed (16, d) weight.

    Original first-layer weight w0g has row layout [x(3), v(3), sh0..sh8, n(3)]
    with sh0 = C0, sh1 = -C1*vy, sh2 = C1*vz, sh3 = -C1*vx, sh4 = C2_0*xy,
    sh5 = C2_1*yz, sh6 = C2_2*(2zz-xx-yy), sh7 = C2_3*xz, sh8 = C2_4*(xx-yy).

    Packed row layout matches the packed geometric stream:
        [x(3), v(3), n(3), 1, xy, yz, xz, xx, yy, zz]   (16 rows, no padding)
    so layer 0 becomes a single (TM,16)@(16,d) MXU matmul (plus the z matmul).
    """
    w0g, w0z, b0, w1, b1, w2, b2 = params
    wx, wv, wsh, wn = w0g[0:3], w0g[3:6], w0g[6:15], w0g[15:18]

    wg = jnp.concatenate([
        wx,                                          # rows 0-2 : x
        (wv[0] - _C1 * wsh[3])[None],                # row 3    : vx (+ sh3)
        (wv[1] - _C1 * wsh[1])[None],                # row 4    : vy (+ sh1)
        (wv[2] + _C1 * wsh[2])[None],                # row 5    : vz (+ sh2)
        wn,                                          # rows 6-8 : n
        (b0[0] + _C0 * wsh[0])[None],                # row 9    : bias + sh0
        (_C2[0] * wsh[4])[None],                     # row 10   : xy  (sh4)
        (_C2[1] * wsh[5])[None],                     # row 11   : yz  (sh5)
        (_C2[3] * wsh[7])[None],                     # row 12   : xz  (sh7)
        (-_C2[2] * wsh[6] + _C2[4] * wsh[8])[None],  # row 13   : xx  (sh6+sh8)
        (-_C2[2] * wsh[6] - _C2[4] * wsh[8])[None],  # row 14   : yy  (sh6+sh8)
        (2.0 * _C2[2] * wsh[6])[None],               # row 15   : zz  (sh6)
    ], axis=0)                                       # (16, d)
    return wg, w0z, w1, b1, w2, b2


def _pack_geo(x, v, n):
    """Lane-dense packed geometric stream [x | v | n | 1 | monomials] (N,16)."""
    vx, vy, vz = v[:, 0:1], v[:, 1:2], v[:, 2:3]
    return jnp.concatenate(
        [x, v, n, jnp.ones_like(vx),
         vx * vy, vy * vz, vx * vz, vx * vx, vy * vy, vz * vz], axis=-1)


def _normalize(q):
    """q / ||q||  via EUP rsqrt + one Newton refinement (f32-accurate)."""
    s = jnp.sum(q * q, axis=-1, keepdims=True) + EPS_SQ
    inv = lax.rsqrt(s)
    inv = inv * (1.5 - 0.5 * s * inv * inv)          # one Newton step
    return q * inv


def _nbfield_kernel(g_ref, z_ref, wg_ref, wz_ref, w1_ref, b1_ref,
                    w2_ref, b2_ref, out_ref):
    # ---- layer 0: two MXU matmuls, everything (incl. SH + bias) folded -----
    h = jnp.dot(z_ref[...], wz_ref[...], preferred_element_type=jnp.float32)
    h = h + jnp.dot(g_ref[...], wg_ref[...], preferred_element_type=jnp.float32)
    h = jnp.maximum(h, LEAKY_SLOPE * h)              # LeakyReLU(0.2)

    # ---- hidden layer -------------------------------------------------------
    h = jnp.dot(h.astype(w1_ref.dtype), w1_ref[...],
                preferred_element_type=jnp.float32) + b1_ref[...]
    h = jnp.maximum(h, LEAKY_SLOPE * h)

    # ---- output layer + quaternion normalization ----------------------------
    q = jnp.dot(h.astype(w2_ref.dtype), w2_ref[...],
                preferred_element_type=jnp.float32) + b2_ref[...]
    out_ref[...] = _normalize(q).astype(out_ref.dtype)


@functools.partial(jax.jit, static_argnames=("tm", "mxu_dtype"))
def nbfield_forward(x, v, n, z, params, *, tm=2048, mxu_dtype=jnp.bfloat16):
    """x, v, n: (N, 3); z: (N, FEAT_DIM) -> unit quaternion (N, 4).

    mxu_dtype: operand dtype for the MXU matmuls (accumulation is always f32).
    bfloat16 (default) is the fast path on all TPU generations; float32 keeps
    bit-level parity with the original module.
    """
    N = x.shape[0]
    wg, wz, w1, b1, w2, b2 = _repack_params(params)

    g = _pack_geo(x, v, n).astype(mxu_dtype)                     # (N, 16)
    zc = z.astype(mxu_dtype)
    wg, wz = wg.astype(mxu_dtype), wz.astype(mxu_dtype)
    w1c, w2c = w1.astype(mxu_dtype), w2.astype(mxu_dtype)
    b1f, b2f = b1.astype(jnp.float32), b2.astype(jnp.float32)

    # Row tile: big enough to amortize the ~0.35us/step pipeline overhead,
    # capped so the parallel grid axis keeps >= 2 steps (v7x: 2 TCs/chip).
    if N > 8:
        tm = min(tm, pl.cdiv(pl.cdiv(N, 2), 8) * 8)
    tm = max(8, min(tm, pl.cdiv(N, 8) * 8))

    def row_spec(c):
        return pl.BlockSpec((tm, c), lambda i: (i, 0))

    def full_spec(a):
        return pl.BlockSpec(a.shape, lambda i: (0, 0))

    return pl.pallas_call(
        _nbfield_kernel,
        out_shape=jax.ShapeDtypeStruct((N, 4), jnp.float32),
        grid=(pl.cdiv(N, tm),),
        in_specs=[row_spec(GEO_PACKED), row_spec(zc.shape[1]),
                  full_spec(wg), full_spec(wz),
                  full_spec(w1c), full_spec(b1f),
                  full_spec(w2c), full_spec(b2f)],
        out_specs=row_spec(4),
        compiler_params=pltpu.CompilerParams(
            dimension_semantics=("parallel",)),
    )(g, zc, wg, wz, w1c, b1f, w2c, b2f)


def nbfield_ref(x, v, n, z, params, normalize=True):
    """Pure-JAX reference in the original parameterization (module formula)."""
    w0g, w0z, b0, w1, b1, w2, b2 = params
    vx, vy, vz = v[:, 0:1], v[:, 1:2], v[:, 2:3]
    sh = jnp.concatenate(_sh_columns(vx, vy, vz), axis=-1)
    geo = jnp.concatenate([x, v, sh, n], axis=-1)
    h = jnp.dot(geo, w0g) + jnp.dot(z, w0z) + b0
    h = jnp.maximum(h, LEAKY_SLOPE * h)
    h = jnp.dot(h, w1) + b1
    h = jnp.maximum(h, LEAKY_SLOPE * h)
    q = jnp.dot(h, w2) + b2
    if not normalize:
        return q
    return q / (1e-12 + jnp.sqrt(jnp.sum(q * q, axis=-1, keepdims=True)))


def nbfield_ref_packed(x, v, n, z, params, mxu_dtype):
    """Pure-JAX reference mirroring the kernel's decomposition + operand casts."""
    wg, wz, w1, b1, w2, b2 = _repack_params(params)
    g = _pack_geo(x, v, n).astype(mxu_dtype)
    zc = z.astype(mxu_dtype)
    wg, wz = wg.astype(mxu_dtype), wz.astype(mxu_dtype)
    w1c, w2c = w1.astype(mxu_dtype), w2.astype(mxu_dtype)
    dot = functools.partial(jnp.dot, preferred_element_type=jnp.float32,
                            precision=lax.Precision.HIGHEST)
    h = dot(zc, wz) + dot(g, wg)
    h = jnp.maximum(h, LEAKY_SLOPE * h)
    h = dot(h.astype(mxu_dtype), w1c) + b1.astype(jnp.float32)
    h = jnp.maximum(h, LEAKY_SLOPE * h)
    q = dot(h.astype(mxu_dtype), w2c) + b2.astype(jnp.float32)
    return _normalize(q)


if __name__ == "__main__":
    key = jax.random.PRNGKey(0)
    kx, kv, kn, kz, k0, k1, kb0, k2, kb1, kw2, kb2 = jax.random.split(key, 11)

    N = 2048
    x = jax.random.normal(kx, (N, 3), jnp.float32)
    v = jax.random.normal(kv, (N, 3), jnp.float32)
    v = v / jnp.linalg.norm(v, axis=-1, keepdims=True)   # unit view dirs
    n = jax.random.normal(kn, (N, 3), jnp.float32)
    z = jax.random.normal(kz, (N, FEAT_DIM), jnp.float32)

    scale = 0.1
    w0g = scale * jax.random.normal(k0, (GEO_DIM, D_HIDDEN), jnp.float32)
    w0z = scale * jax.random.normal(k1, (FEAT_DIM, D_HIDDEN), jnp.float32)
    b0 = scale * jax.random.normal(kb0, (1, D_HIDDEN), jnp.float32)
    w1 = scale * jax.random.normal(k2, (D_HIDDEN, D_HIDDEN), jnp.float32)
    b1 = scale * jax.random.normal(kb1, (1, D_HIDDEN), jnp.float32)
    # Head 1: exactly the module's __init__ (weight = 0, bias = [0, 1, 0, 0]).
    w2_init = jnp.zeros((D_HIDDEN, 4), jnp.float32)
    b2_init = jnp.array([[0.0, 1.0, 0.0, 0.0]], jnp.float32)
    # Head 2: random head so the full pipeline (incl. normalization) is tested.
    w2_rand = scale * jax.random.normal(kw2, (D_HIDDEN, 4), jnp.float32)
    b2_rand = scale * jax.random.normal(kb2, (1, 4), jnp.float32)

    # (A) float64 check: the offline SH/bias/monomial folding reproduces the
    #     original first layer (layers 1/2 reuse the weights verbatim).
    params0 = (w0g, w0z, b0, w1, b1, w2_init, b2_init)
    wg64 = np.asarray(_repack_params(params0)[0], np.float64)
    m = 64
    x64, v64, n64 = (np.asarray(a, np.float64)[:m] for a in (x, v, n))
    vx, vy, vz = v64[:, 0:1], v64[:, 1:2], v64[:, 2:3]
    sh64 = np.concatenate(_sh_columns(vx, vy, vz), axis=-1)
    geo64 = np.concatenate([x64, v64, sh64, n64], axis=-1)
    lhs = geo64 @ np.asarray(w0g, np.float64) + np.asarray(b0, np.float64)
    g64 = np.concatenate([x64, v64, n64, np.ones_like(vx),
                          vx * vy, vy * vz, vx * vz,
                          vx * vx, vy * vy, vz * vz], axis=-1)
    np.testing.assert_allclose(lhs, g64 @ wg64, rtol=1e-5, atol=1e-5)

    for (w2, b2) in ((w2_init, b2_init), (w2_rand, b2_rand)):
        params = (w0g, w0z, b0, w1, b1, w2, b2)
        ref_f32 = np.asarray(nbfield_ref(x, v, n, z, params))

        # --- default fast path: bf16 MXU operands, f32 accumulation ----------
        out_bf = jax.block_until_ready(nbfield_forward(x, v, n, z, params))
        assert out_bf.shape == (N, 4)
        assert bool(jnp.all(jnp.isfinite(out_bf)))
        # (B) vs a pure-JAX reference with IDENTICAL operand casting/decomposition.
        ref_b = nbfield_ref_packed(x, v, n, z, params, jnp.bfloat16)
        np.testing.assert_allclose(np.asarray(out_bf), np.asarray(ref_b),
                                   rtol=2e-3, atol=2e-3)
        # (C) vs the f32 module-formula reference; compare rows whose raw
        #     quaternion norm >= 1 (small-norm rows amplify bf16 rounding
        #     after normalization; the bf16 path is pinned by (A)+(B)).
        q_raw = np.asarray(nbfield_ref(x, v, n, z, params, normalize=False))
        well = np.linalg.norm(q_raw, axis=-1) >= 1.0
        np.testing.assert_allclose(np.asarray(out_bf)[well], ref_f32[well],
                                   rtol=5e-2, atol=5e-2)

        # --- exact path: f32 MXU operands ------------------------------------
        out_f32 = jax.block_until_ready(
            nbfield_forward(x, v, n, z, params, mxu_dtype=jnp.float32))
        assert bool(jnp.all(jnp.isfinite(out_f32)))
        ref_bp = nbfield_ref_packed(x, v, n, z, params, jnp.float32)
        np.testing.assert_allclose(np.asarray(out_f32), np.asarray(ref_bp),
                                   rtol=1e-5, atol=1e-5)
        # Loose tolerance only because XLA may run the reference's f32 matmuls
        # at reduced precision by default; (A) + the packed check pin exactness.
        np.testing.assert_allclose(np.asarray(out_f32), ref_f32,
                                   rtol=2e-2, atol=2e-2)

    print("KERNEL_OK")
</pallas_src>

<mosaic_0001>
module attributes {stable_mosaic.version = 11 : i64} {
  func.func @_nbfield_kernel(%arg0: i32, %arg1: memref<1024x16xbf16, #tpu.memory_space<vmem>>, %arg2: memref<1024x128xbf16, #tpu.memory_space<vmem>>, %arg3: memref<16x128xbf16, #tpu.memory_space<vmem>>, %arg4: memref<128x128xbf16, #tpu.memory_space<vmem>>, %arg5: memref<128x128xbf16, #tpu.memory_space<vmem>>, %arg6: memref<1x128xf32, #tpu.memory_space<vmem>>, %arg7: memref<128x4xbf16, #tpu.memory_space<vmem>>, %arg8: memref<1x4xf32, #tpu.memory_space<vmem>>, %arg9: memref<1024x4xf32, #tpu.memory_space<vmem>>) attributes {dimension_semantics = [#tpu.dimension_semantics<parallel>], iteration_bounds = array<i64: 2>, scalar_prefetch = 0 : i64, scratch_operands = 0 : i64, tpu.core_type = #tpu.core_type<tc>, window_params = [{transform_indices = @transform_0, window_bounds = array<i64: 1024, 16>}, {transform_indices = @transform_1, window_bounds = array<i64: 1024, 128>}, {pipeline_mode = #tpu.pipeline_mode<synchronous>, transform_indices = @transform_2, window_bounds = array<i64: 16, 128>}, {pipeline_mode = #tpu.pipeline_mode<synchronous>, transform_indices = @transform_3, window_bounds = array<i64: 128, 128>}, {pipeline_mode = #tpu.pipeline_mode<synchronous>, transform_indices = @transform_4, window_bounds = array<i64: 128, 128>}, {pipeline_mode = #tpu.pipeline_mode<synchronous>, transform_indices = @transform_5, window_bounds = array<i64: 1, 128>}, {pipeline_mode = #tpu.pipeline_mode<synchronous>, transform_indices = @transform_6, window_bounds = array<i64: 128, 4>}, {pipeline_mode = #tpu.pipeline_mode<synchronous>, transform_indices = @transform_7, window_bounds = array<i64: 1, 4>}, {transform_indices = @transform_8, window_bounds = array<i64: 1024, 4>}]} {
    %c0 = arith.constant 0 : index
    %c0_0 = arith.constant 0 : index
    %0 = vector.load %arg2[%c0, %c0_0] : memref<1024x128xbf16, #tpu.memory_space<vmem>>, vector<1024x128xbf16>
    %c0_1 = arith.constant 0 : index
    %c0_2 = arith.constant 0 : index
    %1 = vector.load %arg4[%c0_1, %c0_2] : memref<128x128xbf16, #tpu.memory_space<vmem>>, vector<128x128xbf16>
    %cst = arith.constant dense<0.000000e+00> : vector<1024x128xf32>
    %2 = tpu.matmul %0, %1, %cst {dimension_numbers = #tpu.dot_dimension_numbers<[1], [0], [0], [1], [0, 0, 1, 1], [], []>} : vector<1024x128xbf16>, vector<128x128xbf16>, vector<1024x128xf32> -> vector<1024x128xf32>
    %c0_3 = arith.constant 0 : index
    %c0_4 = arith.constant 0 : index
    %3 = vector.load %arg1[%c0_3, %c0_4] : memref<1024x16xbf16, #tpu.memory_space<vmem>>, vector<1024x16xbf16>
    %c0_5 = arith.constant 0 : index
    %c0_6 = arith.constant 0 : index
    %4 = vector.load %arg3[%c0_5, %c0_6] : memref<16x128xbf16, #tpu.memory_space<vmem>>, vector<16x128xbf16>
    %cst_7 = arith.constant dense<0.000000e+00> : vector<1024x128xf32>
    %5 = tpu.matmul %3, %4, %cst_7 {dimension_numbers = #tpu.dot_dimension_numbers<[1], [0], [0], [1], [0, 0, 1, 1], [], []>} : vector<1024x16xbf16>, vector<16x128xbf16>, vector<1024x128xf32> -> vector<1024x128xf32>
    %6 = arith.addf %2, %5 : vector<1024x128xf32>
    %cst_8 = arith.constant 2.000000e-01 : f32
    %7 = vector.broadcast %cst_8 : f32 to vector<1024x128xf32>
    %8 = arith.mulf %7, %6 : vector<1024x128xf32>
    %9 = arith.maximumf %6, %8 : vector<1024x128xf32>
    %10 = arith.truncf %9 : vector<1024x128xf32> to vector<1024x128xbf16>
    %c0_9 = arith.constant 0 : index
    %c0_10 = arith.constant 0 : index
    %11 = vector.load %arg5[%c0_9, %c0_10] : memref<128x128xbf16, #tpu.memory_space<vmem>>, vector<128x128xbf16>
    %cst_11 = arith.constant dense<0.000000e+00> : vector<1024x128xf32>
    %12 = tpu.matmul %10, %11, %cst_11 {dimension_numbers = #tpu.dot_dimension_numbers<[1], [0], [0], [1], [0, 0, 1, 1], [], []>} : vector<1024x128xbf16>, vector<128x128xbf16>, vector<1024x128xf32> -> vector<1024x128xf32>
    %c0_12 = arith.constant 0 : index
    %c0_13 = arith.constant 0 : index
    %13 = vector.load %arg6[%c0_12, %c0_13] : memref<1x128xf32, #tpu.memory_space<vmem>>, vector<1x128xf32>
    %14 = vector.broadcast %13 : vector<1x128xf32> to vector<1024x128xf32>
    %15 = arith.addf %12, %14 : vector<1024x128xf32>
    %cst_14 = arith.constant 2.000000e-01 : f32
    %16 = vector.broadcast %cst_14 : f32 to vector<1024x128xf32>
    %17 = arith.mulf %16, %15 : vector<1024x128xf32>
    %18 = arith.maximumf %15, %17 : vector<1024x128xf32>
    %19 = arith.truncf %18 : vector<1024x128xf32> to vector<1024x128xbf16>
    %c0_15 = arith.constant 0 : index
    %c0_16 = arith.constant 0 : index
    %20 = vector.load %arg7[%c0_15, %c0_16] : memref<128x4xbf16, #tpu.memory_space<vmem>>, vector<128x4xbf16>
    %cst_17 = arith.constant dense<0.000000e+00> : vector<1024x4xf32>
    %21 = tpu.matmul %19, %20, %cst_17 {dimension_numbers = #tpu.dot_dimension_numbers<[1], [0], [0], [1], [0, 0, 1, 1], [], []>} : vector<1024x128xbf16>, vector<128x4xbf16>, vector<1024x4xf32> -> vector<1024x4xf32>
    %c0_18 = arith.constant 0 : index
    %c0_19 = arith.constant 0 : index
    %22 = vector.load %arg8[%c0_18, %c0_19] : memref<1x4xf32, #tpu.memory_space<vmem>>, vector<1x4xf32>
    %23 = vector.broadcast %22 : vector<1x4xf32> to vector<1024x4xf32>
    %24 = arith.addf %21, %23 : vector<1024x4xf32>
    %25 = arith.mulf %24, %24 : vector<1024x4xf32>
    %cst_20 = arith.constant dense<0.000000e+00> : vector<1024xf32>
    %26 = vector.multi_reduction <add>, %25, %cst_20 [1] : vector<1024x4xf32> to vector<1024xf32>
    %27 = vector.shape_cast %26 : vector<1024xf32> to vector<1024x1xf32>
    %cst_21 = arith.constant 1.000000e-24 : f32
    %28 = vector.broadcast %cst_21 : f32 to vector<1024x1xf32>
    %29 = arith.addf %27, %28 : vector<1024x1xf32>
    %30 = math.rsqrt %29 : vector<1024x1xf32>
    %cst_22 = arith.constant 5.000000e-01 : f32
    %31 = vector.broadcast %cst_22 : f32 to vector<1024x1xf32>
    %32 = arith.mulf %31, %29 : vector<1024x1xf32>
    %33 = arith.mulf %32, %30 : vector<1024x1xf32>
    %34 = arith.mulf %33, %30 : vector<1024x1xf32>
    %cst_23 = arith.constant 1.500000e+00 : f32
    %35 = vector.broadcast %cst_23 : f32 to vector<1024x1xf32>
    %36 = arith.subf %35, %34 : vector<1024x1xf32>
    %37 = arith.mulf %30, %36 : vector<1024x1xf32>
    %38 = vector.broadcast %37 : vector<1024x1xf32> to vector<1024x4xf32>
    %39 = arith.mulf %24, %38 : vector<1024x4xf32>
    %c0_24 = arith.constant 0 : index
    %c0_25 = arith.constant 0 : index
    %40 = vector.load %arg9[%c0_24, %c0_25] : memref<1024x4xf32, #tpu.memory_space<vmem>>, vector<1024x4xf32>
    tpu.vector_store %arg9[%c0_24, %c0_25], %39 {strides = array<i32>} : memref<1024x4xf32, #tpu.memory_space<vmem>>, vector<1024x4xf32>,
    return
  }
  func.func @transform_0(%arg0: i32) -> (i32, i32) {
    %c0_i32 = arith.constant 0 : i32
    %c0_i32_0 = arith.constant 0 : i32
    return %arg0, %c0_i32 : i32, i32
  }
  func.func @transform_1(%arg0: i32) -> (i32, i32) {
    %c0_i32 = arith.constant 0 : i32
    %c0_i32_0 = arith.constant 0 : i32
    return %arg0, %c0_i32 : i32, i32
  }
  func.func @transform_2(%arg0: i32) -> (i32, i32) {
    %c0_i32 = arith.constant 0 : i32
    %c0_i32_0 = arith.constant 0 : i32
    %c0_i32_1 = arith.constant 0 : i32
    return %c0_i32, %c0_i32_0 : i32, i32
  }
  func.func @transform_3(%arg0: i32) -> (i32, i32) {
    %c0_i32 = arith.constant 0 : i32
    %c0_i32_0 = arith.constant 0 : i32
    %c0_i32_1 = arith.constant 0 : i32
    return %c0_i32, %c0_i32_0 : i32, i32
  }
  func.func @transform_4(%arg0: i32) -> (i32, i32) {
    %c0_i32 = arith.constant 0 : i32
    %c0_i32_0 = arith.constant 0 : i32
    %c0_i32_1 = arith.constant 0 : i32
    return %c0_i32, %c0_i32_0 : i32, i32
  }
  func.func @transform_5(%arg0: i32) -> (i32, i32) {
    %c0_i32 = arith.constant 0 : i32
    %c0_i32_0 = arith.constant 0 : i32
    %c0_i32_1 = arith.constant 0 : i32
    return %c0_i32, %c0_i32_0 : i32, i32
  }
  func.func @transform_6(%arg0: i32) -> (i32, i32) {
    %c0_i32 = arith.constant 0 : i32
    %c0_i32_0 = arith.constant 0 : i32
    %c0_i32_1 = arith.constant 0 : i32
    return %c0_i32, %c0_i32_0 : i32, i32
  }
  func.func @transform_7(%arg0: i32) -> (i32, i32) {
    %c0_i32 = arith.constant 0 : i32
    %c0_i32_0 = arith.constant 0 : i32
    %c0_i32_1 = arith.constant 0 : i32
    return %c0_i32, %c0_i32_0 : i32, i32
  }
  func.func @transform_8(%arg0: i32) -> (i32, i32) {
    %c0_i32 = arith.constant 0 : i32
    %c0_i32_0 = arith.constant 0 : i32
    return %arg0, %c0_i32 : i32, i32
  }
}

</mosaic_0001>

<llo_original>
// kernel: nbfield_forward.1
$region0: #{nbfield_forward.1}
  #allocation0 [shape = 'u32[]', space=smem, size = 0x4, offset = 0x4, fixed_abs, tag = 'smem constant byte address 0x4 - core index']
  #allocation1 [shape = 'u32[72,128]{1,0:T(1,128)}', space=vmem, size = 0x9000, scoped, tag = 'internal scratch']
  %s0 = inlined_call_operand.vmem [shape: bf16[2048,16], index: 0, kind: input, shape index: {}]
  %s1 = inlined_call_operand.vmem [shape: bf16[2048,128], index: 1, kind: input, shape index: {}]
  %s2 = inlined_call_operand.vmem [shape: bf16[16,128], index: 2, kind: input, shape index: {}]
  %s3 = inlined_call_operand.vmem [shape: bf16[128,128], index: 3, kind: input, shape index: {}]
  %s4 = inlined_call_operand.vmem [shape: bf16[128,128], index: 4, kind: input, shape index: {}]
  %s5 = inlined_call_operand.vmem [shape: f32[1,128], index: 5, kind: input, shape index: {}]
  %s6 = inlined_call_operand.vmem [shape: bf16[128,4], index: 6, kind: input, shape index: {}]
  %s7 = inlined_call_operand.vmem [shape: f32[1,4], index: 7, kind: input, shape index: {}]
  %s8 = inlined_call_operand.vmem [shape: f32[2048,4], index: 8, kind: output, shape index: {}]
  %s9 = sld [smem:[#allocation0]]
  $region65: #{nbfield_forward.1} parent=0
    _
  %s11 = ssub.s32 1, %s9
  %s12 = scalar_select 0, %s11, %s9
  loop: start=0, step=1, limit=4
  $region2: #{nbfield_forward.1} parent=0 // loop_pre_header
    _
  $region3: #{nbfield_forward.1} parent=0 // loop_header
    %s14 = sphi 0, %s18
    %p15 = scmp.ge.s32.totalorder %s14, 4
    %s24 = sphi 0, %s26
    %s27 = sphi 0, %s24
    %s28 = sphi 0, %s27
    %s44 = sphi 0, %s28
    %s50 = sphi 0, %s52
    %s53 = sphi 0, %s50
    %s54 = sphi 0, %s53
    %s70 = sphi 0, %s54
    %s74 = sphi 0, %s74
    %s76 = sphi 0, %s74
    %s77 = sphi 0, %s76
    %s91 = sphi 0, %s77
    %s95 = sphi 0, %s95
    %s97 = sphi 0, %s95
    %s98 = sphi 0, %s97
    %s112 = sphi 0, %s98
    %s116 = sphi 0, %s116
    %s118 = sphi 0, %s116
    %s119 = sphi 0, %s118
    %s133 = sphi 0, %s119
    %s137 = sphi 0, %s137
    %s139 = sphi 0, %s137
    %s140 = sphi 0, %s139
    %s154 = sphi 0, %s140
    %s158 = sphi 0, %s158
    %s160 = sphi 0, %s158
    %s161 = sphi 0, %s160
    %s175 = sphi 0, %s161
    %s179 = sphi 0, %s179
    %s181 = sphi 0, %s179
    %s182 = sphi 0, %s181
    %s196 = sphi 0, %s182
    %s202 = sphi 0, %s204
    %s205 = sphi 0, %s202
    %s206 = sphi 0, %s205
    %s222 = sphi 0, %s206
  $region4: #{nbfield_forward.1} parent=0 // loop_header_branch
    %17 = sbr.rel (%p15) target = $region8
  $region5: #{nbfield_forward.1} parent=0 // loop_body
    %s19 = ssub.s32 %s14, 1
    %s20 = ssub.s32 %s14, 2
    %s21 = sadd.s32 %s14, 1
    %s22 = ssub.s32 %s14, %s21
    %p23 = scmp.eq.s32.totalorder %s22, 0
    %s25 = sadd.s32 %s24, 1
    %s26 = scalar_select %p23, %s24, %s25
    %p29 = pneg %p23
    %p30 = scmp.eq.s32.totalorder %s14, 1
    %p31 = por %p29, %p30
    %p32 = scmp.ne.s32.totalorder %s24, %s27
    %p33 = scmp.eq.s32.totalorder %s14, 0
    %p34 = por %p32, %p33
    %p35 = scmp.ne.s32.totalorder %s24, %s27
    %p36 = scmp.eq.s32.totalorder %s19, 1
    %p37 = por %p35, %p36
    %p38 = scmp.ne.s32.totalorder %s27, %s28
    %p39 = scmp.eq.s32.totalorder %s19, 0
    %p40 = por %p38, %p39
    %p41 = scmp.ne.s32.totalorder %s27, %s28
    %p42 = scmp.eq.s32.totalorder %s20, 1
    %p43 = por %p41, %p42
    %p45 = scmp.ne.s32.totalorder %s28, %s44
    %p46 = scmp.eq.s32.totalorder %s20, 0
    %p47 = por %p45, %p46
    %s48 = ssub.s32 %s14, %s21
    %p49 = scmp.eq.s32.totalorder %s48, 0
    %s51 = sadd.s32 %s50, 1
    %s52 = scalar_select %p49, %s50, %s51
    %p55 = pneg %p49
    %p56 = scmp.eq.s32.totalorder %s14, 1
    %p57 = por %p55, %p56
    %p58 = scmp.ne.s32.totalorder %s50, %s53
    %p59 = scmp.eq.s32.totalorder %s14, 0
    %p60 = por %p58, %p59
    %p61 = scmp.ne.s32.totalorder %s50, %s53
    %p62 = scmp.eq.s32.totalorder %s19, 1
    %p63 = por %p61, %p62
    %p64 = scmp.ne.s32.totalorder %s53, %s54
    %p65 = scmp.eq.s32.totalorder %s19, 0
    %p66 = por %p64, %p65
    %p67 = scmp.ne.s32.totalorder %s53, %s54
    %p68 = scmp.eq.s32.totalorder %s20, 1
    %p69 = por %p67, %p68
    %p71 = scmp.ne.s32.totalorder %s54, %s70
    %p72 = scmp.eq.s32.totalorder %s20, 0
    %p73 = por %p71, %p72
    %s75 = sadd.s32 %s74, 1
    %p78 = scmp.eq.s32.totalorder %s14, 1
    %p79 = scmp.ne.s32.totalorder %s74, %s76
    %p80 = scmp.eq.s32.totalorder %s14, 0
    %p81 = por %p79, %p80
    %p82 = scmp.ne.s32.totalorder %s74, %s76
    %p83 = scmp.eq.s32.totalorder %s19, 1
    %p84 = por %p82, %p83
    %p85 = scmp.ne.s32.totalorder %s76, %s77
    %p86 = scmp.eq.s32.totalorder %s19, 0
    %p87 = por %p85, %p86
    %p88 = scmp.ne.s32.totalorder %s76, %s77
    %p89 = scmp.eq.s32.totalorder %s20, 1
    %p90 = por %p88, %p89
    %p92 = scmp.ne.s32.totalorder %s77, %s91
    %p93 = scmp.eq.s32.totalorder %s20, 0
    %p94 = por %p92, %p93
    %s96 = sadd.s32 %s95, 1
    %p99 = scmp.eq.s32.totalorder %s14, 1
    %p100 = scmp.ne.s32.totalorder %s95, %s97
    %p101 = scmp.eq.s32.totalorder %s14, 0
    %p102 = por %p100, %p101
    %p103 = scmp.ne.s32.totalorder %s95, %s97
    %p104 = scmp.eq.s32.totalorder %s19, 1
    %p105 = por %p103, %p104
    %p106 = scmp.ne.s32.totalorder %s97, %s98
    %p107 = scmp.eq.s32.totalorder %s19, 0
    %p108 = por %p106, %p107
    %p109 = scmp.ne.s32.totalorder %s97, %s98
    %p110 = scmp.eq.s32.totalorder %s20, 1
    %p111 = por %p109, %p110
    %p113 = scmp.ne.s32.totalorder %s98, %s112
    %p114 = scmp.eq.s32.totalorder %s20, 0
    %p115 = por %p113, %p114
    %s117 = sadd.s32 %s116, 1
    %p120 = scmp.eq.s32.totalorder %s14, 1
    %p121 = scmp.ne.s32.totalorder %s116, %s118
    %p122 = scmp.eq.s32.totalorder %s14, 0
    %p123 = por %p121, %p122
    %p124 = scmp.ne.s32.totalorder %s116, %s118
    %p125 = scmp.eq.s32.totalorder %s19, 1
    %p126 = por %p124, %p125
    %p127 = scmp.ne.s32.totalorder %s118, %s119
    %p128 = scmp.eq.s32.totalorder %s19, 0
    %p129 = por %p127, %p128
    %p130 = scmp.ne.s32.totalorder %s118, %s119
    %p131 = scmp.eq.s32.totalorder %s20, 1
    %p132 = por %p130, %p131
    %p134 = scmp.ne.s32.totalorder %s119, %s133
    %p135 = scmp.eq.s32.totalorder %s20, 0
    %p136 = por %p134, %p135
    %s138 = sadd.s32 %s137, 1
    %p141 = scmp.eq.s32.totalorder %s14, 1
    %p142 = scmp.ne.s32.totalorder %s137, %s139
    %p143 = scmp.eq.s32.totalorder %s14, 0
    %p144 = por %p142, %p143
    %p145 = scmp.ne.s32.totalorder %s137, %s139
    %p146 = scmp.eq.s32.totalorder %s19, 1
    %p147 = por %p145, %p146
    %p148 = scmp.ne.s32.totalorder %s139, %s140
    %p149 = scmp.eq.s32.totalorder %s19, 0
    %p150 = por %p148, %p149
    %p151 = scmp.ne.s32.totalorder %s139, %s140
    %p152 = scmp.eq.s32.totalorder %s20, 1
    %p153 = por %p151, %p152
    %p155 = scmp.ne.s32.totalorder %s140, %s154
    %p156 = scmp.eq.s32.totalorder %s20, 0
    %p157 = por %p155, %p156
    %s159 = sadd.s32 %s158, 1
    %p162 = scmp.eq.s32.totalorder %s14, 1
    %p163 = scmp.ne.s32.totalorder %s158, %s160
    %p164 = scmp.eq.s32.totalorder %s14, 0
    %p165 = por %p163, %p164
    %p166 = scmp.ne.s32.totalorder %s158, %s160
    %p167 = scmp.eq.s32.totalorder %s19, 1
    %p168 = por %p166, %p167
    %p169 = scmp.ne.s32.totalorder %s160, %s161
    %p170 = scmp.eq.s32.totalorder %s19, 0
    %p171 = por %p169, %p170
    %p172 = scmp.ne.s32.totalorder %s160, %s161
    %p173 = scmp.eq.s32.totalorder %s20, 1
    %p174 = por %p172, %p173
    %p176 = scmp.ne.s32.totalorder %s161, %s175
    %p177 = scmp.eq.s32.totalorder %s20, 0
    %p178 = por %p176, %p177
    %s180 = sadd.s32 %s179, 1
    %p183 = scmp.eq.s32.totalorder %s14, 1
    %p184 = scmp.ne.s32.totalorder %s179, %s181
    %p185 = scmp.eq.s32.totalorder %s14, 0
    %p186 = por %p184, %p185
    %p187 = scmp.ne.s32.totalorder %s179, %s181
    %p188 = scmp.eq.s32.totalorder %s19, 1
    %p189 = por %p187, %p188
    %p190 = scmp.ne.s32.totalorder %s181, %s182
    %p191 = scmp.eq.s32.totalorder %s19, 0
    %p192 = por %p190, %p191
    %p193 = scmp.ne.s32.totalorder %s181, %s182
    %p194 = scmp.eq.s32.totalorder %s20, 1
    %p195 = por %p193, %p194
    %p197 = scmp.ne.s32.totalorder %s182, %s196
    %p198 = scmp.eq.s32.totalorder %s20, 0
    %p199 = por %p197, %p198
    %s200 = ssub.s32 %s14, %s21
    %p201 = scmp.eq.s32.totalorder %s200, 0
    %s203 = sadd.s32 %s202, 1
    %s204 = scalar_select %p201, %s202, %s203
    %p207 = pneg %p201
    %p208 = scmp.eq.s32.totalorder %s14, 1
    %p209 = por %p207, %p208
    %p210 = scmp.ne.s32.totalorder %s202, %s205
    %p211 = scmp.eq.s32.totalorder %s14, 0
    %p212 = por %p210, %p211
    %p213 = scmp.ne.s32.totalorder %s202, %s205
    %p214 = scmp.eq.s32.totalorder %s19, 1
    %p215 = por %p213, %p214
    %p216 = scmp.ne.s32.totalorder %s205, %s206
    %p217 = scmp.eq.s32.totalorder %s19, 0
    %p218 = por %p216, %p217
    %p219 = scmp.ne.s32.totalorder %s205, %s206
    %p220 = scmp.eq.s32.totalorder %s20, 1
    %p221 = por %p219, %p220
    %p223 = scmp.ne.s32.totalorder %s206, %s222
    %p224 = scmp.eq.s32.totalorder %s20, 0
    %p225 = por %p223, %p224
    %p226 = scmp.le.s32.totalorder 1, %s14
    %p227 = scmp.lt.s32.totalorder %s14, 3
    %p228 = pnand %p226, %p227
    %p229 = pneg %p228
    // Predicated region
    $region9: #{nbfield_forward.1} parent=5 // pred_check
      _
    $region10: #{nbfield_forward.1} parent=5 // pred_check_branch
      %231 = sbr.rel (%p228) target = $region12
    $region11: #{nbfield_forward.1} parent=5 // pred_region
      %s232 = ssub.s32 %s14, 1
      // Predicated region
      $region13: #{nbfield_forward.1} parent=11 // pred_check
        %p233 = pneg %p87
      $region14: #{nbfield_forward.1} parent=11 // pred_check_branch
        %235 = sbr.rel (%p233) target = $region16
      $region15: #{nbfield_forward.1} parent=11 // pred_region
        _
      $region16: #{nbfield_forward.1} parent=11 // pred_fallthru
        _
      // Predicated region
      $region17: #{nbfield_forward.1} parent=11 // pred_check
        %p236 = pneg %p108
      $region18: #{nbfield_forward.1} parent=11 // pred_check_branch
        %238 = sbr.rel (%p236) target = $region20
      $region19: #{nbfield_forward.1} parent=11 // pred_region
        _
      $region20: #{nbfield_forward.1} parent=11 // pred_fallthru
        _
      // Predicated region
      $region21: #{nbfield_forward.1} parent=11 // pred_check
        %p239 = pneg %p129
      $region22: #{nbfield_forward.1} parent=11 // pred_check_branch
        %241 = sbr.rel (%p239) target = $region24
      $region23: #{nbfield_forward.1} parent=11 // pred_region
        _
      $region24: #{nbfield_forward.1} parent=11 // pred_fallthru
        _
      // Predicated region
      $region25: #{nbfield_forward.1} parent=11 // pred_check
        %p242 = pneg %p150
      $region26: #{nbfield_forward.1} parent=11 // pred_check_branch
        %244 = sbr.rel (%p242) target = $region28
      $region27: #{nbfield_forward.1} parent=11 // pred_region
        _
      $region28: #{nbfield_forward.1} parent=11 // pred_fallthru
        _
      // Predicated region
      $region29: #{nbfield_forward.1} parent=11 // pred_check
        %p245 = pneg %p171
      $region30: #{nbfield_forward.1} parent=11 // pred_check_branch
        %247 = sbr.rel (%p245) target = $region32
      $region31: #{nbfield_forward.1} parent=11 // pred_region
        _
      $region32: #{nbfield_forward.1} parent=11 // pred_fallthru
        _
      // Predicated region
      $region33: #{nbfield_forward.1} parent=11 // pred_check
        %p248 = pneg %p192
      $region34: #{nbfield_forward.1} parent=11 // pred_check_branch
        %250 = sbr.rel (%p248) target = $region36
      $region35: #{nbfield_forward.1} parent=11 // pred_region
        _
      $region36: #{nbfield_forward.1} parent=11 // pred_fallthru
        _
    $region12: #{nbfield_forward.1} parent=5 // pred_fallthru
      _
    %p251 = scmp.lt.s32.totalorder %s14, 2
    // Predicated region
    $region37: #{nbfield_forward.1} parent=5 // pred_check
      %p252 = pneg %p251
    $region38: #{nbfield_forward.1} parent=5 // pred_check_branch
      %254 = sbr.rel (%p252) target = $region40
    $region39: #{nbfield_forward.1} parent=5 // pred_region
      // Predicated region
      $region41: #{nbfield_forward.1} parent=39 // pred_check
        %p255 = pneg %p34
      $region42: #{nbfield_forward.1} parent=39 // pred_check_branch
        %257 = sbr.rel (%p255) target = $region44
      $region43: #{nbfield_forward.1} parent=39 // pred_region
        %s258 = smul.u32 128, %s14
        %p259 = scmp.lt.s32.totalorder %s258, 255
        %s260 = scalar_select %p259, %s258, 255
        %s261 = smul.addr %s260, 4
        %s262 = scalar_lea.vmem %s0, %s261
        %s263 = smul.u32 128, %s14
      $region44: #{nbfield_forward.1} parent=39 // pred_fallthru
        _
      // Predicated region
      $region45: #{nbfield_forward.1} parent=39 // pred_check
        %p264 = pneg %p60
      $region46: #{nbfield_forward.1} parent=39 // pred_check_branch
        %266 = sbr.rel (%p264) target = $region48
      $region47: #{nbfield_forward.1} parent=39 // pred_region
        %s267 = smul.u32 128, %s14
        %p268 = scmp.lt.s32.totalorder %s267, 255
        %s269 = scalar_select %p268, %s267, 255
        %s270 = smul.addr %s269, 4
        %s271 = scalar_lea.vmem %s1, %s270
        %s272 = smul.u32 128, %s14
      $region48: #{nbfield_forward.1} parent=39 // pred_fallthru
        _
    $region40: #{nbfield_forward.1} parent=5 // pred_fallthru
      _
    %p273 = scmp.le.s32.totalorder 1, %s14
    %p274 = scmp.lt.s32.totalorder %s14, 3
    %p275 = pnand %p273, %p274
    %p276 = pneg %p275
    // Predicated region
    $region49: #{nbfield_forward.1} parent=5 // pred_check
      _
    $region50: #{nbfield_forward.1} parent=5 // pred_check_branch
      %278 = sbr.rel (%p275) target = $region52
    $region51: #{nbfield_forward.1} parent=5 // pred_region
      %s279 = ssub.s32 %s14, 1
      %s280 = smul.u32 128, %s19
      %p281 = scmp.lt.s32.totalorder %s280, 255
      %s282 = scalar_select %p281, %s280, 255
      %s283 = smul.addr %s282, 4
      %s284 = scalar_lea.vmem %s0, %s283
      %p285 = pneg %p40
      %p286 = pneg %p37
      %s287 = smul.u32 128, %s19
      %p288 = scmp.lt.s32.totalorder %s287, 255
      %s289 = scalar_select %p288, %s287, 255
      %s290 = smul.addr %s289, 4
      %s291 = scalar_lea.vmem %s1, %s290
      %p292 = pneg %p66
      %p293 = pneg %p63
      %p294 = pneg %p87
      %p295 = pneg %p84
      %p296 = pneg %p108
      %p297 = pneg %p105
      %p298 = pneg %p129
      %p299 = pneg %p126
      %p300 = pneg %p150
      %p301 = pneg %p147
      %p302 = pneg %p171
      %p303 = pneg %p168
      %p304 = pneg %p192
      %p305 = pneg %p189
      %p306 = pneg %p218
      %p307 = pneg %p215
      %s308 = smul.u32 128, %s19
      %p309 = scmp.lt.s32.totalorder %s308, 255
      %s310 = scalar_select %p309, %s308, 255
      %s311 = smul.addr %s310, 8
      %s312 = scalar_lea.vmem %s8, %s311
      %s313 = smul.u32 128, %s19
      %p314 = scmp.lt.s32.totalorder %s313, 255
      %s315 = scalar_select %p314, %s313, 255
      %s316 = smul.addr %s315, 4
      %s317 = scalar_lea.vmem %s0, %s316
      %s318 = smul.u32 128, %s19
      %s319 = smul.u32 128, %s19
      %p320 = scmp.lt.s32.totalorder %s319, 255
      %s321 = scalar_select %p320, %s319, 255
      %s322 = smul.addr %s321, 4
      %s323 = scalar_lea.vmem %s1, %s322
      %s324 = smul.u32 128, %s19
      %s325 = smul.u32 128, %s19
      %p326 = scmp.lt.s32.totalorder %s325, 255
      %s327 = scalar_select %p326, %s325, 255
      %s328 = smul.addr %s327, 8
      %s329 = scalar_lea.vmem %s8, %s328
      %s330 = smul.u32 128, %s19
      %v332 = vld [vmem:[%s323] sm:$0xf]
      %v333 = vld [vmem:[%s323 + $0x4] sm:$0xf]
      %v334 = vld [vmem:[%s323 + $0x8] sm:$0xf]
      %v335 = vld [vmem:[%s323 + $0xc] sm:$0xf]
      %v336 = vld [vmem:[%s323 + $0x10] sm:$0xf]
      %v337 = vld [vmem:[%s323 + $0x14] sm:$0xf]
      %v338 = vld [vmem:[%s323 + $0x18] sm:$0xf]
      %v339 = vld [vmem:[%s323 + $0x1c] sm:$0xf]
      %v340 = vld [vmem:[%s323 + $0x20] sm:$0xf]
      %v341 = vld [vmem:[%s323 + $0x24] sm:$0xf]
      %v342 = vld [vmem:[%s323 + $0x28] sm:$0xf]
      %v343 = vld [vmem:[%s323 + $0x2c] sm:$0xf]
      %v344 = vld [vmem:[%s323 + $0x30] sm:$0xf]
      %v345 = vld [vmem:[%s323 + $0x34] sm:$0xf]
      %v346 = vld [vmem:[%s323 + $0x38] sm:$0xf]
      %v347 = vld [vmem:[%s323 + $0x3c] sm:$0xf]
      %v348 = vld [vmem:[%s323 + $0x40] sm:$0xf]
      %v349 = vld [vmem:[%s323 + $0x44] sm:$0xf]
      %v350 = vld [vmem:[%s323 + $0x48] sm:$0xf]
      %v351 = vld [vmem:[%s323 + $0x4c] sm:$0xf]
      %v352 = vld [vmem:[%s323 + $0x50] sm:$0xf]
      %v353 = vld [vmem:[%s323 + $0x54] sm:$0xf]
      %v354 = vld [vmem:[%s323 + $0x58] sm:$0xf]
      %v355 = vld [vmem:[%s323 + $0x5c] sm:$0xf]
      %v356 = vld [vmem:[%s323 + $0x60] sm:$0xf]
      %v357 = vld [vmem:[%s323 + $0x64] sm:$0xf]
      %v358 = vld [vmem:[%s323 + $0x68] sm:$0xf]
      %v359 = vld [vmem:[%s323 + $0x6c] sm:$0xf]
      %v360 = vld [vmem:[%s323 + $0x70] sm:$0xf]
      %v361 = vld [vmem:[%s323 + $0x74] sm:$0xf]
      %v362 = vld [vmem:[%s323 + $0x78] sm:$0xf]
      %v363 = vld [vmem:[%s323 + $0x7c] sm:$0xf]
      %v364 = vld [vmem:[%s323 + $0x80] sm:$0xf]
      %v365 = vld [vmem:[%s323 + $0x84] sm:$0xf]
      %v366 = vld [vmem:[%s323 + $0x88] sm:$0xf]
      %v367 = vld [vmem:[%s323 + $0x8c] sm:$0xf]
      %v368 = vld [vmem:[%s323 + $0x90] sm:$0xf]
      %v369 = vld [vmem:[%s323 + $0x94] sm:$0xf]
      %v370 = vld [vmem:[%s323 + $0x98] sm:$0xf]
      %v371 = vld [vmem:[%s323 + $0x9c] sm:$0xf]
      %v372 = vld [vmem:[%s323 + $0xa0] sm:$0xf]
      %v373 = vld [vmem:[%s323 + $0xa4] sm:$0xf]
      %v374 = vld [vmem:[%s323 + $0xa8] sm:$0xf]
      %v375 = vld [vmem:[%s323 + $0xac] sm:$0xf]
      %v376 = vld [vmem:[%s323 + $0xb0] sm:$0xf]
      %v377 = vld [vmem:[%s323 + $0xb4] sm:$0xf]
      %v378 = vld [vmem:[%s323 + $0xb8] sm:$0xf]
      %v379 = vld [vmem:[%s323 + $0xbc] sm:$0xf]
      %v380 = vld [vmem:[%s323 + $0xc0] sm:$0xf]
      %v381 = vld [vmem:[%s323 + $0xc4] sm:$0xf]
      %v382 = vld [vmem:[%s323 + $0xc8] sm:$0xf]
      %v383 = vld [vmem:[%s323 + $0xcc] sm:$0xf]
      %v384 = vld [vmem:[%s323 + $0xd0] sm:$0xf]
      %v385 = vld [vmem:[%s323 + $0xd4] sm:$0xf]
      %v386 = vld [vmem:[%s323 + $0xd8] sm:$0xf]
      %v387 = vld [vmem:[%s323 + $0xdc] sm:$0xf]
      %v388 = vld [vmem:[%s323 + $0xe0] sm:$0xf]
      %v389 = vld [vmem:[%s323 + $0xe4] sm:$0xf]
      %v390 = vld [vmem:[%s323 + $0xe8] sm:$0xf]
      %v391 = vld [vmem:[%s323 + $0xec] sm:$0xf]
      %v392 = vld [vmem:[%s323 + $0xf0] sm:$0xf]
      %v393 = vld [vmem:[%s323 + $0xf4] sm:$0xf]
      %v394 = vld [vmem:[%s323 + $0xf8] sm:$0xf]
      %v395 = vld [vmem:[%s323 + $0xfc] sm:$0xf]
      %v396 = vld [vmem:[%s323 + $0x100] sm:$0xf]
      %v397 = vld [vmem:[%s323 + $0x104] sm:$0xf]
      %v398 = vld [vmem:[%s323 + $0x108] sm:$0xf]
      %v399 = vld [vmem:[%s323 + $0x10c] sm:$0xf]
      %v400 = vld [vmem:[%s323 + $0x110] sm:$0xf]
      %v401 = vld [vmem:[%s323 + $0x114] sm:$0xf]
      %v402 = vld [vmem:[%s323 + $0x118] sm:$0xf]
      %v403 = vld [vmem:[%s323 + $0x11c] sm:$0xf]
      %v404 = vld [vmem:[%s323 + $0x120] sm:$0xf]
      %v405 = vld [vmem:[%s323 + $0x124] sm:$0xf]
      %v406 = vld [vmem:[%s323 + $0x128] sm:$0xf]
      %v407 = vld [vmem:[%s323 + $0x12c] sm:$0xf]
      %v408 = vld [vmem:[%s323 + $0x130] sm:$0xf]
      %v409 = vld [vmem:[%s323 + $0x134] sm:$0xf]
      %v410 = vld [vmem:[%s323 + $0x138] sm:$0xf]
      %v411 = vld [vmem:[%s323 + $0x13c] sm:$0xf]
      %v412 = vld [vmem:[%s323 + $0x140] sm:$0xf]
      %v413 = vld [vmem:[%s323 + $0x144] sm:$0xf]
      %v414 = vld [vmem:[%s323 + $0x148] sm:$0xf]
      %v415 = vld [vmem:[%s323 + $0x14c] sm:$0xf]
      %v416 = vld [vmem:[%s323 + $0x150] sm:$0xf]
      %v417 = vld [vmem:[%s323 + $0x154] sm:$0xf]
      %v418 = vld [vmem:[%s323 + $0x158] sm:$0xf]
      %v419 = vld [vmem:[%s323 + $0x15c] sm:$0xf]
      %v420 = vld [vmem:[%s323 + $0x160] sm:$0xf]
      %v421 = vld [vmem:[%s323 + $0x164] sm:$0xf]
      %v422 = vld [vmem:[%s323 + $0x168] sm:$0xf]
      %v423 = vld [vmem:[%s323 + $0x16c] sm:$0xf]
      %v424 = vld [vmem:[%s323 + $0x170] sm:$0xf]
      %v425 = vld [vmem:[%s323 + $0x174] sm:$0xf]
      %v426 = vld [vmem:[%s323 + $0x178] sm:$0xf]
      %v427 = vld [vmem:[%s323 + $0x17c] sm:$0xf]
      %v428 = vld [vmem:[%s323 + $0x180] sm:$0xf]
      %v429 = vld [vmem:[%s323 + $0x184] sm:$0xf]
      %v430 = vld [vmem:[%s323 + $0x188] sm:$0xf]
      %v431 = vld [vmem:[%s323 + $0x18c] sm:$0xf]
      %v432 = vld [vmem:[%s323 + $0x190] sm:$0xf]
      %v433 = vld [vmem:[%s323 + $0x194] sm:$0xf]
      %v434 = vld [vmem:[%s323 + $0x198] sm:$0xf]
      %v435 = vld [vmem:[%s323 + $0x19c] sm:$0xf]
      %v436 = vld [vmem:[%s323 + $0x1a0] sm:$0xf]
      %v437 = vld [vmem:[%s323 + $0x1a4] sm:$0xf]
      %v438 = vld [vmem:[%s323 + $0x1a8] sm:$0xf]
      %v439 = vld [vmem:[%s323 + $0x1ac] sm:$0xf]
      %v440 = vld [vmem:[%s323 + $0x1b0] sm:$0xf]
      %v441 = vld [vmem:[%s323 + $0x1b4] sm:$0xf]
      %v442 = vld [vmem:[%s323 + $0x1b8] sm:$0xf]
      %v443 = vld [vmem:[%s323 + $0x1bc] sm:$0xf]
      %v444 = vld [vmem:[%s323 + $0x1c0] sm:$0xf]
      %v445 = vld [vmem:[%s323 + $0x1c4] sm:$0xf]
      %v446 = vld [vmem:[%s323 + $0x1c8] sm:$0xf]
      %v447 = vld [vmem:[%s323 + $0x1cc] sm:$0xf]
      %v448 = vld [vmem:[%s323 + $0x1d0] sm:$0xf]
      %v449 = vld [vmem:[%s323 + $0x1d4] sm:$0xf]
      %v450 = vld [vmem:[%s323 + $0x1d8] sm:$0xf]
      %v451 = vld [vmem:[%s323 + $0x1dc] sm:$0xf]
      %v452 = vld [vmem:[%s323 + $0x1e0] sm:$0xf]
      %v453 = vld [vmem:[%s323 + $0x1e4] sm:$0xf]
      %v454 = vld [vmem:[%s323 + $0x1e8] sm:$0xf]
      %v455 = vld [vmem:[%s323 + $0x1ec] sm:$0xf]
      %v456 = vld [vmem:[%s323 + $0x1f0] sm:$0xf]
      %v457 = vld [vmem:[%s323 + $0x1f4] sm:$0xf]
      %v458 = vld [vmem:[%s323 + $0x1f8] sm:$0xf]
      %v459 = vld [vmem:[%s323 + $0x1fc] sm:$0xf]
      %v460 = vld [vmem:[%s3] sm:$0xf]
      %v461 = vld [vmem:[%s3 + $0x4] sm:$0xf]
      %v462 = vld [vmem:[%s3 + $0x8] sm:$0xf]
      %v463 = vld [vmem:[%s3 + $0xc] sm:$0xf]
      %v464 = vld [vmem:[%s3 + $0x10] sm:$0xf]
      %v465 = vld [vmem:[%s3 + $0x14] sm:$0xf]
      %v466 = vld [vmem:[%s3 + $0x18] sm:$0xf]
      %v467 = vld [vmem:[%s3 + $0x1c] sm:$0xf]
      %v468 = vld [vmem:[%s3 + $0x20] sm:$0xf]
      %v469 = vld [vmem:[%s3 + $0x24] sm:$0xf]
      %v470 = vld [vmem:[%s3 + $0x28] sm:$0xf]
      %v471 = vld [vmem:[%s3 + $0x2c] sm:$0xf]
      %v472 = vld [vmem:[%s3 + $0x30] sm:$0xf]
      %v473 = vld [vmem:[%s3 + $0x34] sm:$0xf]
      %v474 = vld [vmem:[%s3 + $0x38] sm:$0xf]
      %v475 = vld [vmem:[%s3 + $0x3c] sm:$0xf]
      %v476 = vld [vmem:[%s317] sm:$0xf]
      %v477 = vld [vmem:[%s317 + $0x4] sm:$0xf]
      %v478 = vld [vmem:[%s317 + $0x8] sm:$0xf]
      %v479 = vld [vmem:[%s317 + $0xc] sm:$0xf]
      %v480 = vld [vmem:[%s317 + $0x10] sm:$0xf]
      %v481 = vld [vmem:[%s317 + $0x14] sm:$0xf]
      %v482 = vld [vmem:[%s317 + $0x18] sm:$0xf]
      %v483 = vld [vmem:[%s317 + $0x1c] sm:$0xf]
      %v484 = vld [vmem:[%s317 + $0x20] sm:$0xf]
      %v485 = vld [vmem:[%s317 + $0x24] sm:$0xf]
      %v486 = vld [vmem:[%s317 + $0x28] sm:$0xf]
      %v487 = vld [vmem:[%s317 + $0x2c] sm:$0xf]
      %v488 = vld [vmem:[%s317 + $0x30] sm:$0xf]
      %v489 = vld [vmem:[%s317 + $0x34] sm:$0xf]
      %v490 = vld [vmem:[%s317 + $0x38] sm:$0xf]
      %v491 = vld [vmem:[%s317 + $0x3c] sm:$0xf]
      %v492 = vld [vmem:[%s317 + $0x40] sm:$0xf]
      %v493 = vld [vmem:[%s317 + $0x44] sm:$0xf]
      %v494 = vld [vmem:[%s317 + $0x48] sm:$0xf]
      %v495 = vld [vmem:[%s317 + $0x4c] sm:$0xf]
      %v496 = vld [vmem:[%s317 + $0x50] sm:$0xf]
      %v497 = vld [vmem:[%s317 + $0x54] sm:$0xf]
      %v498 = vld [vmem:[%s317 + $0x58] sm:$0xf]
      %v499 = vld [vmem:[%s317 + $0x5c] sm:$0xf]
      %v500 = vld [vmem:[%s317 + $0x60] sm:$0xf]
      %v501 = vld [vmem:[%s317 + $0x64] sm:$0xf]
      %v502 = vld [vmem:[%s317 + $0x68] sm:$0xf]
      %v503 = vld [vmem:[%s317 + $0x6c] sm:$0xf]
      %v504 = vld [vmem:[%s317 + $0x70] sm:$0xf]
      %v505 = vld [vmem:[%s317 + $0x74] sm:$0xf]
      %v506 = vld [vmem:[%s317 + $0x78] sm:$0xf]
      %v507 = vld [vmem:[%s317 + $0x7c] sm:$0xf]
      %v508 = vld [vmem:[%s317 + $0x80] sm:$0xf]
      %v509 = vld [vmem:[%s317 + $0x84] sm:$0xf]
      %v510 = vld [vmem:[%s317 + $0x88] sm:$0xf]
      %v511 = vld [vmem:[%s317 + $0x8c] sm:$0xf]
      %v512 = vld [vmem:[%s317 + $0x90] sm:$0xf]
      %v513 = vld [vmem:[%s317 + $0x94] sm:$0xf]
      %v514 = vld [vmem:[%s317 + $0x98] sm:$0xf]
      %v515 = vld [vmem:[%s317 + $0x9c] sm:$0xf]
      %v516 = vld [vmem:[%s317 + $0xa0] sm:$0xf]
      %v517 = vld [vmem:[%s317 + $0xa4] sm:$0xf]
      %v518 = vld [vmem:[%s317 + $0xa8] sm:$0xf]
      %v519 = vld [vmem:[%s317 + $0xac] sm:$0xf]
      %v520 = vld [vmem:[%s317 + $0xb0] sm:$0xf]
      %v521 = vld [vmem:[%s317 + $0xb4] sm:$0xf]
      %v522 = vld [vmem:[%s317 + $0xb8] sm:$0xf]
      %v523 = vld [vmem:[%s317 + $0xbc] sm:$0xf]
      %v524 = vld [vmem:[%s317 + $0xc0] sm:$0xf]
      %v525 = vld [vmem:[%s317 + $0xc4] sm:$0xf]
      %v526 = vld [vmem:[%s317 + $0xc8] sm:$0xf]
      %v527 = vld [vmem:[%s317 + $0xcc] sm:$0xf]
      %v528 = vld [vmem:[%s317 + $0xd0] sm:$0xf]
      %v529 = vld [vmem:[%s317 + $0xd4] sm:$0xf]
      %v530 = vld [vmem:[%s317 + $0xd8] sm:$0xf]
      %v531 = vld [vmem:[%s317 + $0xdc] sm:$0xf]
      %v532 = vld [vmem:[%s317 + $0xe0] sm:$0xf]
      %v533 = vld [vmem:[%s317 + $0xe4] sm:$0xf]
      %v534 = vld [vmem:[%s317 + $0xe8] sm:$0xf]
      %v535 = vld [vmem:[%s317 + $0xec] sm:$0xf]
      %v536 = vld [vmem:[%s317 + $0xf0] sm:$0xf]
      %v537 = vld [vmem:[%s317 + $0xf4] sm:$0xf]
      %v538 = vld [vmem:[%s317 + $0xf8] sm:$0xf]
      %v539 = vld [vmem:[%s317 + $0xfc] sm:$0xf]
      %v540 = vld [vmem:[%s317 + $0x100] sm:$0xf]
      %v541 = vld [vmem:[%s317 + $0x104] sm:$0xf]
      %v542 = vld [vmem:[%s317 + $0x108] sm:$0xf]
      %v543 = vld [vmem:[%s317 + $0x10c] sm:$0xf]
      %v544 = vld [vmem:[%s317 + $0x110] sm:$0xf]
      %v545 = vld [vmem:[%s317 + $0x114] sm:$0xf]
      %v546 = vld [vmem:[%s317 + $0x118] sm:$0xf]
      %v547 = vld [vmem:[%s317 + $0x11c] sm:$0xf]
      %v548 = vld [vmem:[%s317 + $0x120] sm:$0xf]
      %v549 = vld [vmem:[%s317 + $0x124] sm:$0xf]
      %v550 = vld [vmem:[%s317 + $0x128] sm:$0xf]
      %v551 = vld [vmem:[%s317 + $0x12c] sm:$0xf]
      %v552 = vld [vmem:[%s317 + $0x130] sm:$0xf]
      %v553 = vld [vmem:[%s317 + $0x134] sm:$0xf]
      %v554 = vld [vmem:[%s317 + $0x138] sm:$0xf]
      %v555 = vld [vmem:[%s317 + $0x13c] sm:$0xf]
      %v556 = vld [vmem:[%s317 + $0x140] sm:$0xf]
      %v557 = vld [vmem:[%s317 + $0x144] sm:$0xf]
      %v558 = vld [vmem:[%s317 + $0x148] sm:$0xf]
      %v559 = vld [vmem:[%s317 + $0x14c] sm:$0xf]
      %v560 = vld [vmem:[%s317 + $0x150] sm:$0xf]
      %v561 = vld [vmem:[%s317 + $0x154] sm:$0xf]
      %v562 = vld [vmem:[%s317 + $0x158] sm:$0xf]
      %v563 = vld [vmem:[%s317 + $0x15c] sm:$0xf]
      %v564 = vld [vmem:[%s317 + $0x160] sm:$0xf]
      %v565 = vld [vmem:[%s317 + $0x164] sm:$0xf]
      %v566 = vld [vmem:[%s317 + $0x168] sm:$0xf]
      %v567 = vld [vmem:[%s317 + $0x16c] sm:$0xf]
      %v568 = vld [vmem:[%s317 + $0x170] sm:$0xf]
      %v569 = vld [vmem:[%s317 + $0x174] sm:$0xf]
      %v570 = vld [vmem:[%s317 + $0x178] sm:$0xf]
      %v571 = vld [vmem:[%s317 + $0x17c] sm:$0xf]
      %v572 = vld [vmem:[%s317 + $0x180] sm:$0xf]
      %v573 = vld [vmem:[%s317 + $0x184] sm:$0xf]
      %v574 = vld [vmem:[%s317 + $0x188] sm:$0xf]
      %v575 = vld [vmem:[%s317 + $0x18c] sm:$0xf]
      %v576 = vld [vmem:[%s317 + $0x190] sm:$0xf]
      %v577 = vld [vmem:[%s317 + $0x194] sm:$0xf]
      %v578 = vld [vmem:[%s317 + $0x198] sm:$0xf]
      %v579 = vld [vmem:[%s317 + $0x19c] sm:$0xf]
      %v580 = vld [vmem:[%s317 + $0x1a0] sm:$0xf]
      %v581 = vld [vmem:[%s317 + $0x1a4] sm:$0xf]
      %v582 = vld [vmem:[%s317 + $0x1a8] sm:$0xf]
      %v583 = vld [vmem:[%s317 + $0x1ac] sm:$0xf]
      %v584 = vld [vmem:[%s317 + $0x1b0] sm:$0xf]
      %v585 = vld [vmem:[%s317 + $0x1b4] sm:$0xf]
      %v586 = vld [vmem:[%s317 + $0x1b8] sm:$0xf]
      %v587 = vld [vmem:[%s317 + $0x1bc] sm:$0xf]
      %v588 = vld [vmem:[%s317 + $0x1c0] sm:$0xf]
      %v589 = vld [vmem:[%s317 + $0x1c4] sm:$0xf]
      %v590 = vld [vmem:[%s317 + $0x1c8] sm:$0xf]
      %v591 = vld [vmem:[%s317 + $0x1cc] sm:$0xf]
      %v592 = vld [vmem:[%s317 + $0x1d0] sm:$0xf]
      %v593 = vld [vmem:[%s317 + $0x1d4] sm:$0xf]
      %v594 = vld [vmem:[%s317 + $0x1d8] sm:$0xf]
      %v595 = vld [vmem:[%s317 + $0x1dc] sm:$0xf]
      %v596 = vld [vmem:[%s317 + $0x1e0] sm:$0xf]
      %v597 = vld [vmem:[%s317 + $0x1e4] sm:$0xf]
      %v598 = vld [vmem:[%s317 + $0x1e8] sm:$0xf]
      %v599 = vld [vmem:[%s317 + $0x1ec] sm:$0xf]
      %v600 = vld [vmem:[%s317 + $0x1f0] sm:$0xf]
      %v601 = vld [vmem:[%s317 + $0x1f4] sm:$0xf]
      %v602 = vld [vmem:[%s317 + $0x1f8] sm:$0xf]
      %v603 = vld [vmem:[%s317 + $0x1fc] sm:$0xf]
      %v604 = vld [vmem:[%s2] sm:$0xf]
      %v605 = vld [vmem:[%s2 + $0x4] sm:$0xf]
      %v734 = vunpack.c.l.b16 %v476
      %v735 = vunpack.c.l.b16 %v477
      %v736 = vunpack.c.l.b16 %v478
      %v737 = vunpack.c.l.b16 %v479
      %v738 = vunpack.c.l.b16 %v480
      %v739 = vunpack.c.l.b16 %v481
      %v740 = vunpack.c.l.b16 %v482
      %v741 = vunpack.c.l.b16 %v483
      %v742 = vunpack.c.l.b16 %v484
      %v743 = vunpack.c.l.b16 %v485
      %v744 = vunpack.c.l.b16 %v486
      %v745 = vunpack.c.l.b16 %v487
      %v746 = vunpack.c.l.b16 %v488
      %v747 = vunpack.c.l.b16 %v489
      %v748 = vunpack.c.l.b16 %v490
      %v749 = vunpack.c.l.b16 %v491
      %v750 = vunpack.c.l.b16 %v492
      %v751 = vunpack.c.l.b16 %v493
      %v752 = vunpack.c.l.b16 %v494
      %v753 = vunpack.c.l.b16 %v495
      %v754 = vunpack.c.l.b16 %v496
      %v755 = vunpack.c.l.b16 %v497
      %v756 = vunpack.c.l.b16 %v498
      %v757 = vunpack.c.l.b16 %v499
      %v758 = vunpack.c.l.b16 %v500
      %v759 = vunpack.c.l.b16 %v501
      %v760 = vunpack.c.l.b16 %v502
      %v761 = vunpack.c.l.b16 %v503
      %v762 = vunpack.c.l.b16 %v504
      %v763 = vunpack.c.l.b16 %v505
      %v764 = vunpack.c.l.b16 %v506
      %v765 = vunpack.c.l.b16 %v507
      %v766 = vunpack.c.l.b16 %v508
      %v767 = vunpack.c.l.b16 %v509
      %v768 = vunpack.c.l.b16 %v510
      %v769 = vunpack.c.l.b16 %v511
      %v770 = vunpack.c.l.b16 %v512
      %v771 = vunpack.c.l.b16 %v513
      %v772 = vunpack.c.l.b16 %v514
      %v773 = vunpack.c.l.b16 %v515
      %v774 = vunpack.c.l.b16 %v516
      %v775 = vunpack.c.l.b16 %v517
      %v776 = vunpack.c.l.b16 %v518
      %v777 = vunpack.c.l.b16 %v519
      %v778 = vunpack.c.l.b16 %v520
      %v779 = vunpack.c.l.b16 %v521
      %v780 = vunpack.c.l.b16 %v522
      %v781 = vunpack.c.l.b16 %v523
      %v782 = vunpack.c.l.b16 %v524
      %v783 = vunpack.c.l.b16 %v525
      %v784 = vunpack.c.l.b16 %v526
      %v785 = vunpack.c.l.b16 %v527
      %v786 = vunpack.c.l.b16 %v528
      %v787 = vunpack.c.l.b16 %v529
      %v788 = vunpack.c.l.b16 %v530
      %v789 = vunpack.c.l.b16 %v531
      %v790 = vunpack.c.l.b16 %v532
      %v791 = vunpack.c.l.b16 %v533
      %v792 = vunpack.c.l.b16 %v534
      %v793 = vunpack.c.l.b16 %v535
      %v794 = vunpack.c.l.b16 %v536
      %v795 = vunpack.c.l.b16 %v537
      %v796 = vunpack.c.l.b16 %v538
      %v797 = vunpack.c.l.b16 %v539
      %v798 = vunpack.c.l.b16 %v540
      %v799 = vunpack.c.l.b16 %v541
      %v800 = vunpack.c.l.b16 %v542
      %v801 = vunpack.c.l.b16 %v543
      %v802 = vunpack.c.l.b16 %v544
      %v803 = vunpack.c.l.b16 %v545
      %v804 = vunpack.c.l.b16 %v546
      %v805 = vunpack.c.l.b16 %v547
      %v806 = vunpack.c.l.b16 %v548
      %v807 = vunpack.c.l.b16 %v549
      %v808 = vunpack.c.l.b16 %v550
      %v809 = vunpack.c.l.b16 %v551
      %v810 = vunpack.c.l.b16 %v552
      %v811 = vunpack.c.l.b16 %v553
      %v812 = vunpack.c.l.b16 %v554
      %v813 = vunpack.c.l.b16 %v555
      %v814 = vunpack.c.l.b16 %v556
      %v815 = vunpack.c.l.b16 %v557
      %v816 = vunpack.c.l.b16 %v558
      %v817 = vunpack.c.l.b16 %v559
      %v818 = vunpack.c.l.b16 %v560
      %v819 = vunpack.c.l.b16 %v561
      %v820 = vunpack.c.l.b16 %v562
      %v821 = vunpack.c.l.b16 %v563
      %v822 = vunpack.c.l.b16 %v564
      %v823 = vunpack.c.l.b16 %v565
      %v824 = vunpack.c.l.b16 %v566
      %v825 = vunpack.c.l.b16 %v567
      %v826 = vunpack.c.l.b16 %v568
      %v827 = vunpack.c.l.b16 %v569
      %v828 = vunpack.c.l.b16 %v570
      %v829 = vunpack.c.l.b16 %v571
      %v830 = vunpack.c.l.b16 %v572
      %v831 = vunpack.c.l.b16 %v573
      %v832 = vunpack.c.l.b16 %v574
      %v833 = vunpack.c.l.b16 %v575
      %v834 = vunpack.c.l.b16 %v576
      %v835 = vunpack.c.l.b16 %v577
      %v836 = vunpack.c.l.b16 %v578
      %v837 = vunpack.c.l.b16 %v579
      %v838 = vunpack.c.l.b16 %v580
      %v839 = vunpack.c.l.b16 %v581
      %v840 = vunpack.c.l.b16 %v582
      %v841 = vunpack.c.l.b16 %v583
      %v842 = vunpack.c.l.b16 %v584
      %v843 = vunpack.c.l.b16 %v585
      %v844 = vunpack.c.l.b16 %v586
      %v845 = vunpack.c.l.b16 %v587
      %v846 = vunpack.c.l.b16 %v588
      %v847 = vunpack.c.l.b16 %v589
      %v848 = vunpack.c.l.b16 %v590
      %v849 = vunpack.c.l.b16 %v591
      %v850 = vunpack.c.l.b16 %v592
      %v851 = vunpack.c.l.b16 %v593
      %v852 = vunpack.c.l.b16 %v594
      %v853 = vunpack.c.l.b16 %v595
      %v854 = vunpack.c.l.b16 %v596
      %v855 = vunpack.c.l.b16 %v597
      %v856 = vunpack.c.l.b16 %v598
      %v857 = vunpack.c.l.b16 %v599
      %v858 = vunpack.c.l.b16 %v600
      %v859 = vunpack.c.l.b16 %v601
      %v860 = vunpack.c.l.b16 %v602
      %v861 = vunpack.c.l.b16 %v603
      %v862 = vpack.c.b16 %v735, %v734
      %v863 = vpack.c.b16 %v737, %v736
      %v864 = vpack.c.b16 %v739, %v738
      %v865 = vpack.c.b16 %v741, %v740
      %v866 = vpack.c.b16 %v743, %v742
      %v867 = vpack.c.b16 %v745, %v744
      %v868 = vpack.c.b16 %v747, %v746
      %v869 = vpack.c.b16 %v749, %v748
      %v870 = vpack.c.b16 %v751, %v750
      %v871 = vpack.c.b16 %v753, %v752
      %v872 = vpack.c.b16 %v755, %v754
      %v873 = vpack.c.b16 %v757, %v756
      %v874 = vpack.c.b16 %v759, %v758
      %v875 = vpack.c.b16 %v761, %v760
      %v876 = vpack.c.b16 %v763, %v762
      %v877 = vpack.c.b16 %v765, %v764
      %v878 = vpack.c.b16 %v767, %v766
      %v879 = vpack.c.b16 %v769, %v768
      %v880 = vpack.c.b16 %v771, %v770
      %v881 = vpack.c.b16 %v773, %v772
      %v882 = vpack.c.b16 %v775, %v774
      %v883 = vpack.c.b16 %v777, %v776
      %v884 = vpack.c.b16 %v779, %v778
      %v885 = vpack.c.b16 %v781, %v780
      %v886 = vpack.c.b16 %v783, %v782
      %v887 = vpack.c.b16 %v785, %v784
      %v888 = vpack.c.b16 %v787, %v786
      %v889 = vpack.c.b16 %v789, %v788
      %v890 = vpack.c.b16 %v791, %v790
      %v891 = vpack.c.b16 %v793, %v792
      %v892 = vpack.c.b16 %v795, %v794
      %v893 = vpack.c.b16 %v797, %v796
      %v894 = vpack.c.b16 %v799, %v798
      %v895 = vpack.c.b16 %v801, %v800
      %v896 = vpack.c.b16 %v803, %v802
      %v897 = vpack.c.b16 %v805, %v804
      %v898 = vpack.c.b16 %v807, %v806
      %v899 = vpack.c.b16 %v809, %v808
      %v900 = vpack.c.b16 %v811, %v810
      %v901 = vpack.c.b16 %v813, %v812
      %v902 = vpack.c.b16 %v815, %v814
      %v903 = vpack.c.b16 %v817, %v816
      %v904 = vpack.c.b16 %v819, %v818
      %v905 = vpack.c.b16 %v821, %v820
      %v906 = vpack.c.b16 %v823, %v822
      %v907 = vpack.c.b16 %v825, %v824
      %v908 = vpack.c.b16 %v827, %v826
      %v909 = vpack.c.b16 %v829, %v828
      %v910 = vpack.c.b16 %v831, %v830
      %v911 = vpack.c.b16 %v833, %v832
      %v912 = vpack.c.b16 %v835, %v834
      %v913 = vpack.c.b16 %v837, %v836
      %v914 = vpack.c.b16 %v839, %v838
      %v915 = vpack.c.b16 %v841, %v840
      %v916 = vpack.c.b16 %v843, %v842
      %v917 = vpack.c.b16 %v845, %v844
      %v918 = vpack.c.b16 %v847, %v846
      %v919 = vpack.c.b16 %v849, %v848
      %v920 = vpack.c.b16 %v851, %v850
      %v921 = vpack.c.b16 %v853, %v852
      %v922 = vpack.c.b16 %v855, %v854
      %v923 = vpack.c.b16 %v857, %v856
      %v924 = vpack.c.b16 %v859, %v858
      %v925 = vpack.c.b16 %v861, %v860
      %v928 = vunpack.c.l.b16 %v604
      %v929 = vunpack.c.l.b16 %v605
      %v930 = vpack.c.b16 %v929, %v928
      %vm932 = vcmask 130048
      %v934 = vsel %vm932, %v862, 0
      %v937 = vsel %vm932, %v863, 0
      %v940 = vsel %vm932, %v864, 0
      %v943 = vsel %vm932, %v865, 0
      %v946 = vsel %vm932, %v866, 0
      %v949 = vsel %vm932, %v867, 0
      %v952 = vsel %vm932, %v868, 0
      %v955 = vsel %vm932, %v869, 0
      %v958 = vsel %vm932, %v870, 0
      %v961 = vsel %vm932, %v871, 0
      %v964 = vsel %vm932, %v872, 0
      %v967 = vsel %vm932, %v873, 0
      %v970 = vsel %vm932, %v874, 0
      %v973 = vsel %vm932, %v875, 0
      %v976 = vsel %vm932, %v876, 0
      %v979 = vsel %vm932, %v877, 0
      %v982 = vsel %vm932, %v878, 0
      %v985 = vsel %vm932, %v879, 0
      %v988 = vsel %vm932, %v880, 0
      %v991 = vsel %vm932, %v881, 0
      %v994 = vsel %vm932, %v882, 0
      %v997 = vsel %vm932, %v883, 0
      %v1000 = vsel %vm932, %v884, 0
      %v1003 = vsel %vm932, %v885, 0
      %v1006 = vsel %vm932, %v886, 0
      %v1009 = vsel %vm932, %v887, 0
      %v1012 = vsel %vm932, %v888, 0
      %v1015 = vsel %vm932, %v889, 0
      %v1018 = vsel %vm932, %v890, 0
      %v1021 = vsel %vm932, %v891, 0
      %v1024 = vsel %vm932, %v892, 0
      %v1027 = vsel %vm932, %v893, 0
      %v1030 = vsel %vm932, %v894, 0
      %v1033 = vsel %vm932, %v895, 0
      %v1036 = vsel %vm932, %v896, 0
      %v1039 = vsel %vm932, %v897, 0
      %v1042 = vsel %vm932, %v898, 0
      %v1045 = vsel %vm932, %v899, 0
      %v1048 = vsel %vm932, %v900, 0
      %v1051 = vsel %vm932, %v901, 0
      %v1054 = vsel %vm932, %v902, 0
      %v1057 = vsel %vm932, %v903, 0
      %v1060 = vsel %vm932, %v904, 0
      %v1063 = vsel %vm932, %v905, 0
      %v1066 = vsel %vm932, %v906, 0
      %v1069 = vsel %vm932, %v907, 0
      %v1072 = vsel %vm932, %v908, 0
      %v1075 = vsel %vm932, %v909, 0
      %v1078 = vsel %vm932, %v910, 0
      %v1081 = vsel %vm932, %v911, 0
      %v1084 = vsel %vm932, %v912, 0
      %v1087 = vsel %vm932, %v913, 0
      %v1090 = vsel %vm932, %v914, 0
      %v1093 = vsel %vm932, %v915, 0
      %v1096 = vsel %vm932, %v916, 0
      %v1099 = vsel %vm932, %v917, 0
      %v1102 = vsel %vm932, %v918, 0
      %v1105 = vsel %vm932, %v919, 0
      %v1108 = vsel %vm932, %v920, 0
      %v1111 = vsel %vm932, %v921, 0
      %v1114 = vsel %vm932, %v922, 0
      %v1117 = vsel %vm932, %v923, 0
      %v1120 = vsel %vm932, %v924, 0
      %v1123 = vsel %vm932, %v925, 0
      %1125 = vmatpush.bf16.msra.mxu0 0
      %1126 = vmatpush.bf16.msra.mxu0 0
      %1127 = vmatpush.bf16.msra.mxu0 0
      %1128 = vmatpush.bf16.msra.mxu0 0
      %1129 = vmatpush.bf16.msra.mxu0 0
      %1130 = vmatpush.bf16.msra.mxu0 0
      %1131 = vmatpush.bf16.msra.mxu0 0
      %1132 = vmatpush.bf16.msra.mxu0 %v930
      %1133 = vmatmul.bf16.gmra.mxu0 %v934
      %v1134 = vpop.f32.mrf.mxu0
      %v1135 = vadd.f32 0.0, %v1134
      %v1136 = vpop.f32.mrf.mxu0
      %v1137 = vadd.f32 0.0, %v1136
      %1138 = vmatmul.bf16.gmra.mxu0 %v937
      %v1139 = vpop.f32.mrf.mxu0
      %v1140 = vadd.f32 0.0, %v1139
      %v1141 = vpop.f32.mrf.mxu0
      %v1142 = vadd.f32 0.0, %v1141
      %1143 = vmatmul.bf16.gmra.mxu0 %v940
      %v1144 = vpop.f32.mrf.mxu0
      %v1145 = vadd.f32 0.0, %v1144
      %v1146 = vpop.f32.mrf.mxu0
      %v1147 = vadd.f32 0.0, %v1146
      %1148 = vmatmul.bf16.gmra.mxu0 %v943
      %v1149 = vpop.f32.mrf.mxu0
      %v1150 = vadd.f32 0.0, %v1149
      %v1151 = vpop.f32.mrf.mxu0
      %v1152 = vadd.f32 0.0, %v1151
      %1153 = vmatmul.bf16.gmra.mxu0 %v946
      %v1154 = vpop.f32.mrf.mxu0
      %v1155 = vadd.f32 0.0, %v1154
      %v1156 = vpop.f32.mrf.mxu0
      %v1157 = vadd.f32 0.0, %v1156
      %1158 = vmatmul.bf16.gmra.mxu0 %v949
      %v1159 = vpop.f32.mrf.mxu0
      %v1160 = vadd.f32 0.0, %v1159
      %v1161 = vpop.f32.mrf.mxu0
      %v1162 = vadd.f32 0.0, %v1161
      %1163 = vmatmul.bf16.gmra.mxu0 %v952
      %v1164 = vpop.f32.mrf.mxu0
      %v1165 = vadd.f32 0.0, %v1164
      %v1166 = vpop.f32.mrf.mxu0
      %v1167 = vadd.f32 0.0, %v1166
      %1168 = vmatmul.bf16.gmra.mxu0 %v955
      %v1169 = vpop.f32.mrf.mxu0
      %v1170 = vadd.f32 0.0, %v1169
      %v1171 = vpop.f32.mrf.mxu0
      %v1172 = vadd.f32 0.0, %v1171
      %1173 = vmatmul.bf16.gmra.mxu0 %v958
      %v1174 = vpop.f32.mrf.mxu0
      %v1175 = vadd.f32 0.0, %v1174
      %v1176 = vpop.f32.mrf.mxu0
      %v1177 = vadd.f32 0.0, %v1176
      %1178 = vmatmul.bf16.gmra.mxu0 %v961
      %v1179 = vpop.f32.mrf.mxu0
      %v1180 = vadd.f32 0.0, %v1179
      %v1181 = vpop.f32.mrf.mxu0
      %v1182 = vadd.f32 0.0, %v1181
      %1183 = vmatmul.bf16.gmra.mxu0 %v964
      %v1184 = vpop.f32.mrf.mxu0
      %v1185 = vadd.f32 0.0, %v1184
      %v1186 = vpop.f32.mrf.mxu0
      %v1187 = vadd.f32 0.0, %v1186
      %1188 = vmatmul.bf16.gmra.mxu0 %v967
      %v1189 = vpop.f32.mrf.mxu0
      %v1190 = vadd.f32 0.0, %v1189
      %v1191 = vpop.f32.mrf.mxu0
      %v1192 = vadd.f32 0.0, %v1191
      %1193 = vmatmul.bf16.gmra.mxu0 %v970
      %v1194 = vpop.f32.mrf.mxu0
      %v1195 = vadd.f32 0.0, %v1194
      %v1196 = vpop.f32.mrf.mxu0
      %v1197 = vadd.f32 0.0, %v1196
      %1198 = vmatmul.bf16.gmra.mxu0 %v973
      %v1199 = vpop.f32.mrf.mxu0
      %v1200 = vadd.f32 0.0, %v1199
      %v1201 = vpop.f32.mrf.mxu0
      %v1202 = vadd.f32 0.0, %v1201
      %1203 = vmatmul.bf16.gmra.mxu0 %v976
      %v1204 = vpop.f32.mrf.mxu0
      %v1205 = vadd.f32 0.0, %v1204
      %v1206 = vpop.f32.mrf.mxu0
      %v1207 = vadd.f32 0.0, %v1206
      %1208 = vmatmul.bf16.gmra.mxu0 %v979
      %v1209 = vpop.f32.mrf.mxu0
      %v1210 = vadd.f32 0.0, %v1209
      %v1211 = vpop.f32.mrf.mxu0
      %v1212 = vadd.f32 0.0, %v1211
      %1213 = vmatmul.bf16.gmra.mxu0 %v982
      %v1214 = vpop.f32.mrf.mxu0
      %v1215 = vadd.f32 0.0, %v1214
      %v1216 = vpop.f32.mrf.mxu0
      %v1217 = vadd.f32 0.0, %v1216
      %1218 = vmatmul.bf16.gmra.mxu0 %v985
      %v1219 = vpop.f32.mrf.mxu0
      %v1220 = vadd.f32 0.0, %v1219
      %v1221 = vpop.f32.mrf.mxu0
      %v1222 = vadd.f32 0.0, %v1221
      %1223 = vmatmul.bf16.gmra.mxu0 %v988
      %v1224 = vpop.f32.mrf.mxu0
      %v1225 = vadd.f32 0.0, %v1224
      %v1226 = vpop.f32.mrf.mxu0
      %v1227 = vadd.f32 0.0, %v1226
      %1228 = vmatmul.bf16.gmra.mxu0 %v991
      %v1229 = vpop.f32.mrf.mxu0
      %v1230 = vadd.f32 0.0, %v1229
      %v1231 = vpop.f32.mrf.mxu0
      %v1232 = vadd.f32 0.0, %v1231
      %1233 = vmatmul.bf16.gmra.mxu0 %v994
      %v1234 = vpop.f32.mrf.mxu0
      %v1235 = vadd.f32 0.0, %v1234
      %v1236 = vpop.f32.mrf.mxu0
      %v1237 = vadd.f32 0.0, %v1236
      %1238 = vmatmul.bf16.gmra.mxu0 %v997
      %v1239 = vpop.f32.mrf.mxu0
      %v1240 = vadd.f32 0.0, %v1239
      %v1241 = vpop.f32.mrf.mxu0
      %v1242 = vadd.f32 0.0, %v1241
      %1243 = vmatmul.bf16.gmra.mxu0 %v1000
      %v1244 = vpop.f32.mrf.mxu0
      %v1245 = vadd.f32 0.0, %v1244
      %v1246 = vpop.f32.mrf.mxu0
      %v1247 = vadd.f32 0.0, %v1246
      %1248 = vmatmul.bf16.gmra.mxu0 %v1003
      %v1249 = vpop.f32.mrf.mxu0
      %v1250 = vadd.f32 0.0, %v1249
      %v1251 = vpop.f32.mrf.mxu0
      %v1252 = vadd.f32 0.0, %v1251
      %1253 = vmatmul.bf16.gmra.mxu0 %v1006
      %v1254 = vpop.f32.mrf.mxu0
      %v1255 = vadd.f32 0.0, %v1254
      %v1256 = vpop.f32.mrf.mxu0
      %v1257 = vadd.f32 0.0, %v1256
      %1258 = vmatmul.bf16.gmra.mxu0 %v1009
      %v1259 = vpop.f32.mrf.mxu0
      %v1260 = vadd.f32 0.0, %v1259
      %v1261 = vpop.f32.mrf.mxu0
      %v1262 = vadd.f32 0.0, %v1261
      %1263 = vmatmul.bf16.gmra.mxu0 %v1012
      %v1264 = vpop.f32.mrf.mxu0
      %v1265 = vadd.f32 0.0, %v1264
      %v1266 = vpop.f32.mrf.mxu0
      %v1267 = vadd.f32 0.0, %v1266
      %1268 = vmatmul.bf16.gmra.mxu0 %v1015
      %v1269 = vpop.f32.mrf.mxu0
      %v1270 = vadd.f32 0.0, %v1269
      %v1271 = vpop.f32.mrf.mxu0
      %v1272 = vadd.f32 0.0, %v1271
      %1273 = vmatmul.bf16.gmra.mxu0 %v1018
      %v1274 = vpop.f32.mrf.mxu0
      %v1275 = vadd.f32 0.0, %v1274
      %v1276 = vpop.f32.mrf.mxu0
      %v1277 = vadd.f32 0.0, %v1276
      %1278 = vmatmul.bf16.gmra.mxu0 %v1021
      %v1279 = vpop.f32.mrf.mxu0
      %v1280 = vadd.f32 0.0, %v1279
      %v1281 = vpop.f32.mrf.mxu0
      %v1282 = vadd.f32 0.0, %v1281
      %1283 = vmatmul.bf16.gmra.mxu0 %v1024
      %v1284 = vpop.f32.mrf.mxu0
      %v1285 = vadd.f32 0.0, %v1284
      %v1286 = vpop.f32.mrf.mxu0
      %v1287 = vadd.f32 0.0, %v1286
      %1288 = vmatmul.bf16.gmra.mxu0 %v1027
      %v1289 = vpop.f32.mrf.mxu0
      %v1290 = vadd.f32 0.0, %v1289
      %v1291 = vpop.f32.mrf.mxu0
      %v1292 = vadd.f32 0.0, %v1291
      %1293 = vmatmul.bf16.gmra.mxu0 %v1030
      %v1294 = vpop.f32.mrf.mxu0
      %v1295 = vadd.f32 0.0, %v1294
      %v1296 = vpop.f32.mrf.mxu0
      %v1297 = vadd.f32 0.0, %v1296
      %1298 = vmatmul.bf16.gmra.mxu0 %v1033
      %v1299 = vpop.f32.mrf.mxu0
      %v1300 = vadd.f32 0.0, %v1299
      %v1301 = vpop.f32.mrf.mxu0
      %v1302 = vadd.f32 0.0, %v1301
      %1303 = vmatmul.bf16.gmra.mxu0 %v1036
      %v1304 = vpop.f32.mrf.mxu0
      %v1305 = vadd.f32 0.0, %v1304
      %v1306 = vpop.f32.mrf.mxu0
      %v1307 = vadd.f32 0.0, %v1306
      %1308 = vmatmul.bf16.gmra.mxu0 %v1039
      %v1309 = vpop.f32.mrf.mxu0
      %v1310 = vadd.f32 0.0, %v1309
      %v1311 = vpop.f32.mrf.mxu0
      %v1312 = vadd.f32 0.0, %v1311
      %1313 = vmatmul.bf16.gmra.mxu0 %v1042
      %v1314 = vpop.f32.mrf.mxu0
      %v1315 = vadd.f32 0.0, %v1314
      %v1316 = vpop.f32.mrf.mxu0
      %v1317 = vadd.f32 0.0, %v1316
      %1318 = vmatmul.bf16.gmra.mxu0 %v1045
      %v1319 = vpop.f32.mrf.mxu0
      %v1320 = vadd.f32 0.0, %v1319
      %v1321 = vpop.f32.mrf.mxu0
      %v1322 = vadd.f32 0.0, %v1321
      %1323 = vmatmul.bf16.gmra.mxu0 %v1048
      %v1324 = vpop.f32.mrf.mxu0
      %v1325 = vadd.f32 0.0, %v1324
      %v1326 = vpop.f32.mrf.mxu0
      %v1327 = vadd.f32 0.0, %v1326
      %1328 = vmatmul.bf16.gmra.mxu0 %v1051
      %v1329 = vpop.f32.mrf.mxu0
      %v1330 = vadd.f32 0.0, %v1329
      %v1331 = vpop.f32.mrf.mxu0
      %v1332 = vadd.f32 0.0, %v1331
      %1333 = vmatmul.bf16.gmra.mxu0 %v1054
      %v1334 = vpop.f32.mrf.mxu0
      %v1335 = vadd.f32 0.0, %v1334
      %v1336 = vpop.f32.mrf.mxu0
      %v1337 = vadd.f32 0.0, %v1336
      %1338 = vmatmul.bf16.gmra.mxu0 %v1057
      %v1339 = vpop.f32.mrf.mxu0
      %v1340 = vadd.f32 0.0, %v1339
      %v1341 = vpop.f32.mrf.mxu0
      %v1342 = vadd.f32 0.0, %v1341
      %1343 = vmatmul.bf16.gmra.mxu0 %v1060
      %v1344 = vpop.f32.mrf.mxu0
      %v1345 = vadd.f32 0.0, %v1344
      %v1346 = vpop.f32.mrf.mxu0
      %v1347 = vadd.f32 0.0, %v1346
      %1348 = vmatmul.bf16.gmra.mxu0 %v1063
      %v1349 = vpop.f32.mrf.mxu0
      %v1350 = vadd.f32 0.0, %v1349
      %v1351 = vpop.f32.mrf.mxu0
      %v1352 = vadd.f32 0.0, %v1351
      %1353 = vmatmul.bf16.gmra.mxu0 %v1066
      %v1354 = vpop.f32.mrf.mxu0
      %v1355 = vadd.f32 0.0, %v1354
      %v1356 = vpop.f32.mrf.mxu0
      %v1357 = vadd.f32 0.0, %v1356
      %1358 = vmatmul.bf16.gmra.mxu0 %v1069
      %v1359 = vpop.f32.mrf.mxu0
      %v1360 = vadd.f32 0.0, %v1359
      %v1361 = vpop.f32.mrf.mxu0
      %v1362 = vadd.f32 0.0, %v1361
      %1363 = vmatmul.bf16.gmra.mxu0 %v1072
      %v1364 = vpop.f32.mrf.mxu0
      %v1365 = vadd.f32 0.0, %v1364
      %v1366 = vpop.f32.mrf.mxu0
      %v1367 = vadd.f32 0.0, %v1366
      %1368 = vmatmul.bf16.gmra.mxu0 %v1075
      %v1369 = vpop.f32.mrf.mxu0
      %v1370 = vadd.f32 0.0, %v1369
      %v1371 = vpop.f32.mrf.mxu0
      %v1372 = vadd.f32 0.0, %v1371
      %1373 = vmatmul.bf16.gmra.mxu0 %v1078
      %v1374 = vpop.f32.mrf.mxu0
      %v1375 = vadd.f32 0.0, %v1374
      %v1376 = vpop.f32.mrf.mxu0
      %v1377 = vadd.f32 0.0, %v1376
      %1378 = vmatmul.bf16.gmra.mxu0 %v1081
      %v1379 = vpop.f32.mrf.mxu0
      %v1380 = vadd.f32 0.0, %v1379
      %v1381 = vpop.f32.mrf.mxu0
      %v1382 = vadd.f32 0.0, %v1381
      %1383 = vmatmul.bf16.gmra.mxu0 %v1084
      %v1384 = vpop.f32.mrf.mxu0
      %v1385 = vadd.f32 0.0, %v1384
      %v1386 = vpop.f32.mrf.mxu0
      %v1387 = vadd.f32 0.0, %v1386
      %1388 = vmatmul.bf16.gmra.mxu0 %v1087
      %v1389 = vpop.f32.mrf.mxu0
      %v1390 = vadd.f32 0.0, %v1389
      %v1391 = vpop.f32.mrf.mxu0
      %v1392 = vadd.f32 0.0, %v1391
      %1393 = vmatmul.bf16.gmra.mxu0 %v1090
      %v1394 = vpop.f32.mrf.mxu0
      %v1395 = vadd.f32 0.0, %v1394
      %v1396 = vpop.f32.mrf.mxu0
      %v1397 = vadd.f32 0.0, %v1396
      %1398 = vmatmul.bf16.gmra.mxu0 %v1093
      %v1399 = vpop.f32.mrf.mxu0
      %v1400 = vadd.f32 0.0, %v1399
      %v1401 = vpop.f32.mrf.mxu0
      %v1402 = vadd.f32 0.0, %v1401
      %1403 = vmatmul.bf16.gmra.mxu0 %v1096
      %v1404 = vpop.f32.mrf.mxu0
      %v1405 = vadd.f32 0.0, %v1404
      %v1406 = vpop.f32.mrf.mxu0
      %v1407 = vadd.f32 0.0, %v1406
      %1408 = vmatmul.bf16.gmra.mxu0 %v1099
      %v1409 = vpop.f32.mrf.mxu0
      %v1410 = vadd.f32 0.0, %v1409
      %v1411 = vpop.f32.mrf.mxu0
      %v1412 = vadd.f32 0.0, %v1411
      %1413 = vmatmul.bf16.gmra.mxu0 %v1102
      %v1414 = vpop.f32.mrf.mxu0
      %v1415 = vadd.f32 0.0, %v1414
      %v1416 = vpop.f32.mrf.mxu0
      %v1417 = vadd.f32 0.0, %v1416
      %1418 = vmatmul.bf16.gmra.mxu0 %v1105
      %v1419 = vpop.f32.mrf.mxu0
      %v1420 = vadd.f32 0.0, %v1419
      %v1421 = vpop.f32.mrf.mxu0
      %v1422 = vadd.f32 0.0, %v1421
      %1423 = vmatmul.bf16.gmra.mxu0 %v1108
      %v1424 = vpop.f32.mrf.mxu0
      %v1425 = vadd.f32 0.0, %v1424
      %v1426 = vpop.f32.mrf.mxu0
      %v1427 = vadd.f32 0.0, %v1426
      %1428 = vmatmul.bf16.gmra.mxu0 %v1111
      %v1429 = vpop.f32.mrf.mxu0
      %v1430 = vadd.f32 0.0, %v1429
      %v1431 = vpop.f32.mrf.mxu0
      %v1432 = vadd.f32 0.0, %v1431
      %1433 = vmatmul.bf16.gmra.mxu0 %v1114
      %v1434 = vpop.f32.mrf.mxu0
      %v1435 = vadd.f32 0.0, %v1434
      %v1436 = vpop.f32.mrf.mxu0
      %v1437 = vadd.f32 0.0, %v1436
      %1438 = vmatmul.bf16.gmra.mxu0 %v1117
      %v1439 = vpop.f32.mrf.mxu0
      %v1440 = vadd.f32 0.0, %v1439
      %v1441 = vpop.f32.mrf.mxu0
      %v1442 = vadd.f32 0.0, %v1441
      %1443 = vmatmul.bf16.gmra.mxu0 %v1120
      %v1444 = vpop.f32.mrf.mxu0
      %v1445 = vadd.f32 0.0, %v1444
      %v1446 = vpop.f32.mrf.mxu0
      %v1447 = vadd.f32 0.0, %v1446
      %1448 = vmatmul.bf16.gmra.mxu0 %v1123
      %v1449 = vpop.f32.mrf.mxu0
      %v1450 = vadd.f32 0.0, %v1449
      %v1451 = vpop.f32.mrf.mxu0
      %v1452 = vadd.f32 0.0, %v1451
      %1453 = vdwg.mxu0
      %v1582 = vunpack.c.l.b16 %v332
      %v1583 = vunpack.c.l.b16 %v333
      %v1584 = vunpack.c.l.b16 %v334
      %v1585 = vunpack.c.l.b16 %v335
      %v1586 = vunpack.c.l.b16 %v336
      %v1587 = vunpack.c.l.b16 %v337
      %v1588 = vunpack.c.l.b16 %v338
      %v1589 = vunpack.c.l.b16 %v339
      %v1590 = vunpack.c.l.b16 %v340
      %v1591 = vunpack.c.l.b16 %v341
      %v1592 = vunpack.c.l.b16 %v342
      %v1593 = vunpack.c.l.b16 %v343
      %v1594 = vunpack.c.l.b16 %v344
      %v1595 = vunpack.c.l.b16 %v345
      %v1596 = vunpack.c.l.b16 %v346
      %v1597 = vunpack.c.l.b16 %v347
      %v1598 = vunpack.c.l.b16 %v348
      %v1599 = vunpack.c.l.b16 %v349
      %v1600 = vunpack.c.l.b16 %v350
      %v1601 = vunpack.c.l.b16 %v351
      %v1602 = vunpack.c.l.b16 %v352
      %v1603 = vunpack.c.l.b16 %v353
      %v1604 = vunpack.c.l.b16 %v354
      %v1605 = vunpack.c.l.b16 %v355
      %v1606 = vunpack.c.l.b16 %v356
      %v1607 = vunpack.c.l.b16 %v357
      %v1608 = vunpack.c.l.b16 %v358
      %v1609 = vunpack.c.l.b16 %v359
      %v1610 = vunpack.c.l.b16 %v360
      %v1611 = vunpack.c.l.b16 %v361
      %v1612 = vunpack.c.l.b16 %v362
      %v1613 = vunpack.c.l.b16 %v363
      %v1614 = vunpack.c.l.b16 %v364
      %v1615 = vunpack.c.l.b16 %v365
      %v1616 = vunpack.c.l.b16 %v366
      %v1617 = vunpack.c.l.b16 %v367
      %v1618 = vunpack.c.l.b16 %v368
      %v1619 = vunpack.c.l.b16 %v369
      %v1620 = vunpack.c.l.b16 %v370
      %v1621 = vunpack.c.l.b16 %v371
      %v1622 = vunpack.c.l.b16 %v372
      %v1623 = vunpack.c.l.b16 %v373
      %v1624 = vunpack.c.l.b16 %v374
      %v1625 = vunpack.c.l.b16 %v375
      %v1626 = vunpack.c.l.b16 %v376
      %v1627 = vunpack.c.l.b16 %v377
      %v1628 = vunpack.c.l.b16 %v378
      %v1629 = vunpack.c.l.b16 %v379
      %v1630 = vunpack.c.l.b16 %v380
      %v1631 = vunpack.c.l.b16 %v381
      %v1632 = vunpack.c.l.b16 %v382
      %v1633 = vunpack.c.l.b16 %v383
      %v1634 = vunpack.c.l.b16 %v384
      %v1635 = vunpack.c.l.b16 %v385
      %v1636 = vunpack.c.l.b16 %v386
      %v1637 = vunpack.c.l.b16 %v387
      %v1638 = vunpack.c.l.b16 %v388
      %v1639 = vunpack.c.l.b16 %v389
      %v1640 = vunpack.c.l.b16 %v390
      %v1641 = vunpack.c.l.b16 %v391
      %v1642 = vunpack.c.l.b16 %v392
      %v1643 = vunpack.c.l.b16 %v393
      %v1644 = vunpack.c.l.b16 %v394
      %v1645 = vunpack.c.l.b16 %v395
      %v1646 = vunpack.c.l.b16 %v396
      %v1647 = vunpack.c.l.b16 %v397
      %v1648 = vunpack.c.l.b16 %v398
      %v1649 = vunpack.c.l.b16 %v399
      %v1650 = vunpack.c.l.b16 %v400
      %v1651 = vunpack.c.l.b16 %v401
      %v1652 = vunpack.c.l.b16 %v402
      %v1653 = vunpack.c.l.b16 %v403
      %v1654 = vunpack.c.l.b16 %v404
      %v1655 = vunpack.c.l.b16 %v405
      %v1656 = vunpack.c.l.b16 %v406
      %v1657 = vunpack.c.l.b16 %v407
      %v1658 = vunpack.c.l.b16 %v408
      %v1659 = vunpack.c.l.b16 %v409
      %v1660 = vunpack.c.l.b16 %v410
      %v1661 = vunpack.c.l.b16 %v411
      %v1662 = vunpack.c.l.b16 %v412
      %v1663 = vunpack.c.l.b16 %v413
      %v1664 = vunpack.c.l.b16 %v414
      %v1665 = vunpack.c.l.b16 %v415
      %v1666 = vunpack.c.l.b16 %v416
      %v1667 = vunpack.c.l.b16 %v417
      %v1668 = vunpack.c.l.b16 %v418
      %v1669 = vunpack.c.l.b16 %v419
      %v1670 = vunpack.c.l.b16 %v420
      %v1671 = vunpack.c.l.b16 %v421
      %v1672 = vunpack.c.l.b16 %v422
      %v1673 = vunpack.c.l.b16 %v423
      %v1674 = vunpack.c.l.b16 %v424
      %v1675 = vunpack.c.l.b16 %v425
      %v1676 = vunpack.c.l.b16 %v426
      %v1677 = vunpack.c.l.b16 %v427
      %v1678 = vunpack.c.l.b16 %v428
      %v1679 = vunpack.c.l.b16 %v429
      %v1680 = vunpack.c.l.b16 %v430
      %v1681 = vunpack.c.l.b16 %v431
      %v1682 = vunpack.c.l.b16 %v432
      %v1683 = vunpack.c.l.b16 %v433
      %v1684 = vunpack.c.l.b16 %v434
      %v1685 = vunpack.c.l.b16 %v435
      %v1686 = vunpack.c.l.b16 %v436
      %v1687 = vunpack.c.l.b16 %v437
      %v1688 = vunpack.c.l.b16 %v438
      %v1689 = vunpack.c.l.b16 %v439
      %v1690 = vunpack.c.l.b16 %v440
      %v1691 = vunpack.c.l.b16 %v441
      %v1692 = vunpack.c.l.b16 %v442
      %v1693 = vunpack.c.l.b16 %v443
      %v1694 = vunpack.c.l.b16 %v444
      %v1695 = vunpack.c.l.b16 %v445
      %v1696 = vunpack.c.l.b16 %v446
      %v1697 = vunpack.c.l.b16 %v447
      %v1698 = vunpack.c.l.b16 %v448
      %v1699 = vunpack.c.l.b16 %v449
      %v1700 = vunpack.c.l.b16 %v450
      %v1701 = vunpack.c.l.b16 %v451
      %v1702 = vunpack.c.l.b16 %v452
      %v1703 = vunpack.c.l.b16 %v453
      %v1704 = vunpack.c.l.b16 %v454
      %v1705 = vunpack.c.l.b16 %v455
      %v1706 = vunpack.c.l.b16 %v456
      %v1707 = vunpack.c.l.b16 %v457
      %v1708 = vunpack.c.l.b16 %v458
      %v1709 = vunpack.c.l.b16 %v459
      %v1710 = vpack.c.b16 %v1583, %v1582
      %v1711 = vpack.c.b16 %v1585, %v1584
      %v1712 = vpack.c.b16 %v1587, %v1586
      %v1713 = vpack.c.b16 %v1589, %v1588
      %v1714 = vpack.c.b16 %v1591, %v1590
      %v1715 = vpack.c.b16 %v1593, %v1592
      %v1716 = vpack.c.b16 %v1595, %v1594
      %v1717 = vpack.c.b16 %v1597, %v1596
      %v1718 = vpack.c.b16 %v1599, %v1598
      %v1719 = vpack.c.b16 %v1601, %v1600
      %v1720 = vpack.c.b16 %v1603, %v1602
      %v1721 = vpack.c.b16 %v1605, %v1604
      %v1722 = vpack.c.b16 %v1607, %v1606
      %v1723 = vpack.c.b16 %v1609, %v1608
      %v1724 = vpack.c.b16 %v1611, %v1610
      %v1725 = vpack.c.b16 %v1613, %v1612
      %v1726 = vpack.c.b16 %v1615, %v1614
      %v1727 = vpack.c.b16 %v1617, %v1616
      %v1728 = vpack.c.b16 %v1619, %v1618
      %v1729 = vpack.c.b16 %v1621, %v1620
      %v1730 = vpack.c.b16 %v1623, %v1622
      %v1731 = vpack.c.b16 %v1625, %v1624
      %v1732 = vpack.c.b16 %v1627, %v1626
      %v1733 = vpack.c.b16 %v1629, %v1628
      %v1734 = vpack.c.b16 %v1631, %v1630
      %v1735 = vpack.c.b16 %v1633, %v1632
      %v1736 = vpack.c.b16 %v1635, %v1634
      %v1737 = vpack.c.b16 %v1637, %v1636
      %v1738 = vpack.c.b16 %v1639, %v1638
      %v1739 = vpack.c.b16 %v1641, %v1640
      %v1740 = vpack.c.b16 %v1643, %v1642
      %v1741 = vpack.c.b16 %v1645, %v1644
      %v1742 = vpack.c.b16 %v1647, %v1646
      %v1743 = vpack.c.b16 %v1649, %v1648
      %v1744 = vpack.c.b16 %v1651, %v1650
      %v1745 = vpack.c.b16 %v1653, %v1652
      %v1746 = vpack.c.b16 %v1655, %v1654
      %v1747 = vpack.c.b16 %v1657, %v1656
      %v1748 = vpack.c.b16 %v1659, %v1658
      %v1749 = vpack.c.b16 %v1661, %v1660
      %v1750 = vpack.c.b16 %v1663, %v1662
      %v1751 = vpack.c.b16 %v1665, %v1664
      %v1752 = vpack.c.b16 %v1667, %v1666
      %v1753 = vpack.c.b16 %v1669, %v1668
      %v1754 = vpack.c.b16 %v1671, %v1670
      %v1755 = vpack.c.b16 %v1673, %v1672
      %v1756 = vpack.c.b16 %v1675, %v1674
      %v1757 = vpack.c.b16 %v1677, %v1676
      %v1758 = vpack.c.b16 %v1679, %v1678
      %v1759 = vpack.c.b16 %v1681, %v1680
      %v1760 = vpack.c.b16 %v1683, %v1682
      %v1761 = vpack.c.b16 %v1685, %v1684
      %v1762 = vpack.c.b16 %v1687, %v1686
      %v1763 = vpack.c.b16 %v1689, %v1688
      %v1764 = vpack.c.b16 %v1691, %v1690
      %v1765 = vpack.c.b16 %v1693, %v1692
      %v1766 = vpack.c.b16 %v1695, %v1694
      %v1767 = vpack.c.b16 %v1697, %v1696
      %v1768 = vpack.c.b16 %v1699, %v1698
      %v1769 = vpack.c.b16 %v1701, %v1700
      %v1770 = vpack.c.b16 %v1703, %v1702
      %v1771 = vpack.c.b16 %v1705, %v1704
      %v1772 = vpack.c.b16 %v1707, %v1706
      %v1773 = vpack.c.b16 %v1709, %v1708
      %v1854 = vunpack.c.l.b16 %v460
      %v1855 = vunpack.c.l.b16 %v461
      %v1856 = vunpack.c.l.b16 %v462
      %v1857 = vunpack.c.l.b16 %v463
      %v1858 = vunpack.c.l.b16 %v464
      %v1859 = vunpack.c.l.b16 %v465
      %v1860 = vunpack.c.l.b16 %v466
      %v1861 = vunpack.c.l.b16 %v467
      %v1862 = vunpack.c.l.b16 %v468
      %v1863 = vunpack.c.l.b16 %v469
      %v1864 = vunpack.c.l.b16 %v470
      %v1865 = vunpack.c.l.b16 %v471
      %v1866 = vunpack.c.l.b16 %v472
      %v1867 = vunpack.c.l.b16 %v473
      %v1868 = vunpack.c.l.b16 %v474
      %v1869 = vunpack.c.l.b16 %v475
      %v1870 = vpack.c.b16 %v1855, %v1854
      %v1871 = vpack.c.b16 %v1857, %v1856
      %v1872 = vpack.c.b16 %v1859, %v1858
      %v1873 = vpack.c.b16 %v1861, %v1860
      %v1874 = vpack.c.b16 %v1863, %v1862
      %v1875 = vpack.c.b16 %v1865, %v1864
      %v1876 = vpack.c.b16 %v1867, %v1866
      %v1877 = vpack.c.b16 %v1869, %v1868
      %1886 = vmatpush.bf16.msra.mxu0 %v1877
      %1887 = vmatpush.bf16.msra.mxu0 %v1876
      %1888 = vmatpush.bf16.msra.mxu0 %v1875
      %1889 = vmatpush.bf16.msra.mxu0 %v1874
      %1890 = vmatpush.bf16.msra.mxu0 %v1873
      %1891 = vmatpush.bf16.msra.mxu0 %v1872
      %1892 = vmatpush.bf16.msra.mxu0 %v1871
      %1893 = vmatpush.bf16.msra.mxu0 %v1870
      %1894 = vmatmul.bf16.gmra.mxu0 %v1710
      %v1895 = vpop.f32.mrf.mxu0
      %v1896 = vadd.f32 %v1135, %v1895
      %v1897 = vpop.f32.mrf.mxu0
      %v1898 = vadd.f32 %v1137, %v1897
      %1899 = vmatmul.bf16.gmra.mxu0 %v1711
      %v1900 = vpop.f32.mrf.mxu0
      %v1901 = vadd.f32 %v1140, %v1900
      %v1902 = vpop.f32.mrf.mxu0
      %v1903 = vadd.f32 %v1142, %v1902
      %1904 = vmatmul.bf16.gmra.mxu0 %v1712
      %v1905 = vpop.f32.mrf.mxu0
      %v1906 = vadd.f32 %v1145, %v1905
      %v1907 = vpop.f32.mrf.mxu0
      %v1908 = vadd.f32 %v1147, %v1907
      %1909 = vmatmul.bf16.gmra.mxu0 %v1713
      %v1910 = vpop.f32.mrf.mxu0
      %v1911 = vadd.f32 %v1150, %v1910
      %v1912 = vpop.f32.mrf.mxu0
      %v1913 = vadd.f32 %v1152, %v1912
      %1914 = vmatmul.bf16.gmra.mxu0 %v1714
      %v1915 = vpop.f32.mrf.mxu0
      %v1916 = vadd.f32 %v1155, %v1915
      %v1917 = vpop.f32.mrf.mxu0
      %v1918 = vadd.f32 %v1157, %v1917
      %1919 = vmatmul.bf16.gmra.mxu0 %v1715
      %v1920 = vpop.f32.mrf.mxu0
      %v1921 = vadd.f32 %v1160, %v1920
      %v1922 = vpop.f32.mrf.mxu0
      %v1923 = vadd.f32 %v1162, %v1922
      %1924 = vmatmul.bf16.gmra.mxu0 %v1716
      %v1925 = vpop.f32.mrf.mxu0
      %v1926 = vadd.f32 %v1165, %v1925
      %v1927 = vpop.f32.mrf.mxu0
      %v1928 = vadd.f32 %v1167, %v1927
      %1929 = vmatmul.bf16.gmra.mxu0 %v1717
      %v1930 = vpop.f32.mrf.mxu0
      %v1931 = vadd.f32 %v1170, %v1930
      %v1932 = vpop.f32.mrf.mxu0
      %v1933 = vadd.f32 %v1172, %v1932
      %1934 = vmatmul.bf16.gmra.mxu0 %v1718
      %v1935 = vpop.f32.mrf.mxu0
      %v1936 = vadd.f32 %v1175, %v1935
      %v1937 = vpop.f32.mrf.mxu0
      %v1938 = vadd.f32 %v1177, %v1937
      %1939 = vmatmul.bf16.gmra.mxu0 %v1719
      %v1940 = vpop.f32.mrf.mxu0
      %v1941 = vadd.f32 %v1180, %v1940
      %v1942 = vpop.f32.mrf.mxu0
      %v1943 = vadd.f32 %v1182, %v1942
      %1944 = vmatmul.bf16.gmra.mxu0 %v1720
      %v1945 = vpop.f32.mrf.mxu0
      %v1946 = vadd.f32 %v1185, %v1945
      %v1947 = vpop.f32.mrf.mxu0
      %v1948 = vadd.f32 %v1187, %v1947
      %1949 = vmatmul.bf16.gmra.mxu0 %v1721
      %v1950 = vpop.f32.mrf.mxu0
      %v1951 = vadd.f32 %v1190, %v1950
      %v1952 = vpop.f32.mrf.mxu0
      %v1953 = vadd.f32 %v1192, %v1952
      %1954 = vmatmul.bf16.gmra.mxu0 %v1722
      %v1955 = vpop.f32.mrf.mxu0
      %v1956 = vadd.f32 %v1195, %v1955
      %v1957 = vpop.f32.mrf.mxu0
      %v1958 = vadd.f32 %v1197, %v1957
      %1959 = vmatmul.bf16.gmra.mxu0 %v1723
      %v1960 = vpop.f32.mrf.mxu0
      %v1961 = vadd.f32 %v1200, %v1960
      %v1962 = vpop.f32.mrf.mxu0
      %v1963 = vadd.f32 %v1202, %v1962
      %1964 = vmatmul.bf16.gmra.mxu0 %v1724
      %v1965 = vpop.f32.mrf.mxu0
      %v1966 = vadd.f32 %v1205, %v1965
      %v1967 = vpop.f32.mrf.mxu0
      %v1968 = vadd.f32 %v1207, %v1967
      %1969 = vmatmul.bf16.gmra.mxu0 %v1725
      %v1970 = vpop.f32.mrf.mxu0
      %v1971 = vadd.f32 %v1210, %v1970
      %v1972 = vpop.f32.mrf.mxu0
      %v1973 = vadd.f32 %v1212, %v1972
      %1974 = vmatmul.bf16.gmra.mxu0 %v1726
      %v1975 = vpop.f32.mrf.mxu0
      %v1976 = vadd.f32 %v1215, %v1975
      %v1977 = vpop.f32.mrf.mxu0
      %v1978 = vadd.f32 %v1217, %v1977
      %1979 = vmatmul.bf16.gmra.mxu0 %v1727
      %v1980 = vpop.f32.mrf.mxu0
      %v1981 = vadd.f32 %v1220, %v1980
      %v1982 = vpop.f32.mrf.mxu0
      %v1983 = vadd.f32 %v1222, %v1982
      %1984 = vmatmul.bf16.gmra.mxu0 %v1728
      %v1985 = vpop.f32.mrf.mxu0
      %v1986 = vadd.f32 %v1225, %v1985
      %v1987 = vpop.f32.mrf.mxu0
      %v1988 = vadd.f32 %v1227, %v1987
      %1989 = vmatmul.bf16.gmra.mxu0 %v1729
      %v1990 = vpop.f32.mrf.mxu0
      %v1991 = vadd.f32 %v1230, %v1990
      %v1992 = vpop.f32.mrf.mxu0
      %v1993 = vadd.f32 %v1232, %v1992
      %1994 = vmatmul.bf16.gmra.mxu0 %v1730
      %v1995 = vpop.f32.mrf.mxu0
      %v1996 = vadd.f32 %v1235, %v1995
      %v1997 = vpop.f32.mrf.mxu0
      %v1998 = vadd.f32 %v1237, %v1997
      %1999 = vmatmul.bf16.gmra.mxu0 %v1731
      %v2000 = vpop.f32.mrf.mxu0
      %v2001 = vadd.f32 %v1240, %v2000
      %v2002 = vpop.f32.mrf.mxu0
      %v2003 = vadd.f32 %v1242, %v2002
      %2004 = vmatmul.bf16.gmra.mxu0 %v1732
      %v2005 = vpop.f32.mrf.mxu0
      %v2006 = vadd.f32 %v1245, %v2005
      %v2007 = vpop.f32.mrf.mxu0
      %v2008 = vadd.f32 %v1247, %v2007
      %2009 = vmatmul.bf16.gmra.mxu0 %v1733
      %v2010 = vpop.f32.mrf.mxu0
      %v2011 = vadd.f32 %v1250, %v2010
      %v2012 = vpop.f32.mrf.mxu0
      %v2013 = vadd.f32 %v1252, %v2012
      %2014 = vmatmul.bf16.gmra.mxu0 %v1734
      %v2015 = vpop.f32.mrf.mxu0
      %v2016 = vadd.f32 %v1255, %v2015
      %v2017 = vpop.f32.mrf.mxu0
      %v2018 = vadd.f32 %v1257, %v2017
      %2019 = vmatmul.bf16.gmra.mxu0 %v1735
      %v2020 = vpop.f32.mrf.mxu0
      %v2021 = vadd.f32 %v1260, %v2020
      %v2022 = vpop.f32.mrf.mxu0
      %v2023 = vadd.f32 %v1262, %v2022
      %2024 = vmatmul.bf16.gmra.mxu0 %v1736
      %v2025 = vpop.f32.mrf.mxu0
      %v2026 = vadd.f32 %v1265, %v2025
      %v2027 = vpop.f32.mrf.mxu0
      %v2028 = vadd.f32 %v1267, %v2027
      %2029 = vmatmul.bf16.gmra.mxu0 %v1737
      %v2030 = vpop.f32.mrf.mxu0
      %v2031 = vadd.f32 %v1270, %v2030
      %v2032 = vpop.f32.mrf.mxu0
      %v2033 = vadd.f32 %v1272, %v2032
      %2034 = vmatmul.bf16.gmra.mxu0 %v1738
      %v2035 = vpop.f32.mrf.mxu0
      %v2036 = vadd.f32 %v1275, %v2035
      %v2037 = vpop.f32.mrf.mxu0
      %v2038 = vadd.f32 %v1277, %v2037
      %2039 = vmatmul.bf16.gmra.mxu0 %v1739
      %v2040 = vpop.f32.mrf.mxu0
      %v2041 = vadd.f32 %v1280, %v2040
      %v2042 = vpop.f32.mrf.mxu0
      %v2043 = vadd.f32 %v1282, %v2042
      %2044 = vmatmul.bf16.gmra.mxu0 %v1740
      %v2045 = vpop.f32.mrf.mxu0
      %v2046 = vadd.f32 %v1285, %v2045
      %v2047 = vpop.f32.mrf.mxu0
      %v2048 = vadd.f32 %v1287, %v2047
      %2049 = vmatmul.bf16.gmra.mxu0 %v1741
      %v2050 = vpop.f32.mrf.mxu0
      %v2051 = vadd.f32 %v1290, %v2050
      %v2052 = vpop.f32.mrf.mxu0
      %v2053 = vadd.f32 %v1292, %v2052
      %2054 = vmatmul.bf16.gmra.mxu0 %v1742
      %v2055 = vpop.f32.mrf.mxu0
      %v2056 = vadd.f32 %v1295, %v2055
      %v2057 = vpop.f32.mrf.mxu0
      %v2058 = vadd.f32 %v1297, %v2057
      %2059 = vmatmul.bf16.gmra.mxu0 %v1743
      %v2060 = vpop.f32.mrf.mxu0
      %v2061 = vadd.f32 %v1300, %v2060
      %v2062 = vpop.f32.mrf.mxu0
      %v2063 = vadd.f32 %v1302, %v2062
      %2064 = vmatmul.bf16.gmra.mxu0 %v1744
      %v2065 = vpop.f32.mrf.mxu0
      %v2066 = vadd.f32 %v1305, %v2065
      %v2067 = vpop.f32.mrf.mxu0
      %v2068 = vadd.f32 %v1307, %v2067
      %2069 = vmatmul.bf16.gmra.mxu0 %v1745
      %v2070 = vpop.f32.mrf.mxu0
      %v2071 = vadd.f32 %v1310, %v2070
      %v2072 = vpop.f32.mrf.mxu0
      %v2073 = vadd.f32 %v1312, %v2072
      %2074 = vmatmul.bf16.gmra.mxu0 %v1746
      %v2075 = vpop.f32.mrf.mxu0
      %v2076 = vadd.f32 %v1315, %v2075
      %v2077 = vpop.f32.mrf.mxu0
      %v2078 = vadd.f32 %v1317, %v2077
      %2079 = vmatmul.bf16.gmra.mxu0 %v1747
      %v2080 = vpop.f32.mrf.mxu0
      %v2081 = vadd.f32 %v1320, %v2080
      %v2082 = vpop.f32.mrf.mxu0
      %v2083 = vadd.f32 %v1322, %v2082
      %2084 = vmatmul.bf16.gmra.mxu0 %v1748
      %v2085 = vpop.f32.mrf.mxu0
      %v2086 = vadd.f32 %v1325, %v2085
      %v2087 = vpop.f32.mrf.mxu0
      %v2088 = vadd.f32 %v1327, %v2087
      %2089 = vmatmul.bf16.gmra.mxu0 %v1749
      %v2090 = vpop.f32.mrf.mxu0
      %v2091 = vadd.f32 %v1330, %v2090
      %v2092 = vpop.f32.mrf.mxu0
      %v2093 = vadd.f32 %v1332, %v2092
      %2094 = vmatmul.bf16.gmra.mxu0 %v1750
      %v2095 = vpop.f32.mrf.mxu0
      %v2096 = vadd.f32 %v1335, %v2095
      %v2097 = vpop.f32.mrf.mxu0
      %v2098 = vadd.f32 %v1337, %v2097
      %2099 = vmatmul.bf16.gmra.mxu0 %v1751
      %v2100 = vpop.f32.mrf.mxu0
      %v2101 = vadd.f32 %v1340, %v2100
      %v2102 = vpop.f32.mrf.mxu0
      %v2103 = vadd.f32 %v1342, %v2102
      %2104 = vmatmul.bf16.gmra.mxu0 %v1752
      %v2105 = vpop.f32.mrf.mxu0
      %v2106 = vadd.f32 %v1345, %v2105
      %v2107 = vpop.f32.mrf.mxu0
      %v2108 = vadd.f32 %v1347, %v2107
      %2109 = vmatmul.bf16.gmra.mxu0 %v1753
      %v2110 = vpop.f32.mrf.mxu0
      %v2111 = vadd.f32 %v1350, %v2110
      %v2112 = vpop.f32.mrf.mxu0
      %v2113 = vadd.f32 %v1352, %v2112
      %2114 = vmatmul.bf16.gmra.mxu0 %v1754
      %v2115 = vpop.f32.mrf.mxu0
      %v2116 = vadd.f32 %v1355, %v2115
      %v2117 = vpop.f32.mrf.mxu0
      %v2118 = vadd.f32 %v1357, %v2117
      %2119 = vmatmul.bf16.gmra.mxu0 %v1755
      %v2120 = vpop.f32.mrf.mxu0
      %v2121 = vadd.f32 %v1360, %v2120
      %v2122 = vpop.f32.mrf.mxu0
      %v2123 = vadd.f32 %v1362, %v2122
      %2124 = vmatmul.bf16.gmra.mxu0 %v1756
      %v2125 = vpop.f32.mrf.mxu0
      %v2126 = vadd.f32 %v1365, %v2125
      %v2127 = vpop.f32.mrf.mxu0
      %v2128 = vadd.f32 %v1367, %v2127
      %2129 = vmatmul.bf16.gmra.mxu0 %v1757
      %v2130 = vpop.f32.mrf.mxu0
      %v2131 = vadd.f32 %v1370, %v2130
      %v2132 = vpop.f32.mrf.mxu0
      %v2133 = vadd.f32 %v1372, %v2132
      %2134 = vmatmul.bf16.gmra.mxu0 %v1758
      %v2135 = vpop.f32.mrf.mxu0
      %v2136 = vadd.f32 %v1375, %v2135
      %v2137 = vpop.f32.mrf.mxu0
      %v2138 = vadd.f32 %v1377, %v2137
      %2139 = vmatmul.bf16.gmra.mxu0 %v1759
      %v2140 = vpop.f32.mrf.mxu0
      %v2141 = vadd.f32 %v1380, %v2140
      %v2142 = vpop.f32.mrf.mxu0
      %v2143 = vadd.f32 %v1382, %v2142
      %2144 = vmatmul.bf16.gmra.mxu0 %v1760
      %v2145 = vpop.f32.mrf.mxu0
      %v2146 = vadd.f32 %v1385, %v2145
      %v2147 = vpop.f32.mrf.mxu0
      %v2148 = vadd.f32 %v1387, %v2147
      %2149 = vmatmul.bf16.gmra.mxu0 %v1761
      %v2150 = vpop.f32.mrf.mxu0
      %v2151 = vadd.f32 %v1390, %v2150
      %v2152 = vpop.f32.mrf.mxu0
      %v2153 = vadd.f32 %v1392, %v2152
      %2154 = vmatmul.bf16.gmra.mxu0 %v1762
      %v2155 = vpop.f32.mrf.mxu0
      %v2156 = vadd.f32 %v1395, %v2155
      %v2157 = vpop.f32.mrf.mxu0
      %v2158 = vadd.f32 %v1397, %v2157
      %2159 = vmatmul.bf16.gmra.mxu0 %v1763
      %v2160 = vpop.f32.mrf.mxu0
      %v2161 = vadd.f32 %v1400, %v2160
      %v2162 = vpop.f32.mrf.mxu0
      %v2163 = vadd.f32 %v1402, %v2162
      %2164 = vmatmul.bf16.gmra.mxu0 %v1764
      %v2165 = vpop.f32.mrf.mxu0
      %v2166 = vadd.f32 %v1405, %v2165
      %v2167 = vpop.f32.mrf.mxu0
      %v2168 = vadd.f32 %v1407, %v2167
      %2169 = vmatmul.bf16.gmra.mxu0 %v1765
      %v2170 = vpop.f32.mrf.mxu0
      %v2171 = vadd.f32 %v1410, %v2170
      %v2172 = vpop.f32.mrf.mxu0
      %v2173 = vadd.f32 %v1412, %v2172
      %2174 = vmatmul.bf16.gmra.mxu0 %v1766
      %v2175 = vpop.f32.mrf.mxu0
      %v2176 = vadd.f32 %v1415, %v2175
      %v2177 = vpop.f32.mrf.mxu0
      %v2178 = vadd.f32 %v1417, %v2177
      %2179 = vmatmul.bf16.gmra.mxu0 %v1767
      %v2180 = vpop.f32.mrf.mxu0
      %v2181 = vadd.f32 %v1420, %v2180
      %v2182 = vpop.f32.mrf.mxu0
      %v2183 = vadd.f32 %v1422, %v2182
      %2184 = vmatmul.bf16.gmra.mxu0 %v1768
      %v2185 = vpop.f32.mrf.mxu0
      %v2186 = vadd.f32 %v1425, %v2185
      %v2187 = vpop.f32.mrf.mxu0
      %v2188 = vadd.f32 %v1427, %v2187
      %2189 = vmatmul.bf16.gmra.mxu0 %v1769
      %v2190 = vpop.f32.mrf.mxu0
      %v2191 = vadd.f32 %v1430, %v2190
      %v2192 = vpop.f32.mrf.mxu0
      %v2193 = vadd.f32 %v1432, %v2192
      %2194 = vmatmul.bf16.gmra.mxu0 %v1770
      %v2195 = vpop.f32.mrf.mxu0
      %v2196 = vadd.f32 %v1435, %v2195
      %v2197 = vpop.f32.mrf.mxu0
      %v2198 = vadd.f32 %v1437, %v2197
      %2199 = vmatmul.bf16.gmra.mxu0 %v1771
      %v2200 = vpop.f32.mrf.mxu0
      %v2201 = vadd.f32 %v1440, %v2200
      %v2202 = vpop.f32.mrf.mxu0
      %v2203 = vadd.f32 %v1442, %v2202
      %2204 = vmatmul.bf16.gmra.mxu0 %v1772
      %v2205 = vpop.f32.mrf.mxu0
      %v2206 = vadd.f32 %v1445, %v2205
      %v2207 = vpop.f32.mrf.mxu0
      %v2208 = vadd.f32 %v1447, %v2207
      %2209 = vmatmul.bf16.gmra.mxu0 %v1773
      %v2210 = vpop.f32.mrf.mxu0
      %v2211 = vadd.f32 %v1450, %v2210
      %v2212 = vpop.f32.mrf.mxu0
      %v2213 = vadd.f32 %v1452, %v2212
      %2214 = vdwg.mxu0
      %v2215 = vmul.f32 %v1896, 0.2
      %v2216 = vmul.f32 %v1898, 0.2
      %v2217 = vmul.f32 %v1901, 0.2
      %v2218 = vmul.f32 %v1903, 0.2
      %v2219 = vmul.f32 %v1906, 0.2
      %v2220 = vmul.f32 %v1908, 0.2
      %v2221 = vmul.f32 %v1911, 0.2
      %v2222 = vmul.f32 %v1913, 0.2
      %v2223 = vmul.f32 %v1916, 0.2
      %v2224 = vmul.f32 %v1918, 0.2
      %v2225 = vmul.f32 %v1921, 0.2
      %v2226 = vmul.f32 %v1923, 0.2
      %v2227 = vmul.f32 %v1926, 0.2
      %v2228 = vmul.f32 %v1928, 0.2
      %v2229 = vmul.f32 %v1931, 0.2
      %v2230 = vmul.f32 %v1933, 0.2
      %v2231 = vmul.f32 %v1936, 0.2
      %v2232 = vmul.f32 %v1938, 0.2
      %v2233 = vmul.f32 %v1941, 0.2
      %v2234 = vmul.f32 %v1943, 0.2
      %v2235 = vmul.f32 %v1946, 0.2
      %v2236 = vmul.f32 %v1948, 0.2
      %v2237 = vmul.f32 %v1951, 0.2
      %v2238 = vmul.f32 %v1953, 0.2
      %v2239 = vmul.f32 %v1956, 0.2
      %v2240 = vmul.f32 %v1958, 0.2
      %v2241 = vmul.f32 %v1961, 0.2
      %v2242 = vmul.f32 %v1963, 0.2
      %v2243 = vmul.f32 %v1966, 0.2
      %v2244 = vmul.f32 %v1968, 0.2
      %v2245 = vmul.f32 %v1971, 0.2
      %v2246 = vmul.f32 %v1973, 0.2
      %v2247 = vmul.f32 %v1976, 0.2
      %v2248 = vmul.f32 %v1978, 0.2
      %v2249 = vmul.f32 %v1981, 0.2
      %v2250 = vmul.f32 %v1983, 0.2
      %v2251 = vmul.f32 %v1986, 0.2
      %v2252 = vmul.f32 %v1988, 0.2
      %v2253 = vmul.f32 %v1991, 0.2
      %v2254 = vmul.f32 %v1993, 0.2
      %v2255 = vmul.f32 %v1996, 0.2
      %v2256 = vmul.f32 %v1998, 0.2
      %v2257 = vmul.f32 %v2001, 0.2
      %v2258 = vmul.f32 %v2003, 0.2
      %v2259 = vmul.f32 %v2006, 0.2
      %v2260 = vmul.f32 %v2008, 0.2
      %v2261 = vmul.f32 %v2011, 0.2
      %v2262 = vmul.f32 %v2013, 0.2
      %v2263 = vmul.f32 %v2016, 0.2
      %v2264 = vmul.f32 %v2018, 0.2
      %v2265 = vmul.f32 %v2021, 0.2
      %v2266 = vmul.f32 %v2023, 0.2
      %v2267 = vmul.f32 %v2026, 0.2
      %v2268 = vmul.f32 %v2028, 0.2
      %v2269 = vmul.f32 %v2031, 0.2
      %v2270 = vmul.f32 %v2033, 0.2
      %v2271 = vmul.f32 %v2036, 0.2
      %v2272 = vmul.f32 %v2038, 0.2
      %v2273 = vmul.f32 %v2041, 0.2
      %v2274 = vmul.f32 %v2043, 0.2
      %v2275 = vmul.f32 %v2046, 0.2
      %v2276 = vmul.f32 %v2048, 0.2
      %v2277 = vmul.f32 %v2051, 0.2
      %v2278 = vmul.f32 %v2053, 0.2
      %v2279 = vmul.f32 %v2056, 0.2
      %v2280 = vmul.f32 %v2058, 0.2
      %v2281 = vmul.f32 %v2061, 0.2
      %v2282 = vmul.f32 %v2063, 0.2
      %v2283 = vmul.f32 %v2066, 0.2
      %v2284 = vmul.f32 %v2068, 0.2
      %v2285 = vmul.f32 %v2071, 0.2
      %v2286 = vmul.f32 %v2073, 0.2
      %v2287 = vmul.f32 %v2076, 0.2
      %v2288 = vmul.f32 %v2078, 0.2
      %v2289 = vmul.f32 %v2081, 0.2
      %v2290 = vmul.f32 %v2083, 0.2
      %v2291 = vmul.f32 %v2086, 0.2
      %v2292 = vmul.f32 %v2088, 0.2
      %v2293 = vmul.f32 %v2091, 0.2
      %v2294 = vmul.f32 %v2093, 0.2
      %v2295 = vmul.f32 %v2096, 0.2
      %v2296 = vmul.f32 %v2098, 0.2
      %v2297 = vmul.f32 %v2101, 0.2
      %v2298 = vmul.f32 %v2103, 0.2
      %v2299 = vmul.f32 %v2106, 0.2
      %v2300 = vmul.f32 %v2108, 0.2
      %v2301 = vmul.f32 %v2111, 0.2
      %v2302 = vmul.f32 %v2113, 0.2
      %v2303 = vmul.f32 %v2116, 0.2
      %v2304 = vmul.f32 %v2118, 0.2
      %v2305 = vmul.f32 %v2121, 0.2
      %v2306 = vmul.f32 %v2123, 0.2
      %v2307 = vmul.f32 %v2126, 0.2
      %v2308 = vmul.f32 %v2128, 0.2
      %v2309 = vmul.f32 %v2131, 0.2
      %v2310 = vmul.f32 %v2133, 0.2
      %v2311 = vmul.f32 %v2136, 0.2
      %v2312 = vmul.f32 %v2138, 0.2
      %v2313 = vmul.f32 %v2141, 0.2
      %v2314 = vmul.f32 %v2143, 0.2
      %v2315 = vmul.f32 %v2146, 0.2
      %v2316 = vmul.f32 %v2148, 0.2
      %v2317 = vmul.f32 %v2151, 0.2
      %v2318 = vmul.f32 %v2153, 0.2
      %v2319 = vmul.f32 %v2156, 0.2
      %v2320 = vmul.f32 %v2158, 0.2
      %v2321 = vmul.f32 %v2161, 0.2
      %v2322 = vmul.f32 %v2163, 0.2
      %v2323 = vmul.f32 %v2166, 0.2
      %v2324 = vmul.f32 %v2168, 0.2
      %v2325 = vmul.f32 %v2171, 0.2
      %v2326 = vmul.f32 %v2173, 0.2
      %v2327 = vmul.f32 %v2176, 0.2
      %v2328 = vmul.f32 %v2178, 0.2
      %v2329 = vmul.f32 %v2181, 0.2
      %v2330 = vmul.f32 %v2183, 0.2
      %v2331 = vmul.f32 %v2186, 0.2
      %v2332 = vmul.f32 %v2188, 0.2
      %v2333 = vmul.f32 %v2191, 0.2
      %v2334 = vmul.f32 %v2193, 0.2
      %v2335 = vmul.f32 %v2196, 0.2
      %v2336 = vmul.f32 %v2198, 0.2
      %v2337 = vmul.f32 %v2201, 0.2
      %v2338 = vmul.f32 %v2203, 0.2
      %v2339 = vmul.f32 %v2206, 0.2
      %v2340 = vmul.f32 %v2208, 0.2
      %v2341 = vmul.f32 %v2211, 0.2
      %v2342 = vmul.f32 %v2213, 0.2
      %v2343 = vmax.f32 %v1896, %v2215
      %v2344 = vmax.f32 %v1898, %v2216
      %v2345 = vmax.f32 %v1901, %v2217
      %v2346 = vmax.f32 %v1903, %v2218
      %v2347 = vmax.f32 %v1906, %v2219
      %v2348 = vmax.f32 %v1908, %v2220
      %v2349 = vmax.f32 %v1911, %v2221
      %v2350 = vmax.f32 %v1913, %v2222
      %v2351 = vmax.f32 %v1916, %v2223
      %v2352 = vmax.f32 %v1918, %v2224
      %v2353 = vmax.f32 %v1921, %v2225
      %v2354 = vmax.f32 %v1923, %v2226
      %v2355 = vmax.f32 %v1926, %v2227
      %v2356 = vmax.f32 %v1928, %v2228
      %v2357 = vmax.f32 %v1931, %v2229
      %v2358 = vmax.f32 %v1933, %v2230
      %v2359 = vmax.f32 %v1936, %v2231
      %v2360 = vmax.f32 %v1938, %v2232
      %v2361 = vmax.f32 %v1941, %v2233
      %v2362 = vmax.f32 %v1943, %v2234
      %v2363 = vmax.f32 %v1946, %v2235
      %v2364 = vmax.f32 %v1948, %v2236
      %v2365 = vmax.f32 %v1951, %v2237
      %v2366 = vmax.f32 %v1953, %v2238
      %v2367 = vmax.f32 %v1956, %v2239
      %v2368 = vmax.f32 %v1958, %v2240
      %v2369 = vmax.f32 %v1961, %v2241
      %v2370 = vmax.f32 %v1963, %v2242
      %v2371 = vmax.f32 %v1966, %v2243
      %v2372 = vmax.f32 %v1968, %v2244
      %v2373 = vmax.f32 %v1971, %v2245
      %v2374 = vmax.f32 %v1973, %v2246
      %v2375 = vmax.f32 %v1976, %v2247
      %v2376 = vmax.f32 %v1978, %v2248
      %v2377 = vmax.f32 %v1981, %v2249
      %v2378 = vmax.f32 %v1983, %v2250
      %v2379 = vmax.f32 %v1986, %v2251
      %v2380 = vmax.f32 %v1988, %v2252
      %v2381 = vmax.f32 %v1991, %v2253
      %v2382 = vmax.f32 %v1993, %v2254
      %v2383 = vmax.f32 %v1996, %v2255
      %v2384 = vmax.f32 %v1998, %v2256
      %v2385 = vmax.f32 %v2001, %v2257
      %v2386 = vmax.f32 %v2003, %v2258
      %v2387 = vmax.f32 %v2006, %v2259
      %v2388 = vmax.f32 %v2008, %v2260
      %v2389 = vmax.f32 %v2011, %v2261
      %v2390 = vmax.f32 %v2013, %v2262
      %v2391 = vmax.f32 %v2016, %v2263
      %v2392 = vmax.f32 %v2018, %v2264
      %v2393 = vmax.f32 %v2021, %v2265
      %v2394 = vmax.f32 %v2023, %v2266
      %v2395 = vmax.f32 %v2026, %v2267
      %v2396 = vmax.f32 %v2028, %v2268
      %v2397 = vmax.f32 %v2031, %v2269
      %v2398 = vmax.f32 %v2033, %v2270
      %v2399 = vmax.f32 %v2036, %v2271
      %v2400 = vmax.f32 %v2038, %v2272
      %v2401 = vmax.f32 %v2041, %v2273
      %v2402 = vmax.f32 %v2043, %v2274
      %v2403 = vmax.f32 %v2046, %v2275
      %v2404 = vmax.f32 %v2048, %v2276
      %v2405 = vmax.f32 %v2051, %v2277
      %v2406 = vmax.f32 %v2053, %v2278
      %v2407 = vmax.f32 %v2056, %v2279
      %v2408 = vmax.f32 %v2058, %v2280
      %v2409 = vmax.f32 %v2061, %v2281
      %v2410 = vmax.f32 %v2063, %v2282
      %v2411 = vmax.f32 %v2066, %v2283
      %v2412 = vmax.f32 %v2068, %v2284
      %v2413 = vmax.f32 %v2071, %v2285
      %v2414 = vmax.f32 %v2073, %v2286
      %v2415 = vmax.f32 %v2076, %v2287
      %v2416 = vmax.f32 %v2078, %v2288
      %v2417 = vmax.f32 %v2081, %v2289
      %v2418 = vmax.f32 %v2083, %v2290
      %v2419 = vmax.f32 %v2086, %v2291
      %v2420 = vmax.f32 %v2088, %v2292
      %v2421 = vmax.f32 %v2091, %v2293
      %v2422 = vmax.f32 %v2093, %v2294
      %v2423 = vmax.f32 %v2096, %v2295
      %v2424 = vmax.f32 %v2098, %v2296
      %v2425 = vmax.f32 %v2101, %v2297
      %v2426 = vmax.f32 %v2103, %v2298
      %v2427 = vmax.f32 %v2106, %v2299
      %v2428 = vmax.f32 %v2108, %v2300
      %v2429 = vmax.f32 %v2111, %v2301
      %v2430 = vmax.f32 %v2113, %v2302
      %v2431 = vmax.f32 %v2116, %v2303
      %v2432 = vmax.f32 %v2118, %v2304
      %v2433 = vmax.f32 %v2121, %v2305
      %v2434 = vmax.f32 %v2123, %v2306
      %v2435 = vmax.f32 %v2126, %v2307
      %v2436 = vmax.f32 %v2128, %v2308
      %v2437 = vmax.f32 %v2131, %v2309
      %v2438 = vmax.f32 %v2133, %v2310
      %v2439 = vmax.f32 %v2136, %v2311
      %v2440 = vmax.f32 %v2138, %v2312
      %v2441 = vmax.f32 %v2141, %v2313
      %v2442 = vmax.f32 %v2143, %v2314
      %v2443 = vmax.f32 %v2146, %v2315
      %v2444 = vmax.f32 %v2148, %v2316
      %v2445 = vmax.f32 %v2151, %v2317
      %v2446 = vmax.f32 %v2153, %v2318
      %v2447 = vmax.f32 %v2156, %v2319
      %v2448 = vmax.f32 %v2158, %v2320
      %v2449 = vmax.f32 %v2161, %v2321
      %v2450 = vmax.f32 %v2163, %v2322
      %v2451 = vmax.f32 %v2166, %v2323
      %v2452 = vmax.f32 %v2168, %v2324
      %v2453 = vmax.f32 %v2171, %v2325
      %v2454 = vmax.f32 %v2173, %v2326
      %v2455 = vmax.f32 %v2176, %v2327
      %v2456 = vmax.f32 %v2178, %v2328
      %v2457 = vmax.f32 %v2181, %v2329
      %v2458 = vmax.f32 %v2183, %v2330
      %v2459 = vmax.f32 %v2186, %v2331
      %v2460 = vmax.f32 %v2188, %v2332
      %v2461 = vmax.f32 %v2191, %v2333
      %v2462 = vmax.f32 %v2193, %v2334
      %v2463 = vmax.f32 %v2196, %v2335
      %v2464 = vmax.f32 %v2198, %v2336
      %v2465 = vmax.f32 %v2201, %v2337
      %v2466 = vmax.f32 %v2203, %v2338
      %v2467 = vmax.f32 %v2206, %v2339
      %v2468 = vmax.f32 %v2208, %v2340
      %v2469 = vmax.f32 %v2211, %v2341
      %v2470 = vmax.f32 %v2213, %v2342
      %v2471 = vpack.c.bf16 %v2344, %v2343
      %v2472 = vpack.c.bf16 %v2346, %v2345
      %v2473 = vpack.c.bf16 %v2348, %v2347
      %v2474 = vpack.c.bf16 %v2350, %v2349
      %v2475 = vpack.c.bf16 %v2352, %v2351
      %v2476 = vpack.c.bf16 %v2354, %v2353
      %v2477 = vpack.c.bf16 %v2356, %v2355
      %v2478 = vpack.c.bf16 %v2358, %v2357
      %v2479 = vpack.c.bf16 %v2360, %v2359
      %v2480 = vpack.c.bf16 %v2362, %v2361
      %v2481 = vpack.c.bf16 %v2364, %v2363
      %v2482 = vpack.c.bf16 %v2366, %v2365
      %v2483 = vpack.c.bf16 %v2368, %v2367
      %v2484 = vpack.c.bf16 %v2370, %v2369
      %v2485 = vpack.c.bf16 %v2372, %v2371
      %v2486 = vpack.c.bf16 %v2374, %v2373
      %v2487 = vpack.c.bf16 %v2376, %v2375
      %v2488 = vpack.c.bf16 %v2378, %v2377
      %v2489 = vpack.c.bf16 %v2380, %v2379
      %v2490 = vpack.c.bf16 %v2382, %v2381
      %v2491 = vpack.c.bf16 %v2384, %v2383
      %v2492 = vpack.c.bf16 %v2386, %v2385
      %v2493 = vpack.c.bf16 %v2388, %v2387
      %v2494 = vpack.c.bf16 %v2390, %v2389
      %v2495 = vpack.c.bf16 %v2392, %v2391
      %v2496 = vpack.c.bf16 %v2394, %v2393
      %v2497 = vpack.c.bf16 %v2396, %v2395
      %v2498 = vpack.c.bf16 %v2398, %v2397
      %v2499 = vpack.c.bf16 %v2400, %v2399
      %v2500 = vpack.c.bf16 %v2402, %v2401
      %v2501 = vpack.c.bf16 %v2404, %v2403
      %v2502 = vpack.c.bf16 %v2406, %v2405
      %v2503 = vpack.c.bf16 %v2408, %v2407
      %v2504 = vpack.c.bf16 %v2410, %v2409
      %v2505 = vpack.c.bf16 %v2412, %v2411
      %v2506 = vpack.c.bf16 %v2414, %v2413
      %v2507 = vpack.c.bf16 %v2416, %v2415
      %v2508 = vpack.c.bf16 %v2418, %v2417
      %v2509 = vpack.c.bf16 %v2420, %v2419
      %v2510 = vpack.c.bf16 %v2422, %v2421
      %v2511 = vpack.c.bf16 %v2424, %v2423
      %v2512 = vpack.c.bf16 %v2426, %v2425
      %v2513 = vpack.c.bf16 %v2428, %v2427
      %v2514 = vpack.c.bf16 %v2430, %v2429
      %v2515 = vpack.c.bf16 %v2432, %v2431
      %v2516 = vpack.c.bf16 %v2434, %v2433
      %v2517 = vpack.c.bf16 %v2436, %v2435
      %v2518 = vpack.c.bf16 %v2438, %v2437
      %v2519 = vpack.c.bf16 %v2440, %v2439
      %v2520 = vpack.c.bf16 %v2442, %v2441
      %v2521 = vpack.c.bf16 %v2444, %v2443
      %v2522 = vpack.c.bf16 %v2446, %v2445
      %v2523 = vpack.c.bf16 %v2448, %v2447
      %v2524 = vpack.c.bf16 %v2450, %v2449
      %v2525 = vpack.c.bf16 %v2452, %v2451
      %v2526 = vpack.c.bf16 %v2454, %v2453
      %v2527 = vpack.c.bf16 %v2456, %v2455
      %v2528 = vpack.c.bf16 %v2458, %v2457
      %v2529 = vpack.c.bf16 %v2460, %v2459
      %v2530 = vpack.c.bf16 %v2462, %v2461
      %v2531 = vpack.c.bf16 %v2464, %v2463
      %v2532 = vpack.c.bf16 %v2466, %v2465
      %v2533 = vpack.c.bf16 %v2468, %v2467
      %v2534 = vpack.c.bf16 %v2470, %v2469
      %v2535 = vld [vmem:[%s4] sm:$0xf]
      %v2536 = vld [vmem:[%s4 + $0x4] sm:$0xf]
      %v2537 = vld [vmem:[%s4 + $0x8] sm:$0xf]
      %v2538 = vld [vmem:[%s4 + $0xc] sm:$0xf]
      %v2539 = vld [vmem:[%s4 + $0x10] sm:$0xf]
      %v2540 = vld [vmem:[%s4 + $0x14] sm:$0xf]
      %v2541 = vld [vmem:[%s4 + $0x18] sm:$0xf]
      %v2542 = vld [vmem:[%s4 + $0x1c] sm:$0xf]
      %v2543 = vld [vmem:[%s4 + $0x20] sm:$0xf]
      %v2544 = vld [vmem:[%s4 + $0x24] sm:$0xf]
      %v2545 = vld [vmem:[%s4 + $0x28] sm:$0xf]
      %v2546 = vld [vmem:[%s4 + $0x2c] sm:$0xf]
      %v2547 = vld [vmem:[%s4 + $0x30] sm:$0xf]
      %v2548 = vld [vmem:[%s4 + $0x34] sm:$0xf]
      %v2549 = vld [vmem:[%s4 + $0x38] sm:$0xf]
      %v2550 = vld [vmem:[%s4 + $0x3c] sm:$0xf]
      %v2551 = vld [vmem:[%s5] sm:$0x1]
      %v2553 = vperm.slane %v2551, 0
      %v2571 = vunpack.c.l.b16 %v2535
      %v2572 = vunpack.c.l.b16 %v2536
      %v2573 = vunpack.c.l.b16 %v2537
      %v2574 = vunpack.c.l.b16 %v2538
      %v2575 = vunpack.c.l.b16 %v2539
      %v2576 = vunpack.c.l.b16 %v2540
      %v2577 = vunpack.c.l.b16 %v2541
      %v2578 = vunpack.c.l.b16 %v2542
      %v2579 = vunpack.c.l.b16 %v2543
      %v2580 = vunpack.c.l.b16 %v2544
      %v2581 = vunpack.c.l.b16 %v2545
      %v2582 = vunpack.c.l.b16 %v2546
      %v2583 = vunpack.c.l.b16 %v2547
      %v2584 = vunpack.c.l.b16 %v2548
      %v2585 = vunpack.c.l.b16 %v2549
      %v2586 = vunpack.c.l.b16 %v2550
      %v2587 = vpack.c.b16 %v2572, %v2571
      %v2588 = vpack.c.b16 %v2574, %v2573
      %v2589 = vpack.c.b16 %v2576, %v2575
      %v2590 = vpack.c.b16 %v2578, %v2577
      %v2591 = vpack.c.b16 %v2580, %v2579
      %v2592 = vpack.c.b16 %v2582, %v2581
      %v2593 = vpack.c.b16 %v2584, %v2583
      %v2594 = vpack.c.b16 %v2586, %v2585
      %2603 = vmatpush.bf16.msra.mxu0 %v2594
      %2604 = vmatpush.bf16.msra.mxu0 %v2593
      %2605 = vmatpush.bf16.msra.mxu0 %v2592
      %2606 = vmatpush.bf16.msra.mxu0 %v2591
      %2607 = vmatpush.bf16.msra.mxu0 %v2590
      %2608 = vmatpush.bf16.msra.mxu0 %v2589
      %2609 = vmatpush.bf16.msra.mxu0 %v2588
      %2610 = vmatpush.bf16.msra.mxu0 %v2587
      %2611 = vmatmul.bf16.gmra.mxu0 %v2471
      %v2612 = vpop.f32.mrf.mxu0
      %v2613 = vadd.f32 %v2553, %v2612
      %v2614 = vpop.f32.mrf.mxu0
      %v2615 = vadd.f32 %v2553, %v2614
      %2616 = vmatmul.bf16.gmra.mxu0 %v2472
      %v2617 = vpop.f32.mrf.mxu0
      %v2618 = vadd.f32 %v2553, %v2617
      %v2619 = vpop.f32.mrf.mxu0
      %v2620 = vadd.f32 %v2553, %v2619
      %2621 = vmatmul.bf16.gmra.mxu0 %v2473
      %v2622 = vpop.f32.mrf.mxu0
      %v2623 = vadd.f32 %v2553, %v2622
      %v2624 = vpop.f32.mrf.mxu0
      %v2625 = vadd.f32 %v2553, %v2624
      %2626 = vmatmul.bf16.gmra.mxu0 %v2474
      %v2627 = vpop.f32.mrf.mxu0
      %v2628 = vadd.f32 %v2553, %v2627
      %v2629 = vpop.f32.mrf.mxu0
      %v2630 = vadd.f32 %v2553, %v2629
      %2631 = vmatmul.bf16.gmra.mxu0 %v2475
      %v2632 = vpop.f32.mrf.mxu0
      %v2633 = vadd.f32 %v2553, %v2632
      %v2634 = vpop.f32.mrf.mxu0
      %v2635 = vadd.f32 %v2553, %v2634
      %2636 = vmatmul.bf16.gmra.mxu0 %v2476
      %v2637 = vpop.f32.mrf.mxu0
      %v2638 = vadd.f32 %v2553, %v2637
      %v2639 = vpop.f32.mrf.mxu0
      %v2640 = vadd.f32 %v2553, %v2639
      %2641 = vmatmul.bf16.gmra.mxu0 %v2477
      %v2642 = vpop.f32.mrf.mxu0
      %v2643 = vadd.f32 %v2553, %v2642
      %v2644 = vpop.f32.mrf.mxu0
      %v2645 = vadd.f32 %v2553, %v2644
      %2646 = vmatmul.bf16.gmra.mxu0 %v2478
      %v2647 = vpop.f32.mrf.mxu0
      %v2648 = vadd.f32 %v2553, %v2647
      %v2649 = vpop.f32.mrf.mxu0
      %v2650 = vadd.f32 %v2553, %v2649
      %2651 = vmatmul.bf16.gmra.mxu0 %v2479
      %v2652 = vpop.f32.mrf.mxu0
      %v2653 = vadd.f32 %v2553, %v2652
      %v2654 = vpop.f32.mrf.mxu0
      %v2655 = vadd.f32 %v2553, %v2654
      %2656 = vmatmul.bf16.gmra.mxu0 %v2480
      %v2657 = vpop.f32.mrf.mxu0
      %v2658 = vadd.f32 %v2553, %v2657
      %v2659 = vpop.f32.mrf.mxu0
      %v2660 = vadd.f32 %v2553, %v2659
      %2661 = vmatmul.bf16.gmra.mxu0 %v2481
      %v2662 = vpop.f32.mrf.mxu0
      %v2663 = vadd.f32 %v2553, %v2662
      %v2664 = vpop.f32.mrf.mxu0
      %v2665 = vadd.f32 %v2553, %v2664
      %2666 = vmatmul.bf16.gmra.mxu0 %v2482
      %v2667 = vpop.f32.mrf.mxu0
      %v2668 = vadd.f32 %v2553, %v2667
      %v2669 = vpop.f32.mrf.mxu0
      %v2670 = vadd.f32 %v2553, %v2669
      %2671 = vmatmul.bf16.gmra.mxu0 %v2483
      %v2672 = vpop.f32.mrf.mxu0
      %v2673 = vadd.f32 %v2553, %v2672
      %v2674 = vpop.f32.mrf.mxu0
      %v2675 = vadd.f32 %v2553, %v2674
      %2676 = vmatmul.bf16.gmra.mxu0 %v2484
      %v2677 = vpop.f32.mrf.mxu0
      %v2678 = vadd.f32 %v2553, %v2677
      %v2679 = vpop.f32.mrf.mxu0
      %v2680 = vadd.f32 %v2553, %v2679
      %2681 = vmatmul.bf16.gmra.mxu0 %v2485
      %v2682 = vpop.f32.mrf.mxu0
      %v2683 = vadd.f32 %v2553, %v2682
      %v2684 = vpop.f32.mrf.mxu0
      %v2685 = vadd.f32 %v2553, %v2684
      %2686 = vmatmul.bf16.gmra.mxu0 %v2486
      %v2687 = vpop.f32.mrf.mxu0
      %v2688 = vadd.f32 %v2553, %v2687
      %v2689 = vpop.f32.mrf.mxu0
      %v2690 = vadd.f32 %v2553, %v2689
      %2691 = vmatmul.bf16.gmra.mxu0 %v2487
      %v2692 = vpop.f32.mrf.mxu0
      %v2693 = vadd.f32 %v2553, %v2692
      %v2694 = vpop.f32.mrf.mxu0
      %v2695 = vadd.f32 %v2553, %v2694
      %2696 = vmatmul.bf16.gmra.mxu0 %v2488
      %v2697 = vpop.f32.mrf.mxu0
      %v2698 = vadd.f32 %v2553, %v2697
      %v2699 = vpop.f32.mrf.mxu0
      %v2700 = vadd.f32 %v2553, %v2699
      %2701 = vmatmul.bf16.gmra.mxu0 %v2489
      %v2702 = vpop.f32.mrf.mxu0
      %v2703 = vadd.f32 %v2553, %v2702
      %v2704 = vpop.f32.mrf.mxu0
      %v2705 = vadd.f32 %v2553, %v2704
      %2706 = vmatmul.bf16.gmra.mxu0 %v2490
      %v2707 = vpop.f32.mrf.mxu0
      %v2708 = vadd.f32 %v2553, %v2707
      %v2709 = vpop.f32.mrf.mxu0
      %v2710 = vadd.f32 %v2553, %v2709
      %2711 = vmatmul.bf16.gmra.mxu0 %v2491
      %v2712 = vpop.f32.mrf.mxu0
      %v2713 = vadd.f32 %v2553, %v2712
      %v2714 = vpop.f32.mrf.mxu0
      %v2715 = vadd.f32 %v2553, %v2714
      %2716 = vmatmul.bf16.gmra.mxu0 %v2492
      %v2717 = vpop.f32.mrf.mxu0
      %v2718 = vadd.f32 %v2553, %v2717
      %v2719 = vpop.f32.mrf.mxu0
      %v2720 = vadd.f32 %v2553, %v2719
      %2721 = vmatmul.bf16.gmra.mxu0 %v2493
      %v2722 = vpop.f32.mrf.mxu0
      %v2723 = vadd.f32 %v2553, %v2722
      %v2724 = vpop.f32.mrf.mxu0
      %v2725 = vadd.f32 %v2553, %v2724
      %2726 = vmatmul.bf16.gmra.mxu0 %v2494
      %v2727 = vpop.f32.mrf.mxu0
      %v2728 = vadd.f32 %v2553, %v2727
      %v2729 = vpop.f32.mrf.mxu0
      %v2730 = vadd.f32 %v2553, %v2729
      %2731 = vmatmul.bf16.gmra.mxu0 %v2495
      %v2732 = vpop.f32.mrf.mxu0
      %v2733 = vadd.f32 %v2553, %v2732
      %v2734 = vpop.f32.mrf.mxu0
      %v2735 = vadd.f32 %v2553, %v2734
      %2736 = vmatmul.bf16.gmra.mxu0 %v2496
      %v2737 = vpop.f32.mrf.mxu0
      %v2738 = vadd.f32 %v2553, %v2737
      %v2739 = vpop.f32.mrf.mxu0
      %v2740 = vadd.f32 %v2553, %v2739
      %2741 = vmatmul.bf16.gmra.mxu0 %v2497
      %v2742 = vpop.f32.mrf.mxu0
      %v2743 = vadd.f32 %v2553, %v2742
      %v2744 = vpop.f32.mrf.mxu0
      %v2745 = vadd.f32 %v2553, %v2744
      %2746 = vmatmul.bf16.gmra.mxu0 %v2498
      %v2747 = vpop.f32.mrf.mxu0
      %v2748 = vadd.f32 %v2553, %v2747
      %v2749 = vpop.f32.mrf.mxu0
      %v2750 = vadd.f32 %v2553, %v2749
      %2751 = vmatmul.bf16.gmra.mxu0 %v2499
      %v2752 = vpop.f32.mrf.mxu0
      %v2753 = vadd.f32 %v2553, %v2752
      %v2754 = vpop.f32.mrf.mxu0
      %v2755 = vadd.f32 %v2553, %v2754
      %2756 = vmatmul.bf16.gmra.mxu0 %v2500
      %v2757 = vpop.f32.mrf.mxu0
      %v2758 = vadd.f32 %v2553, %v2757
      %v2759 = vpop.f32.mrf.mxu0
      %v2760 = vadd.f32 %v2553, %v2759
      %2761 = vmatmul.bf16.gmra.mxu0 %v2501
      %v2762 = vpop.f32.mrf.mxu0
      %v2763 = vadd.f32 %v2553, %v2762
      %v2764 = vpop.f32.mrf.mxu0
      %v2765 = vadd.f32 %v2553, %v2764
      %2766 = vmatmul.bf16.gmra.mxu0 %v2502
      %v2767 = vpop.f32.mrf.mxu0
      %v2768 = vadd.f32 %v2553, %v2767
      %v2769 = vpop.f32.mrf.mxu0
      %v2770 = vadd.f32 %v2553, %v2769
      %2771 = vmatmul.bf16.gmra.mxu0 %v2503
      %v2772 = vpop.f32.mrf.mxu0
      %v2773 = vadd.f32 %v2553, %v2772
      %v2774 = vpop.f32.mrf.mxu0
      %v2775 = vadd.f32 %v2553, %v2774
      %2776 = vmatmul.bf16.gmra.mxu0 %v2504
      %v2777 = vpop.f32.mrf.mxu0
      %v2778 = vadd.f32 %v2553, %v2777
      %v2779 = vpop.f32.mrf.mxu0
      %v2780 = vadd.f32 %v2553, %v2779
      %2781 = vmatmul.bf16.gmra.mxu0 %v2505
      %v2782 = vpop.f32.mrf.mxu0
      %v2783 = vadd.f32 %v2553, %v2782
      %v2784 = vpop.f32.mrf.mxu0
      %v2785 = vadd.f32 %v2553, %v2784
      %2786 = vmatmul.bf16.gmra.mxu0 %v2506
      %v2787 = vpop.f32.mrf.mxu0
      %v2788 = vadd.f32 %v2553, %v2787
      %v2789 = vpop.f32.mrf.mxu0
      %v2790 = vadd.f32 %v2553, %v2789
      %2791 = vmatmul.bf16.gmra.mxu0 %v2507
      %v2792 = vpop.f32.mrf.mxu0
      %v2793 = vadd.f32 %v2553, %v2792
      %v2794 = vpop.f32.mrf.mxu0
      %v2795 = vadd.f32 %v2553, %v2794
      %2796 = vmatmul.bf16.gmra.mxu0 %v2508
      %v2797 = vpop.f32.mrf.mxu0
      %v2798 = vadd.f32 %v2553, %v2797
      %v2799 = vpop.f32.mrf.mxu0
      %v2800 = vadd.f32 %v2553, %v2799
      %2801 = vmatmul.bf16.gmra.mxu0 %v2509
      %v2802 = vpop.f32.mrf.mxu0
      %v2803 = vadd.f32 %v2553, %v2802
      %v2804 = vpop.f32.mrf.mxu0
      %v2805 = vadd.f32 %v2553, %v2804
      %2806 = vmatmul.bf16.gmra.mxu0 %v2510
      %v2807 = vpop.f32.mrf.mxu0
      %v2808 = vadd.f32 %v2553, %v2807
      %v2809 = vpop.f32.mrf.mxu0
      %v2810 = vadd.f32 %v2553, %v2809
      %2811 = vmatmul.bf16.gmra.mxu0 %v2511
      %v2812 = vpop.f32.mrf.mxu0
      %v2813 = vadd.f32 %v2553, %v2812
      %v2814 = vpop.f32.mrf.mxu0
      %v2815 = vadd.f32 %v2553, %v2814
      %2816 = vmatmul.bf16.gmra.mxu0 %v2512
      %v2817 = vpop.f32.mrf.mxu0
      %v2818 = vadd.f32 %v2553, %v2817
      %v2819 = vpop.f32.mrf.mxu0
      %v2820 = vadd.f32 %v2553, %v2819
      %2821 = vmatmul.bf16.gmra.mxu0 %v2513
      %v2822 = vpop.f32.mrf.mxu0
      %v2823 = vadd.f32 %v2553, %v2822
      %v2824 = vpop.f32.mrf.mxu0
      %v2825 = vadd.f32 %v2553, %v2824
      %2826 = vmatmul.bf16.gmra.mxu0 %v2514
      %v2827 = vpop.f32.mrf.mxu0
      %v2828 = vadd.f32 %v2553, %v2827
      %v2829 = vpop.f32.mrf.mxu0
      %v2830 = vadd.f32 %v2553, %v2829
      %2831 = vmatmul.bf16.gmra.mxu0 %v2515
      %v2832 = vpop.f32.mrf.mxu0
      %v2833 = vadd.f32 %v2553, %v2832
      %v2834 = vpop.f32.mrf.mxu0
      %v2835 = vadd.f32 %v2553, %v2834
      %2836 = vmatmul.bf16.gmra.mxu0 %v2516
      %v2837 = vpop.f32.mrf.mxu0
      %v2838 = vadd.f32 %v2553, %v2837
      %v2839 = vpop.f32.mrf.mxu0
      %v2840 = vadd.f32 %v2553, %v2839
      %2841 = vmatmul.bf16.gmra.mxu0 %v2517
      %v2842 = vpop.f32.mrf.mxu0
      %v2843 = vadd.f32 %v2553, %v2842
      %v2844 = vpop.f32.mrf.mxu0
      %v2845 = vadd.f32 %v2553, %v2844
      %2846 = vmatmul.bf16.gmra.mxu0 %v2518
      %v2847 = vpop.f32.mrf.mxu0
      %v2848 = vadd.f32 %v2553, %v2847
      %v2849 = vpop.f32.mrf.mxu0
      %v2850 = vadd.f32 %v2553, %v2849
      %2851 = vmatmul.bf16.gmra.mxu0 %v2519
      %v2852 = vpop.f32.mrf.mxu0
      %v2853 = vadd.f32 %v2553, %v2852
      %v2854 = vpop.f32.mrf.mxu0
      %v2855 = vadd.f32 %v2553, %v2854
      %2856 = vmatmul.bf16.gmra.mxu0 %v2520
      %v2857 = vpop.f32.mrf.mxu0
      %v2858 = vadd.f32 %v2553, %v2857
      %v2859 = vpop.f32.mrf.mxu0
      %v2860 = vadd.f32 %v2553, %v2859
      %2861 = vmatmul.bf16.gmra.mxu0 %v2521
      %v2862 = vpop.f32.mrf.mxu0
      %v2863 = vadd.f32 %v2553, %v2862
      %v2864 = vpop.f32.mrf.mxu0
      %v2865 = vadd.f32 %v2553, %v2864
      %2866 = vmatmul.bf16.gmra.mxu0 %v2522
      %v2867 = vpop.f32.mrf.mxu0
      %v2868 = vadd.f32 %v2553, %v2867
      %v2869 = vpop.f32.mrf.mxu0
      %v2870 = vadd.f32 %v2553, %v2869
      %2871 = vmatmul.bf16.gmra.mxu0 %v2523
      %v2872 = vpop.f32.mrf.mxu0
      %v2873 = vadd.f32 %v2553, %v2872
      %v2874 = vpop.f32.mrf.mxu0
      %v2875 = vadd.f32 %v2553, %v2874
      %2876 = vmatmul.bf16.gmra.mxu0 %v2524
      %v2877 = vpop.f32.mrf.mxu0
      %v2878 = vadd.f32 %v2553, %v2877
      %v2879 = vpop.f32.mrf.mxu0
      %v2880 = vadd.f32 %v2553, %v2879
      %2881 = vmatmul.bf16.gmra.mxu0 %v2525
      %v2882 = vpop.f32.mrf.mxu0
      %v2883 = vadd.f32 %v2553, %v2882
      %v2884 = vpop.f32.mrf.mxu0
      %v2885 = vadd.f32 %v2553, %v2884
      %2886 = vmatmul.bf16.gmra.mxu0 %v2526
      %v2887 = vpop.f32.mrf.mxu0
      %v2888 = vadd.f32 %v2553, %v2887
      %v2889 = vpop.f32.mrf.mxu0
      %v2890 = vadd.f32 %v2553, %v2889
      %2891 = vmatmul.bf16.gmra.mxu0 %v2527
      %v2892 = vpop.f32.mrf.mxu0
      %v2893 = vadd.f32 %v2553, %v2892
      %v2894 = vpop.f32.mrf.mxu0
      %v2895 = vadd.f32 %v2553, %v2894
      %2896 = vmatmul.bf16.gmra.mxu0 %v2528
      %v2897 = vpop.f32.mrf.mxu0
      %v2898 = vadd.f32 %v2553, %v2897
      %v2899 = vpop.f32.mrf.mxu0
      %v2900 = vadd.f32 %v2553, %v2899
      %2901 = vmatmul.bf16.gmra.mxu0 %v2529
      %v2902 = vpop.f32.mrf.mxu0
      %v2903 = vadd.f32 %v2553, %v2902
      %v2904 = vpop.f32.mrf.mxu0
      %v2905 = vadd.f32 %v2553, %v2904
      %2906 = vmatmul.bf16.gmra.mxu0 %v2530
      %v2907 = vpop.f32.mrf.mxu0
      %v2908 = vadd.f32 %v2553, %v2907
      %v2909 = vpop.f32.mrf.mxu0
      %v2910 = vadd.f32 %v2553, %v2909
      %2911 = vmatmul.bf16.gmra.mxu0 %v2531
      %v2912 = vpop.f32.mrf.mxu0
      %v2913 = vadd.f32 %v2553, %v2912
      %v2914 = vpop.f32.mrf.mxu0
      %v2915 = vadd.f32 %v2553, %v2914
      %2916 = vmatmul.bf16.gmra.mxu0 %v2532
      %v2917 = vpop.f32.mrf.mxu0
      %v2918 = vadd.f32 %v2553, %v2917
      %v2919 = vpop.f32.mrf.mxu0
      %v2920 = vadd.f32 %v2553, %v2919
      %2921 = vmatmul.bf16.gmra.mxu0 %v2533
      %v2922 = vpop.f32.mrf.mxu0
      %v2923 = vadd.f32 %v2553, %v2922
      %v2924 = vpop.f32.mrf.mxu0
      %v2925 = vadd.f32 %v2553, %v2924
      %2926 = vmatmul.bf16.gmra.mxu0 %v2534
      %v2927 = vpop.f32.mrf.mxu0
      %v2928 = vadd.f32 %v2553, %v2927
      %v2929 = vpop.f32.mrf.mxu0
      %v2930 = vadd.f32 %v2553, %v2929
      %2931 = vdwg.mxu0
      %v2932 = vmul.f32 %v2613, 0.2
      %v2933 = vmul.f32 %v2615, 0.2
      %v2934 = vmul.f32 %v2618, 0.2
      %v2935 = vmul.f32 %v2620, 0.2
      %v2936 = vmul.f32 %v2623, 0.2
      %v2937 = vmul.f32 %v2625, 0.2
      %v2938 = vmul.f32 %v2628, 0.2
      %v2939 = vmul.f32 %v2630, 0.2
      %v2940 = vmul.f32 %v2633, 0.2
      %v2941 = vmul.f32 %v2635, 0.2
      %v2942 = vmul.f32 %v2638, 0.2
      %v2943 = vmul.f32 %v2640, 0.2
      %v2944 = vmul.f32 %v2643, 0.2
      %v2945 = vmul.f32 %v2645, 0.2
      %v2946 = vmul.f32 %v2648, 0.2
      %v2947 = vmul.f32 %v2650, 0.2
      %v2948 = vmul.f32 %v2653, 0.2
      %v2949 = vmul.f32 %v2655, 0.2
      %v2950 = vmul.f32 %v2658, 0.2
      %v2951 = vmul.f32 %v2660, 0.2
      %v2952 = vmul.f32 %v2663, 0.2
      %v2953 = vmul.f32 %v2665, 0.2
      %v2954 = vmul.f32 %v2668, 0.2
      %v2955 = vmul.f32 %v2670, 0.2
      %v2956 = vmul.f32 %v2673, 0.2
      %v2957 = vmul.f32 %v2675, 0.2
      %v2958 = vmul.f32 %v2678, 0.2
      %v2959 = vmul.f32 %v2680, 0.2
      %v2960 = vmul.f32 %v2683, 0.2
      %v2961 = vmul.f32 %v2685, 0.2
      %v2962 = vmul.f32 %v2688, 0.2
      %v2963 = vmul.f32 %v2690, 0.2
      %v2964 = vmul.f32 %v2693, 0.2
      %v2965 = vmul.f32 %v2695, 0.2
      %v2966 = vmul.f32 %v2698, 0.2
      %v2967 = vmul.f32 %v2700, 0.2
      %v2968 = vmul.f32 %v2703, 0.2
      %v2969 = vmul.f32 %v2705, 0.2
      %v2970 = vmul.f32 %v2708, 0.2
      %v2971 = vmul.f32 %v2710, 0.2
      %v2972 = vmul.f32 %v2713, 0.2
      %v2973 = vmul.f32 %v2715, 0.2
      %v2974 = vmul.f32 %v2718, 0.2
      %v2975 = vmul.f32 %v2720, 0.2
      %v2976 = vmul.f32 %v2723, 0.2
      %v2977 = vmul.f32 %v2725, 0.2
      %v2978 = vmul.f32 %v2728, 0.2
      %v2979 = vmul.f32 %v2730, 0.2
      %v2980 = vmul.f32 %v2733, 0.2
      %v2981 = vmul.f32 %v2735, 0.2
      %v2982 = vmul.f32 %v2738, 0.2
      %v2983 = vmul.f32 %v2740, 0.2
      %v2984 = vmul.f32 %v2743, 0.2
      %v2985 = vmul.f32 %v2745, 0.2
      %v2986 = vmul.f32 %v2748, 0.2
      %v2987 = vmul.f32 %v2750, 0.2
      %v2988 = vmul.f32 %v2753, 0.2
      %v2989 = vmul.f32 %v2755, 0.2
      %v2990 = vmul.f32 %v2758, 0.2
      %v2991 = vmul.f32 %v2760, 0.2
      %v2992 = vmul.f32 %v2763, 0.2
      %v2993 = vmul.f32 %v2765, 0.2
      %v2994 = vmul.f32 %v2768, 0.2
      %v2995 = vmul.f32 %v2770, 0.2
      %v2996 = vmul.f32 %v2773, 0.2
      %v2997 = vmul.f32 %v2775, 0.2
      %v2998 = vmul.f32 %v2778, 0.2
      %v2999 = vmul.f32 %v2780, 0.2
      %v3000 = vmul.f32 %v2783, 0.2
      %v3001 = vmul.f32 %v2785, 0.2
      %v3002 = vmul.f32 %v2788, 0.2
      %v3003 = vmul.f32 %v2790, 0.2
      %v3004 = vmul.f32 %v2793, 0.2
      %v3005 = vmul.f32 %v2795, 0.2
      %v3006 = vmul.f32 %v2798, 0.2
      %v3007 = vmul.f32 %v2800, 0.2
      %v3008 = vmul.f32 %v2803, 0.2
      %v3009 = vmul.f32 %v2805, 0.2
      %v3010 = vmul.f32 %v2808, 0.2
      %v3011 = vmul.f32 %v2810, 0.2
      %v3012 = vmul.f32 %v2813, 0.2
      %v3013 = vmul.f32 %v2815, 0.2
      %v3014 = vmul.f32 %v2818, 0.2
      %v3015 = vmul.f32 %v2820, 0.2
      %v3016 = vmul.f32 %v2823, 0.2
      %v3017 = vmul.f32 %v2825, 0.2
      %v3018 = vmul.f32 %v2828, 0.2
      %v3019 = vmul.f32 %v2830, 0.2
      %v3020 = vmul.f32 %v2833, 0.2
      %v3021 = vmul.f32 %v2835, 0.2
      %v3022 = vmul.f32 %v2838, 0.2
      %v3023 = vmul.f32 %v2840, 0.2
      %v3024 = vmul.f32 %v2843, 0.2
      %v3025 = vmul.f32 %v2845, 0.2
      %v3026 = vmul.f32 %v2848, 0.2
      %v3027 = vmul.f32 %v2850, 0.2
      %v3028 = vmul.f32 %v2853, 0.2
      %v3029 = vmul.f32 %v2855, 0.2
      %v3030 = vmul.f32 %v2858, 0.2
      %v3031 = vmul.f32 %v2860, 0.2
      %v3032 = vmul.f32 %v2863, 0.2
      %v3033 = vmul.f32 %v2865, 0.2
      %v3034 = vmul.f32 %v2868, 0.2
      %v3035 = vmul.f32 %v2870, 0.2
      %v3036 = vmul.f32 %v2873, 0.2
      %v3037 = vmul.f32 %v2875, 0.2
      %v3038 = vmul.f32 %v2878, 0.2
      %v3039 = vmul.f32 %v2880, 0.2
      %v3040 = vmul.f32 %v2883, 0.2
      %v3041 = vmul.f32 %v2885, 0.2
      %v3042 = vmul.f32 %v2888, 0.2
      %v3043 = vmul.f32 %v2890, 0.2
      %v3044 = vmul.f32 %v2893, 0.2
      %v3045 = vmul.f32 %v2895, 0.2
      %v3046 = vmul.f32 %v2898, 0.2
      %v3047 = vmul.f32 %v2900, 0.2
      %v3048 = vmul.f32 %v2903, 0.2
      %v3049 = vmul.f32 %v2905, 0.2
      %v3050 = vmul.f32 %v2908, 0.2
      %v3051 = vmul.f32 %v2910, 0.2
      %v3052 = vmul.f32 %v2913, 0.2
      %v3053 = vmul.f32 %v2915, 0.2
      %v3054 = vmul.f32 %v2918, 0.2
      %v3055 = vmul.f32 %v2920, 0.2
      %v3056 = vmul.f32 %v2923, 0.2
      %v3057 = vmul.f32 %v2925, 0.2
      %v3058 = vmul.f32 %v2928, 0.2
      %v3059 = vmul.f32 %v2930, 0.2
      %v3060 = vmax.f32 %v2613, %v2932
      %v3061 = vmax.f32 %v2615, %v2933
      %v3062 = vmax.f32 %v2618, %v2934
      %v3063 = vmax.f32 %v2620, %v2935
      %v3064 = vmax.f32 %v2623, %v2936
      %v3065 = vmax.f32 %v2625, %v2937
      %v3066 = vmax.f32 %v2628, %v2938
      %v3067 = vmax.f32 %v2630, %v2939
      %v3068 = vmax.f32 %v2633, %v2940
      %v3069 = vmax.f32 %v2635, %v2941
      %v3070 = vmax.f32 %v2638, %v2942
      %v3071 = vmax.f32 %v2640, %v2943
      %v3072 = vmax.f32 %v2643, %v2944
      %v3073 = vmax.f32 %v2645, %v2945
      %v3074 = vmax.f32 %v2648, %v2946
      %v3075 = vmax.f32 %v2650, %v2947
      %v3076 = vmax.f32 %v2653, %v2948
      %v3077 = vmax.f32 %v2655, %v2949
      %v3078 = vmax.f32 %v2658, %v2950
      %v3079 = vmax.f32 %v2660, %v2951
      %v3080 = vmax.f32 %v2663, %v2952
      %v3081 = vmax.f32 %v2665, %v2953
      %v3082 = vmax.f32 %v2668, %v2954
      %v3083 = vmax.f32 %v2670, %v2955
      %v3084 = vmax.f32 %v2673, %v2956
      %v3085 = vmax.f32 %v2675, %v2957
      %v3086 = vmax.f32 %v2678, %v2958
      %v3087 = vmax.f32 %v2680, %v2959
      %v3088 = vmax.f32 %v2683, %v2960
      %v3089 = vmax.f32 %v2685, %v2961
      %v3090 = vmax.f32 %v2688, %v2962
      %v3091 = vmax.f32 %v2690, %v2963
      %v3092 = vmax.f32 %v2693, %v2964
      %v3093 = vmax.f32 %v2695, %v2965
      %v3094 = vmax.f32 %v2698, %v2966
      %v3095 = vmax.f32 %v2700, %v2967
      %v3096 = vmax.f32 %v2703, %v2968
      %v3097 = vmax.f32 %v2705, %v2969
      %v3098 = vmax.f32 %v2708, %v2970
      %v3099 = vmax.f32 %v2710, %v2971
      %v3100 = vmax.f32 %v2713, %v2972
      %v3101 = vmax.f32 %v2715, %v2973
      %v3102 = vmax.f32 %v2718, %v2974
      %v3103 = vmax.f32 %v2720, %v2975
      %v3104 = vmax.f32 %v2723, %v2976
      %v3105 = vmax.f32 %v2725, %v2977
      %v3106 = vmax.f32 %v2728, %v2978
      %v3107 = vmax.f32 %v2730, %v2979
      %v3108 = vmax.f32 %v2733, %v2980
      %v3109 = vmax.f32 %v2735, %v2981
      %v3110 = vmax.f32 %v2738, %v2982
      %v3111 = vmax.f32 %v2740, %v2983
      %v3112 = vmax.f32 %v2743, %v2984
      %v3113 = vmax.f32 %v2745, %v2985
      %v3114 = vmax.f32 %v2748, %v2986
      %v3115 = vmax.f32 %v2750, %v2987
      %v3116 = vmax.f32 %v2753, %v2988
      %v3117 = vmax.f32 %v2755, %v2989
      %v3118 = vmax.f32 %v2758, %v2990
      %v3119 = vmax.f32 %v2760, %v2991
      %v3120 = vmax.f32 %v2763, %v2992
      %v3121 = vmax.f32 %v2765, %v2993
      %v3122 = vmax.f32 %v2768, %v2994
      %v3123 = vmax.f32 %v2770, %v2995
      %v3124 = vmax.f32 %v2773, %v2996
      %v3125 = vmax.f32 %v2775, %v2997
      %v3126 = vmax.f32 %v2778, %v2998
      %v3127 = vmax.f32 %v2780, %v2999
      %v3128 = vmax.f32 %v2783, %v3000
      %v3129 = vmax.f32 %v2785, %v3001
      %v3130 = vmax.f32 %v2788, %v3002
      %v3131 = vmax.f32 %v2790, %v3003
      %v3132 = vmax.f32 %v2793, %v3004
      %v3133 = vmax.f32 %v2795, %v3005
      %v3134 = vmax.f32 %v2798, %v3006
      %v3135 = vmax.f32 %v2800, %v3007
      %v3136 = vmax.f32 %v2803, %v3008
      %v3137 = vmax.f32 %v2805, %v3009
      %v3138 = vmax.f32 %v2808, %v3010
      %v3139 = vmax.f32 %v2810, %v3011
      %v3140 = vmax.f32 %v2813, %v3012
      %v3141 = vmax.f32 %v2815, %v3013
      %v3142 = vmax.f32 %v2818, %v3014
      %v3143 = vmax.f32 %v2820, %v3015
      %v3144 = vmax.f32 %v2823, %v3016
      %v3145 = vmax.f32 %v2825, %v3017
      %v3146 = vmax.f32 %v2828, %v3018
      %v3147 = vmax.f32 %v2830, %v3019
      %v3148 = vmax.f32 %v2833, %v3020
      %v3149 = vmax.f32 %v2835, %v3021
      %v3150 = vmax.f32 %v2838, %v3022
      %v3151 = vmax.f32 %v2840, %v3023
      %v3152 = vmax.f32 %v2843, %v3024
      %v3153 = vmax.f32 %v2845, %v3025
      %v3154 = vmax.f32 %v2848, %v3026
      %v3155 = vmax.f32 %v2850, %v3027
      %v3156 = vmax.f32 %v2853, %v3028
      %v3157 = vmax.f32 %v2855, %v3029
      %v3158 = vmax.f32 %v2858, %v3030
      %v3159 = vmax.f32 %v2860, %v3031
      %v3160 = vmax.f32 %v2863, %v3032
      %v3161 = vmax.f32 %v2865, %v3033
      %v3162 = vmax.f32 %v2868, %v3034
      %v3163 = vmax.f32 %v2870, %v3035
      %v3164 = vmax.f32 %v2873, %v3036
      %v3165 = vmax.f32 %v2875, %v3037
      %v3166 = vmax.f32 %v2878, %v3038
      %v3167 = vmax.f32 %v2880, %v3039
      %v3168 = vmax.f32 %v2883, %v3040
      %v3169 = vmax.f32 %v2885, %v3041
      %v3170 = vmax.f32 %v2888, %v3042
      %v3171 = vmax.f32 %v2890, %v3043
      %v3172 = vmax.f32 %v2893, %v3044
      %v3173 = vmax.f32 %v2895, %v3045
      %v3174 = vmax.f32 %v2898, %v3046
      %v3175 = vmax.f32 %v2900, %v3047
      %v3176 = vmax.f32 %v2903, %v3048
      %v3177 = vmax.f32 %v2905, %v3049
      %v3178 = vmax.f32 %v2908, %v3050
      %v3179 = vmax.f32 %v2910, %v3051
      %v3180 = vmax.f32 %v2913, %v3052
      %v3181 = vmax.f32 %v2915, %v3053
      %v3182 = vmax.f32 %v2918, %v3054
      %v3183 = vmax.f32 %v2920, %v3055
      %v3184 = vmax.f32 %v2923, %v3056
      %v3185 = vmax.f32 %v2925, %v3057
      %v3186 = vmax.f32 %v2928, %v3058
      %v3187 = vmax.f32 %v2930, %v3059
      %v3188 = vpack.c.bf16 %v3061, %v3060
      %v3189 = vpack.c.bf16 %v3063, %v3062
      %v3190 = vpack.c.bf16 %v3065, %v3064
      %v3191 = vpack.c.bf16 %v3067, %v3066
      %v3192 = vpack.c.bf16 %v3069, %v3068
      %v3193 = vpack.c.bf16 %v3071, %v3070
      %v3194 = vpack.c.bf16 %v3073, %v3072
      %v3195 = vpack.c.bf16 %v3075, %v3074
      %v3196 = vpack.c.bf16 %v3077, %v3076
      %v3197 = vpack.c.bf16 %v3079, %v3078
      %v3198 = vpack.c.bf16 %v3081, %v3080
      %v3199 = vpack.c.bf16 %v3083, %v3082
      %v3200 = vpack.c.bf16 %v3085, %v3084
      %v3201 = vpack.c.bf16 %v3087, %v3086
      %v3202 = vpack.c.bf16 %v3089, %v3088
      %v3203 = vpack.c.bf16 %v3091, %v3090
      %v3204 = vpack.c.bf16 %v3093, %v3092
      %v3205 = vpack.c.bf16 %v3095, %v3094
      %v3206 = vpack.c.bf16 %v3097, %v3096
      %v3207 = vpack.c.bf16 %v3099, %v3098
      %v3208 = vpack.c.bf16 %v3101, %v3100
      %v3209 = vpack.c.bf16 %v3103, %v3102
      %v3210 = vpack.c.bf16 %v3105, %v3104
      %v3211 = vpack.c.bf16 %v3107, %v3106
      %v3212 = vpack.c.bf16 %v3109, %v3108
      %v3213 = vpack.c.bf16 %v3111, %v3110
      %v3214 = vpack.c.bf16 %v3113, %v3112
      %v3215 = vpack.c.bf16 %v3115, %v3114
      %v3216 = vpack.c.bf16 %v3117, %v3116
      %v3217 = vpack.c.bf16 %v3119, %v3118
      %v3218 = vpack.c.bf16 %v3121, %v3120
      %v3219 = vpack.c.bf16 %v3123, %v3122
      %v3220 = vpack.c.bf16 %v3125, %v3124
      %v3221 = vpack.c.bf16 %v3127, %v3126
      %v3222 = vpack.c.bf16 %v3129, %v3128
      %v3223 = vpack.c.bf16 %v3131, %v3130
      %v3224 = vpack.c.bf16 %v3133, %v3132
      %v3225 = vpack.c.bf16 %v3135, %v3134
      %v3226 = vpack.c.bf16 %v3137, %v3136
      %v3227 = vpack.c.bf16 %v3139, %v3138
      %v3228 = vpack.c.bf16 %v3141, %v3140
      %v3229 = vpack.c.bf16 %v3143, %v3142
      %v3230 = vpack.c.bf16 %v3145, %v3144
      %v3231 = vpack.c.bf16 %v3147, %v3146
      %v3232 = vpack.c.bf16 %v3149, %v3148
      %v3233 = vpack.c.bf16 %v3151, %v3150
      %v3234 = vpack.c.bf16 %v3153, %v3152
      %v3235 = vpack.c.bf16 %v3155, %v3154
      %v3236 = vpack.c.bf16 %v3157, %v3156
      %v3237 = vpack.c.bf16 %v3159, %v3158
      %v3238 = vpack.c.bf16 %v3161, %v3160
      %v3239 = vpack.c.bf16 %v3163, %v3162
      %v3240 = vpack.c.bf16 %v3165, %v3164
      %v3241 = vpack.c.bf16 %v3167, %v3166
      %v3242 = vpack.c.bf16 %v3169, %v3168
      %v3243 = vpack.c.bf16 %v3171, %v3170
      %v3244 = vpack.c.bf16 %v3173, %v3172
      %v3245 = vpack.c.bf16 %v3175, %v3174
      %v3246 = vpack.c.bf16 %v3177, %v3176
      %v3247 = vpack.c.bf16 %v3179, %v3178
      %v3248 = vpack.c.bf16 %v3181, %v3180
      %v3249 = vpack.c.bf16 %v3183, %v3182
      %v3250 = vpack.c.bf16 %v3185, %v3184
      %v3251 = vpack.c.bf16 %v3187, %v3186
      %v3252 = vld [vmem:[%s6] sm:$0xf]
      %v3253 = vld [vmem:[%s6 + $0x4] sm:$0xf]
      %v3254 = vld [vmem:[%s6 + $0x8] sm:$0xf]
      %v3255 = vld [vmem:[%s6 + $0xc] sm:$0xf]
      %v3256 = vld [vmem:[%s6 + $0x10] sm:$0xf]
      %v3257 = vld [vmem:[%s6 + $0x14] sm:$0xf]
      %v3258 = vld [vmem:[%s6 + $0x18] sm:$0xf]
      %v3259 = vld [vmem:[%s6 + $0x1c] sm:$0xf]
      %v3260 = vld [vmem:[%s6 + $0x20] sm:$0xf]
      %v3261 = vld [vmem:[%s6 + $0x24] sm:$0xf]
      %v3262 = vld [vmem:[%s6 + $0x28] sm:$0xf]
      %v3263 = vld [vmem:[%s6 + $0x2c] sm:$0xf]
      %v3264 = vld [vmem:[%s6 + $0x30] sm:$0xf]
      %v3265 = vld [vmem:[%s6 + $0x34] sm:$0xf]
      %v3266 = vld [vmem:[%s6 + $0x38] sm:$0xf]
      %v3267 = vld [vmem:[%s6 + $0x3c] sm:$0xf]
      %v3268 = vld [vmem:[%s7] sm:$0x1]
      %v3270 = vperm.slane %v3268, 0
      %v3288 = vunpack.c.l.b16 %v3252
      %v3289 = vunpack.c.l.b16 %v3253
      %v3290 = vunpack.c.l.b16 %v3254
      %v3291 = vunpack.c.l.b16 %v3255
      %v3292 = vunpack.c.l.b16 %v3256
      %v3293 = vunpack.c.l.b16 %v3257
      %v3294 = vunpack.c.l.b16 %v3258
      %v3295 = vunpack.c.l.b16 %v3259
      %v3296 = vunpack.c.l.b16 %v3260
      %v3297 = vunpack.c.l.b16 %v3261
      %v3298 = vunpack.c.l.b16 %v3262
      %v3299 = vunpack.c.l.b16 %v3263
      %v3300 = vunpack.c.l.b16 %v3264
      %v3301 = vunpack.c.l.b16 %v3265
      %v3302 = vunpack.c.l.b16 %v3266
      %v3303 = vunpack.c.l.b16 %v3267
      %v3304 = vpack.c.b16 %v3289, %v3288
      %v3305 = vpack.c.b16 %v3291, %v3290
      %v3306 = vpack.c.b16 %v3293, %v3292
      %v3307 = vpack.c.b16 %v3295, %v3294
      %v3308 = vpack.c.b16 %v3297, %v3296
      %v3309 = vpack.c.b16 %v3299, %v3298
      %v3310 = vpack.c.b16 %v3301, %v3300
      %v3311 = vpack.c.b16 %v3303, %v3302
      %3320 = vmatpush.bf16.msra.mxu0 %v3311
      %3321 = vmatpush.bf16.msra.mxu0 %v3310
      %3322 = vmatpush.bf16.msra.mxu0 %v3309
      %3323 = vmatpush.bf16.msra.mxu0 %v3308
      %3324 = vmatpush.bf16.msra.mxu0 %v3307
      %3325 = vmatpush.bf16.msra.mxu0 %v3306
      %3326 = vmatpush.bf16.msra.mxu0 %v3305
      %3327 = vmatpush.bf16.msra.mxu0 %v3304
      %3328 = vmatmul.bf16.gmra.mxu0 %v3188
      %v3329 = vpop.f32.mrf.mxu0
      %v3330 = vadd.f32 %v3270, %v3329
      %v3331 = vpop.f32.mrf.mxu0
      %v3332 = vadd.f32 %v3270, %v3331
      %3333 = vmatmul.bf16.gmra.mxu0 %v3189
      %v3334 = vpop.f32.mrf.mxu0
      %v3335 = vadd.f32 %v3270, %v3334
      %v3336 = vpop.f32.mrf.mxu0
      %v3337 = vadd.f32 %v3270, %v3336
      %3338 = vmatmul.bf16.gmra.mxu0 %v3190
      %v3339 = vpop.f32.mrf.mxu0
      %v3340 = vadd.f32 %v3270, %v3339
      %v3341 = vpop.f32.mrf.mxu0
      %v3342 = vadd.f32 %v3270, %v3341
      %3343 = vmatmul.bf16.gmra.mxu0 %v3191
      %v3344 = vpop.f32.mrf.mxu0
      %v3345 = vadd.f32 %v3270, %v3344
      %v3346 = vpop.f32.mrf.mxu0
      %v3347 = vadd.f32 %v3270, %v3346
      %3348 = vmatmul.bf16.gmra.mxu0 %v3192
      %v3349 = vpop.f32.mrf.mxu0
      %v3350 = vadd.f32 %v3270, %v3349
      %v3351 = vpop.f32.mrf.mxu0
      %v3352 = vadd.f32 %v3270, %v3351
      %3353 = vmatmul.bf16.gmra.mxu0 %v3193
      %v3354 = vpop.f32.mrf.mxu0
      %v3355 = vadd.f32 %v3270, %v3354
      %v3356 = vpop.f32.mrf.mxu0
      %v3357 = vadd.f32 %v3270, %v3356
      %3358 = vmatmul.bf16.gmra.mxu0 %v3194
      %v3359 = vpop.f32.mrf.mxu0
      %v3360 = vadd.f32 %v3270, %v3359
      %v3361 = vpop.f32.mrf.mxu0
      %v3362 = vadd.f32 %v3270, %v3361
      %3363 = vmatmul.bf16.gmra.mxu0 %v3195
      %v3364 = vpop.f32.mrf.mxu0
      %v3365 = vadd.f32 %v3270, %v3364
      %v3366 = vpop.f32.mrf.mxu0
      %v3367 = vadd.f32 %v3270, %v3366
      %3368 = vmatmul.bf16.gmra.mxu0 %v3196
      %v3369 = vpop.f32.mrf.mxu0
      %v3370 = vadd.f32 %v3270, %v3369
      %v3371 = vpop.f32.mrf.mxu0
      %v3372 = vadd.f32 %v3270, %v3371
      %3373 = vmatmul.bf16.gmra.mxu0 %v3197
      %v3374 = vpop.f32.mrf.mxu0
      %v3375 = vadd.f32 %v3270, %v3374
      %v3376 = vpop.f32.mrf.mxu0
      %v3377 = vadd.f32 %v3270, %v3376
      %3378 = vmatmul.bf16.gmra.mxu0 %v3198
      %v3379 = vpop.f32.mrf.mxu0
      %v3380 = vadd.f32 %v3270, %v3379
      %v3381 = vpop.f32.mrf.mxu0
      %v3382 = vadd.f32 %v3270, %v3381
      %3383 = vmatmul.bf16.gmra.mxu0 %v3199
      %v3384 = vpop.f32.mrf.mxu0
      %v3385 = vadd.f32 %v3270, %v3384
      %v3386 = vpop.f32.mrf.mxu0
      %v3387 = vadd.f32 %v3270, %v3386
      %3388 = vmatmul.bf16.gmra.mxu0 %v3200
      %v3389 = vpop.f32.mrf.mxu0
      %v3390 = vadd.f32 %v3270, %v3389
      %v3391 = vpop.f32.mrf.mxu0
      %v3392 = vadd.f32 %v3270, %v3391
      %3393 = vmatmul.bf16.gmra.mxu0 %v3201
      %v3394 = vpop.f32.mrf.mxu0
      %v3395 = vadd.f32 %v3270, %v3394
      %v3396 = vpop.f32.mrf.mxu0
      %v3397 = vadd.f32 %v3270, %v3396
      %3398 = vmatmul.bf16.gmra.mxu0 %v3202
      %v3399 = vpop.f32.mrf.mxu0
      %v3400 = vadd.f32 %v3270, %v3399
      %v3401 = vpop.f32.mrf.mxu0
      %v3402 = vadd.f32 %v3270, %v3401
      %3403 = vmatmul.bf16.gmra.mxu0 %v3203
      %v3404 = vpop.f32.mrf.mxu0
      %v3405 = vadd.f32 %v3270, %v3404
      %v3406 = vpop.f32.mrf.mxu0
      %v3407 = vadd.f32 %v3270, %v3406
      %3408 = vmatmul.bf16.gmra.mxu0 %v3204
      %v3409 = vpop.f32.mrf.mxu0
      %v3410 = vadd.f32 %v3270, %v3409
      %v3411 = vpop.f32.mrf.mxu0
      %v3412 = vadd.f32 %v3270, %v3411
      %3413 = vmatmul.bf16.gmra.mxu0 %v3205
      %v3414 = vpop.f32.mrf.mxu0
      %v3415 = vadd.f32 %v3270, %v3414
      %v3416 = vpop.f32.mrf.mxu0
      %v3417 = vadd.f32 %v3270, %v3416
      %3418 = vmatmul.bf16.gmra.mxu0 %v3206
      %v3419 = vpop.f32.mrf.mxu0
      %v3420 = vadd.f32 %v3270, %v3419
      %v3421 = vpop.f32.mrf.mxu0
      %v3422 = vadd.f32 %v3270, %v3421
      %3423 = vmatmul.bf16.gmra.mxu0 %v3207
      %v3424 = vpop.f32.mrf.mxu0
      %v3425 = vadd.f32 %v3270, %v3424
      %v3426 = vpop.f32.mrf.mxu0
      %v3427 = vadd.f32 %v3270, %v3426
      %3428 = vmatmul.bf16.gmra.mxu0 %v3208
      %v3429 = vpop.f32.mrf.mxu0
      %v3430 = vadd.f32 %v3270, %v3429
      %v3431 = vpop.f32.mrf.mxu0
      %v3432 = vadd.f32 %v3270, %v3431
      %3433 = vmatmul.bf16.gmra.mxu0 %v3209
      %v3434 = vpop.f32.mrf.mxu0
      %v3435 = vadd.f32 %v3270, %v3434
      %v3436 = vpop.f32.mrf.mxu0
      %v3437 = vadd.f32 %v3270, %v3436
      %3438 = vmatmul.bf16.gmra.mxu0 %v3210
      %v3439 = vpop.f32.mrf.mxu0
      %v3440 = vadd.f32 %v3270, %v3439
      %v3441 = vpop.f32.mrf.mxu0
      %v3442 = vadd.f32 %v3270, %v3441
      %3443 = vmatmul.bf16.gmra.mxu0 %v3211
      %v3444 = vpop.f32.mrf.mxu0
      %v3445 = vadd.f32 %v3270, %v3444
      %v3446 = vpop.f32.mrf.mxu0
      %v3447 = vadd.f32 %v3270, %v3446
      %3448 = vmatmul.bf16.gmra.mxu0 %v3212
      %v3449 = vpop.f32.mrf.mxu0
      %v3450 = vadd.f32 %v3270, %v3449
      %v3451 = vpop.f32.mrf.mxu0
      %v3452 = vadd.f32 %v3270, %v3451
      %3453 = vmatmul.bf16.gmra.mxu0 %v3213
      %v3454 = vpop.f32.mrf.mxu0
      %v3455 = vadd.f32 %v3270, %v3454
      %v3456 = vpop.f32.mrf.mxu0
      %v3457 = vadd.f32 %v3270, %v3456
      %3458 = vmatmul.bf16.gmra.mxu0 %v3214
      %v3459 = vpop.f32.mrf.mxu0
      %v3460 = vadd.f32 %v3270, %v3459
      %v3461 = vpop.f32.mrf.mxu0
      %v3462 = vadd.f32 %v3270, %v3461
      %3463 = vmatmul.bf16.gmra.mxu0 %v3215
      %v3464 = vpop.f32.mrf.mxu0
      %v3465 = vadd.f32 %v3270, %v3464
      %v3466 = vpop.f32.mrf.mxu0
      %v3467 = vadd.f32 %v3270, %v3466
      %3468 = vmatmul.bf16.gmra.mxu0 %v3216
      %v3469 = vpop.f32.mrf.mxu0
      %v3470 = vadd.f32 %v3270, %v3469
      %v3471 = vpop.f32.mrf.mxu0
      %v3472 = vadd.f32 %v3270, %v3471
      %3473 = vmatmul.bf16.gmra.mxu0 %v3217
      %v3474 = vpop.f32.mrf.mxu0
      %v3475 = vadd.f32 %v3270, %v3474
      %v3476 = vpop.f32.mrf.mxu0
      %v3477 = vadd.f32 %v3270, %v3476
      %3478 = vmatmul.bf16.gmra.mxu0 %v3218
      %v3479 = vpop.f32.mrf.mxu0
      %v3480 = vadd.f32 %v3270, %v3479
      %v3481 = vpop.f32.mrf.mxu0
      %v3482 = vadd.f32 %v3270, %v3481
      %3483 = vmatmul.bf16.gmra.mxu0 %v3219
      %v3484 = vpop.f32.mrf.mxu0
      %v3485 = vadd.f32 %v3270, %v3484
      %v3486 = vpop.f32.mrf.mxu0
      %v3487 = vadd.f32 %v3270, %v3486
      %3488 = vmatmul.bf16.gmra.mxu0 %v3220
      %v3489 = vpop.f32.mrf.mxu0
      %v3490 = vadd.f32 %v3270, %v3489
      %v3491 = vpop.f32.mrf.mxu0
      %v3492 = vadd.f32 %v3270, %v3491
      %3493 = vmatmul.bf16.gmra.mxu0 %v3221
      %v3494 = vpop.f32.mrf.mxu0
      %v3495 = vadd.f32 %v3270, %v3494
      %v3496 = vpop.f32.mrf.mxu0
      %v3497 = vadd.f32 %v3270, %v3496
      %3498 = vmatmul.bf16.gmra.mxu0 %v3222
      %v3499 = vpop.f32.mrf.mxu0
      %v3500 = vadd.f32 %v3270, %v3499
      %v3501 = vpop.f32.mrf.mxu0
      %v3502 = vadd.f32 %v3270, %v3501
      %3503 = vmatmul.bf16.gmra.mxu0 %v3223
      %v3504 = vpop.f32.mrf.mxu0
      %v3505 = vadd.f32 %v3270, %v3504
      %v3506 = vpop.f32.mrf.mxu0
      %v3507 = vadd.f32 %v3270, %v3506
      %3508 = vmatmul.bf16.gmra.mxu0 %v3224
      %v3509 = vpop.f32.mrf.mxu0
      %v3510 = vadd.f32 %v3270, %v3509
      %v3511 = vpop.f32.mrf.mxu0
      %v3512 = vadd.f32 %v3270, %v3511
      %3513 = vmatmul.bf16.gmra.mxu0 %v3225
      %v3514 = vpop.f32.mrf.mxu0
      %v3515 = vadd.f32 %v3270, %v3514
      %v3516 = vpop.f32.mrf.mxu0
      %v3517 = vadd.f32 %v3270, %v3516
      %3518 = vmatmul.bf16.gmra.mxu0 %v3226
      %v3519 = vpop.f32.mrf.mxu0
      %v3520 = vadd.f32 %v3270, %v3519
      %v3521 = vpop.f32.mrf.mxu0
      %v3522 = vadd.f32 %v3270, %v3521
      %3523 = vmatmul.bf16.gmra.mxu0 %v3227
      %v3524 = vpop.f32.mrf.mxu0
      %v3525 = vadd.f32 %v3270, %v3524
      %v3526 = vpop.f32.mrf.mxu0
      %v3527 = vadd.f32 %v3270, %v3526
      %3528 = vmatmul.bf16.gmra.mxu0 %v3228
      %v3529 = vpop.f32.mrf.mxu0
      %v3530 = vadd.f32 %v3270, %v3529
      %v3531 = vpop.f32.mrf.mxu0
      %v3532 = vadd.f32 %v3270, %v3531
      %3533 = vmatmul.bf16.gmra.mxu0 %v3229
      %v3534 = vpop.f32.mrf.mxu0
      %v3535 = vadd.f32 %v3270, %v3534
      %v3536 = vpop.f32.mrf.mxu0
      %v3537 = vadd.f32 %v3270, %v3536
      %3538 = vmatmul.bf16.gmra.mxu0 %v3230
      %v3539 = vpop.f32.mrf.mxu0
      %v3540 = vadd.f32 %v3270, %v3539
      %v3541 = vpop.f32.mrf.mxu0
      %v3542 = vadd.f32 %v3270, %v3541
      %3543 = vmatmul.bf16.gmra.mxu0 %v3231
      %v3544 = vpop.f32.mrf.mxu0
      %v3545 = vadd.f32 %v3270, %v3544
      %v3546 = vpop.f32.mrf.mxu0
      %v3547 = vadd.f32 %v3270, %v3546
      %3548 = vmatmul.bf16.gmra.mxu0 %v3232
      %v3549 = vpop.f32.mrf.mxu0
      %v3550 = vadd.f32 %v3270, %v3549
      %v3551 = vpop.f32.mrf.mxu0
      %v3552 = vadd.f32 %v3270, %v3551
      %3553 = vmatmul.bf16.gmra.mxu0 %v3233
      %v3554 = vpop.f32.mrf.mxu0
      %v3555 = vadd.f32 %v3270, %v3554
      %v3556 = vpop.f32.mrf.mxu0
      %v3557 = vadd.f32 %v3270, %v3556
      %3558 = vmatmul.bf16.gmra.mxu0 %v3234
      %v3559 = vpop.f32.mrf.mxu0
      %v3560 = vadd.f32 %v3270, %v3559
      %v3561 = vpop.f32.mrf.mxu0
      %v3562 = vadd.f32 %v3270, %v3561
      %3563 = vmatmul.bf16.gmra.mxu0 %v3235
      %v3564 = vpop.f32.mrf.mxu0
      %v3565 = vadd.f32 %v3270, %v3564
      %v3566 = vpop.f32.mrf.mxu0
      %v3567 = vadd.f32 %v3270, %v3566
      %3568 = vmatmul.bf16.gmra.mxu0 %v3236
      %v3569 = vpop.f32.mrf.mxu0
      %v3570 = vadd.f32 %v3270, %v3569
      %v3571 = vpop.f32.mrf.mxu0
      %v3572 = vadd.f32 %v3270, %v3571
      %3573 = vmatmul.bf16.gmra.mxu0 %v3237
      %v3574 = vpop.f32.mrf.mxu0
      %v3575 = vadd.f32 %v3270, %v3574
      %v3576 = vpop.f32.mrf.mxu0
      %v3577 = vadd.f32 %v3270, %v3576
      %3578 = vmatmul.bf16.gmra.mxu0 %v3238
      %v3579 = vpop.f32.mrf.mxu0
      %v3580 = vadd.f32 %v3270, %v3579
      %v3581 = vpop.f32.mrf.mxu0
      %v3582 = vadd.f32 %v3270, %v3581
      %3583 = vmatmul.bf16.gmra.mxu0 %v3239
      %v3584 = vpop.f32.mrf.mxu0
      %v3585 = vadd.f32 %v3270, %v3584
      %v3586 = vpop.f32.mrf.mxu0
      %v3587 = vadd.f32 %v3270, %v3586
      %3588 = vmatmul.bf16.gmra.mxu0 %v3240
      %v3589 = vpop.f32.mrf.mxu0
      %v3590 = vadd.f32 %v3270, %v3589
      %v3591 = vpop.f32.mrf.mxu0
      %v3592 = vadd.f32 %v3270, %v3591
      %3593 = vmatmul.bf16.gmra.mxu0 %v3241
      %v3594 = vpop.f32.mrf.mxu0
      %v3595 = vadd.f32 %v3270, %v3594
      %v3596 = vpop.f32.mrf.mxu0
      %v3597 = vadd.f32 %v3270, %v3596
      %3598 = vmatmul.bf16.gmra.mxu0 %v3242
      %v3599 = vpop.f32.mrf.mxu0
      %v3600 = vadd.f32 %v3270, %v3599
      %v3601 = vpop.f32.mrf.mxu0
      %v3602 = vadd.f32 %v3270, %v3601
      %3603 = vmatmul.bf16.gmra.mxu0 %v3243
      %v3604 = vpop.f32.mrf.mxu0
      %v3605 = vadd.f32 %v3270, %v3604
      %v3606 = vpop.f32.mrf.mxu0
      %v3607 = vadd.f32 %v3270, %v3606
      %3608 = vmatmul.bf16.gmra.mxu0 %v3244
      %v3609 = vpop.f32.mrf.mxu0
      %v3610 = vadd.f32 %v3270, %v3609
      %v3611 = vpop.f32.mrf.mxu0
      %v3612 = vadd.f32 %v3270, %v3611
      %3613 = vmatmul.bf16.gmra.mxu0 %v3245
      %v3614 = vpop.f32.mrf.mxu0
      %v3615 = vadd.f32 %v3270, %v3614
      %v3616 = vpop.f32.mrf.mxu0
      %v3617 = vadd.f32 %v3270, %v3616
      %3618 = vmatmul.bf16.gmra.mxu0 %v3246
      %v3619 = vpop.f32.mrf.mxu0
      %v3620 = vadd.f32 %v3270, %v3619
      %v3621 = vpop.f32.mrf.mxu0
      %v3622 = vadd.f32 %v3270, %v3621
      %3623 = vmatmul.bf16.gmra.mxu0 %v3247
      %v3624 = vpop.f32.mrf.mxu0
      %v3625 = vadd.f32 %v3270, %v3624
      %v3626 = vpop.f32.mrf.mxu0
      %v3627 = vadd.f32 %v3270, %v3626
      %3628 = vmatmul.bf16.gmra.mxu0 %v3248
      %v3629 = vpop.f32.mrf.mxu0
      %v3630 = vadd.f32 %v3270, %v3629
      %v3631 = vpop.f32.mrf.mxu0
      %v3632 = vadd.f32 %v3270, %v3631
      %3633 = vmatmul.bf16.gmra.mxu0 %v3249
      %v3634 = vpop.f32.mrf.mxu0
      %v3635 = vadd.f32 %v3270, %v3634
      %v3636 = vpop.f32.mrf.mxu0
      %v3637 = vadd.f32 %v3270, %v3636
      %3638 = vmatmul.bf16.gmra.mxu0 %v3250
      %v3639 = vpop.f32.mrf.mxu0
      %v3640 = vadd.f32 %v3270, %v3639
      %v3641 = vpop.f32.mrf.mxu0
      %v3642 = vadd.f32 %v3270, %v3641
      %3643 = vmatmul.bf16.gmra.mxu0 %v3251
      %v3644 = vpop.f32.mrf.mxu0
      %v3645 = vadd.f32 %v3270, %v3644
      %v3646 = vpop.f32.mrf.mxu0
      %v3647 = vadd.f32 %v3270, %v3646
      %3648 = vdwg.mxu0
      %v3649 = vmul.f32 %v3330, %v3330
      %v3650 = vmul.f32 %v3332, %v3332
      %v3651 = vmul.f32 %v3335, %v3335
      %v3652 = vmul.f32 %v3337, %v3337
      %v3653 = vmul.f32 %v3340, %v3340
      %v3654 = vmul.f32 %v3342, %v3342
      %v3655 = vmul.f32 %v3345, %v3345
      %v3656 = vmul.f32 %v3347, %v3347
      %v3657 = vmul.f32 %v3350, %v3350
      %v3658 = vmul.f32 %v3352, %v3352
      %v3659 = vmul.f32 %v3355, %v3355
      %v3660 = vmul.f32 %v3357, %v3357
      %v3661 = vmul.f32 %v3360, %v3360
      %v3662 = vmul.f32 %v3362, %v3362
      %v3663 = vmul.f32 %v3365, %v3365
      %v3664 = vmul.f32 %v3367, %v3367
      %v3665 = vmul.f32 %v3370, %v3370
      %v3666 = vmul.f32 %v3372, %v3372
      %v3667 = vmul.f32 %v3375, %v3375
      %v3668 = vmul.f32 %v3377, %v3377
      %v3669 = vmul.f32 %v3380, %v3380
      %v3670 = vmul.f32 %v3382, %v3382
      %v3671 = vmul.f32 %v3385, %v3385
      %v3672 = vmul.f32 %v3387, %v3387
      %v3673 = vmul.f32 %v3390, %v3390
      %v3674 = vmul.f32 %v3392, %v3392
      %v3675 = vmul.f32 %v3395, %v3395
      %v3676 = vmul.f32 %v3397, %v3397
      %v3677 = vmul.f32 %v3400, %v3400
      %v3678 = vmul.f32 %v3402, %v3402
      %v3679 = vmul.f32 %v3405, %v3405
      %v3680 = vmul.f32 %v3407, %v3407
      %v3681 = vmul.f32 %v3410, %v3410
      %v3682 = vmul.f32 %v3412, %v3412
      %v3683 = vmul.f32 %v3415, %v3415
      %v3684 = vmul.f32 %v3417, %v3417
      %v3685 = vmul.f32 %v3420, %v3420
      %v3686 = vmul.f32 %v3422, %v3422
      %v3687 = vmul.f32 %v3425, %v3425
      %v3688 = vmul.f32 %v3427, %v3427
      %v3689 = vmul.f32 %v3430, %v3430
      %v3690 = vmul.f32 %v3432, %v3432
      %v3691 = vmul.f32 %v3435, %v3435
      %v3692 = vmul.f32 %v3437, %v3437
      %v3693 = vmul.f32 %v3440, %v3440
      %v3694 = vmul.f32 %v3442, %v3442
      %v3695 = vmul.f32 %v3445, %v3445
      %v3696 = vmul.f32 %v3447, %v3447
      %v3697 = vmul.f32 %v3450, %v3450
      %v3698 = vmul.f32 %v3452, %v3452
      %v3699 = vmul.f32 %v3455, %v3455
      %v3700 = vmul.f32 %v3457, %v3457
      %v3701 = vmul.f32 %v3460, %v3460
      %v3702 = vmul.f32 %v3462, %v3462
      %v3703 = vmul.f32 %v3465, %v3465
      %v3704 = vmul.f32 %v3467, %v3467
      %v3705 = vmul.f32 %v3470, %v3470
      %v3706 = vmul.f32 %v3472, %v3472
      %v3707 = vmul.f32 %v3475, %v3475
      %v3708 = vmul.f32 %v3477, %v3477
      %v3709 = vmul.f32 %v3480, %v3480
      %v3710 = vmul.f32 %v3482, %v3482
      %v3711 = vmul.f32 %v3485, %v3485
      %v3712 = vmul.f32 %v3487, %v3487
      %v3713 = vmul.f32 %v3490, %v3490
      %v3714 = vmul.f32 %v3492, %v3492
      %v3715 = vmul.f32 %v3495, %v3495
      %v3716 = vmul.f32 %v3497, %v3497
      %v3717 = vmul.f32 %v3500, %v3500
      %v3718 = vmul.f32 %v3502, %v3502
      %v3719 = vmul.f32 %v3505, %v3505
      %v3720 = vmul.f32 %v3507, %v3507
      %v3721 = vmul.f32 %v3510, %v3510
      %v3722 = vmul.f32 %v3512, %v3512
      %v3723 = vmul.f32 %v3515, %v3515
      %v3724 = vmul.f32 %v3517, %v3517
      %v3725 = vmul.f32 %v3520, %v3520
      %v3726 = vmul.f32 %v3522, %v3522
      %v3727 = vmul.f32 %v3525, %v3525
      %v3728 = vmul.f32 %v3527, %v3527
      %v3729 = vmul.f32 %v3530, %v3530
      %v3730 = vmul.f32 %v3532, %v3532
      %v3731 = vmul.f32 %v3535, %v3535
      %v3732 = vmul.f32 %v3537, %v3537
      %v3733 = vmul.f32 %v3540, %v3540
      %v3734 = vmul.f32 %v3542, %v3542
      %v3735 = vmul.f32 %v3545, %v3545
      %v3736 = vmul.f32 %v3547, %v3547
      %v3737 = vmul.f32 %v3550, %v3550
      %v3738 = vmul.f32 %v3552, %v3552
      %v3739 = vmul.f32 %v3555, %v3555
      %v3740 = vmul.f32 %v3557, %v3557
      %v3741 = vmul.f32 %v3560, %v3560
      %v3742 = vmul.f32 %v3562, %v3562
      %v3743 = vmul.f32 %v3565, %v3565
      %v3744 = vmul.f32 %v3567, %v3567
      %v3745 = vmul.f32 %v3570, %v3570
      %v3746 = vmul.f32 %v3572, %v3572
      %v3747 = vmul.f32 %v3575, %v3575
      %v3748 = vmul.f32 %v3577, %v3577
      %v3749 = vmul.f32 %v3580, %v3580
      %v3750 = vmul.f32 %v3582, %v3582
      %v3751 = vmul.f32 %v3585, %v3585
      %v3752 = vmul.f32 %v3587, %v3587
      %v3753 = vmul.f32 %v3590, %v3590
      %v3754 = vmul.f32 %v3592, %v3592
      %v3755 = vmul.f32 %v3595, %v3595
      %v3756 = vmul.f32 %v3597, %v3597
      %v3757 = vmul.f32 %v3600, %v3600
      %v3758 = vmul.f32 %v3602, %v3602
      %v3759 = vmul.f32 %v3605, %v3605
      %v3760 = vmul.f32 %v3607, %v3607
      %v3761 = vmul.f32 %v3610, %v3610
      %v3762 = vmul.f32 %v3612, %v3612
      %v3763 = vmul.f32 %v3615, %v3615
      %v3764 = vmul.f32 %v3617, %v3617
      %v3765 = vmul.f32 %v3620, %v3620
      %v3766 = vmul.f32 %v3622, %v3622
      %v3767 = vmul.f32 %v3625, %v3625
      %v3768 = vmul.f32 %v3627, %v3627
      %v3769 = vmul.f32 %v3630, %v3630
      %v3770 = vmul.f32 %v3632, %v3632
      %v3771 = vmul.f32 %v3635, %v3635
      %v3772 = vmul.f32 %v3637, %v3637
      %v3773 = vmul.f32 %v3640, %v3640
      %v3774 = vmul.f32 %v3642, %v3642
      %v3775 = vmul.f32 %v3645, %v3645
      %v3776 = vmul.f32 %v3647, %v3647
      %vm3777 = vcmask 31744
      %v3778 = vsel %vm3777, %v3649, 0.0
      %3779 = vadd.xlane.f32.xlu0 %v3778
      %v3780 = vpop.xlane.xlu0 %3779
      %v3781 = vsel %vm3777, %v3650, 0.0
      %3782 = vadd.xlane.f32.xlu0 %v3781
      %v3783 = vpop.xlane.xlu0 %3782
      %v3784 = vsel %vm3777, %v3651, 0.0
      %3785 = vadd.xlane.f32.xlu0 %v3784
      %v3786 = vpop.xlane.xlu0 %3785
      %v3787 = vsel %vm3777, %v3652, 0.0
      %3788 = vadd.xlane.f32.xlu0 %v3787
      %v3789 = vpop.xlane.xlu0 %3788
      %v3790 = vsel %vm3777, %v3653, 0.0
      %3791 = vadd.xlane.f32.xlu0 %v3790
      %v3792 = vpop.xlane.xlu0 %3791
      %v3793 = vsel %vm3777, %v3654, 0.0
      %3794 = vadd.xlane.f32.xlu0 %v3793
      %v3795 = vpop.xlane.xlu0 %3794
      %v3796 = vsel %vm3777, %v3655, 0.0
      %3797 = vadd.xlane.f32.xlu0 %v3796
      %v3798 = vpop.xlane.xlu0 %3797
      %v3799 = vsel %vm3777, %v3656, 0.0
      %3800 = vadd.xlane.f32.xlu0 %v3799
      %v3801 = vpop.xlane.xlu0 %3800
      %v3802 = vsel %vm3777, %v3657, 0.0
      %3803 = vadd.xlane.f32.xlu0 %v3802
      %v3804 = vpop.xlane.xlu0 %3803
      %v3805 = vsel %vm3777, %v3658, 0.0
      %3806 = vadd.xlane.f32.xlu0 %v3805
      %v3807 = vpop.xlane.xlu0 %3806
      %v3808 = vsel %vm3777, %v3659, 0.0
      %3809 = vadd.xlane.f32.xlu0 %v3808
      %v3810 = vpop.xlane.xlu0 %3809
      %v3811 = vsel %vm3777, %v3660, 0.0
      %3812 = vadd.xlane.f32.xlu0 %v3811
      %v3813 = vpop.xlane.xlu0 %3812
      %v3814 = vsel %vm3777, %v3661, 0.0
      %3815 = vadd.xlane.f32.xlu0 %v3814
      %v3816 = vpop.xlane.xlu0 %3815
      %v3817 = vsel %vm3777, %v3662, 0.0
      %3818 = vadd.xlane.f32.xlu0 %v3817
      %v3819 = vpop.xlane.xlu0 %3818
      %v3820 = vsel %vm3777, %v3663, 0.0
      %3821 = vadd.xlane.f32.xlu0 %v3820
      %v3822 = vpop.xlane.xlu0 %3821
      %v3823 = vsel %vm3777, %v3664, 0.0
      %3824 = vadd.xlane.f32.xlu0 %v3823
      %v3825 = vpop.xlane.xlu0 %3824
      %v3826 = vsel %vm3777, %v3665, 0.0
      %3827 = vadd.xlane.f32.xlu0 %v3826
      %v3828 = vpop.xlane.xlu0 %3827
      %v3829 = vsel %vm3777, %v3666, 0.0
      %3830 = vadd.xlane.f32.xlu0 %v3829
      %v3831 = vpop.xlane.xlu0 %3830
      %v3832 = vsel %vm3777, %v3667, 0.0
      %3833 = vadd.xlane.f32.xlu0 %v3832
      %v3834 = vpop.xlane.xlu0 %3833
      %v3835 = vsel %vm3777, %v3668, 0.0
      %3836 = vadd.xlane.f32.xlu0 %v3835
      %v3837 = vpop.xlane.xlu0 %3836
      %v3838 = vsel %vm3777, %v3669, 0.0
      %3839 = vadd.xlane.f32.xlu0 %v3838
      %v3840 = vpop.xlane.xlu0 %3839
      %v3841 = vsel %vm3777, %v3670, 0.0
      %3842 = vadd.xlane.f32.xlu0 %v3841
      %v3843 = vpop.xlane.xlu0 %3842
      %v3844 = vsel %vm3777, %v3671, 0.0
      %3845 = vadd.xlane.f32.xlu0 %v3844
      %v3846 = vpop.xlane.xlu0 %3845
      %v3847 = vsel %vm3777, %v3672, 0.0
      %3848 = vadd.xlane.f32.xlu0 %v3847
      %v3849 = vpop.xlane.xlu0 %3848
      %v3850 = vsel %vm3777, %v3673, 0.0
      %3851 = vadd.xlane.f32.xlu0 %v3850
      %v3852 = vpop.xlane.xlu0 %3851
      %v3853 = vsel %vm3777, %v3674, 0.0
      %3854 = vadd.xlane.f32.xlu0 %v3853
      %v3855 = vpop.xlane.xlu0 %3854
      %v3856 = vsel %vm3777, %v3675, 0.0
      %3857 = vadd.xlane.f32.xlu0 %v3856
      %v3858 = vpop.xlane.xlu0 %3857
      %v3859 = vsel %vm3777, %v3676, 0.0
      %3860 = vadd.xlane.f32.xlu0 %v3859
      %v3861 = vpop.xlane.xlu0 %3860
      %v3862 = vsel %vm3777, %v3677, 0.0
      %3863 = vadd.xlane.f32.xlu0 %v3862
      %v3864 = vpop.xlane.xlu0 %3863
      %v3865 = vsel %vm3777, %v3678, 0.0
      %3866 = vadd.xlane.f32.xlu0 %v3865
      %v3867 = vpop.xlane.xlu0 %3866
      %v3868 = vsel %vm3777, %v3679, 0.0
      %3869 = vadd.xlane.f32.xlu0 %v3868
      %v3870 = vpop.xlane.xlu0 %3869
      %v3871 = vsel %vm3777, %v3680, 0.0
      %3872 = vadd.xlane.f32.xlu0 %v3871
      %v3873 = vpop.xlane.xlu0 %3872
      %v3874 = vsel %vm3777, %v3681, 0.0
      %3875 = vadd.xlane.f32.xlu0 %v3874
      %v3876 = vpop.xlane.xlu0 %3875
      %v3877 = vsel %vm3777, %v3682, 0.0
      %3878 = vadd.xlane.f32.xlu0 %v3877
      %v3879 = vpop.xlane.xlu0 %3878
      %v3880 = vsel %vm3777, %v3683, 0.0
      %3881 = vadd.xlane.f32.xlu0 %v3880
      %v3882 = vpop.xlane.xlu0 %3881
      %v3883 = vsel %vm3777, %v3684, 0.0
      %3884 = vadd.xlane.f32.xlu0 %v3883
      %v3885 = vpop.xlane.xlu0 %3884
      %v3886 = vsel %vm3777, %v3685, 0.0
      %3887 = vadd.xlane.f32.xlu0 %v3886
      %v3888 = vpop.xlane.xlu0 %3887
      %v3889 = vsel %vm3777, %v3686, 0.0
      %3890 = vadd.xlane.f32.xlu0 %v3889
      %v3891 = vpop.xlane.xlu0 %3890
      %v3892 = vsel %vm3777, %v3687, 0.0
      %3893 = vadd.xlane.f32.xlu0 %v3892
      %v3894 = vpop.xlane.xlu0 %3893
      %v3895 = vsel %vm3777, %v3688, 0.0
      %3896 = vadd.xlane.f32.xlu0 %v3895
      %v3897 = vpop.xlane.xlu0 %3896
      %v3898 = vsel %vm3777, %v3689, 0.0
      %3899 = vadd.xlane.f32.xlu0 %v3898
      %v3900 = vpop.xlane.xlu0 %3899
      %v3901 = vsel %vm3777, %v3690, 0.0
      %3902 = vadd.xlane.f32.xlu0 %v3901
      %v3903 = vpop.xlane.xlu0 %3902
      %v3904 = vsel %vm3777, %v3691, 0.0
      %3905 = vadd.xlane.f32.xlu0 %v3904
      %v3906 = vpop.xlane.xlu0 %3905
      %v3907 = vsel %vm3777, %v3692, 0.0
      %3908 = vadd.xlane.f32.xlu0 %v3907
      %v3909 = vpop.xlane.xlu0 %3908
      %v3910 = vsel %vm3777, %v3693, 0.0
      %3911 = vadd.xlane.f32.xlu0 %v3910
      %v3912 = vpop.xlane.xlu0 %3911
      %v3913 = vsel %vm3777, %v3694, 0.0
      %3914 = vadd.xlane.f32.xlu0 %v3913
      %v3915 = vpop.xlane.xlu0 %3914
      %v3916 = vsel %vm3777, %v3695, 0.0
      %3917 = vadd.xlane.f32.xlu0 %v3916
      %v3918 = vpop.xlane.xlu0 %3917
      %v3919 = vsel %vm3777, %v3696, 0.0
      %3920 = vadd.xlane.f32.xlu0 %v3919
      %v3921 = vpop.xlane.xlu0 %3920
      %v3922 = vsel %vm3777, %v3697, 0.0
      %3923 = vadd.xlane.f32.xlu0 %v3922
      %v3924 = vpop.xlane.xlu0 %3923
      %v3925 = vsel %vm3777, %v3698, 0.0
      %3926 = vadd.xlane.f32.xlu0 %v3925
      %v3927 = vpop.xlane.xlu0 %3926
      %v3928 = vsel %vm3777, %v3699, 0.0
      %3929 = vadd.xlane.f32.xlu0 %v3928
      %v3930 = vpop.xlane.xlu0 %3929
      %v3931 = vsel %vm3777, %v3700, 0.0
      %3932 = vadd.xlane.f32.xlu0 %v3931
      %v3933 = vpop.xlane.xlu0 %3932
      %v3934 = vsel %vm3777, %v3701, 0.0
      %3935 = vadd.xlane.f32.xlu0 %v3934
      %v3936 = vpop.xlane.xlu0 %3935
      %v3937 = vsel %vm3777, %v3702, 0.0
      %3938 = vadd.xlane.f32.xlu0 %v3937
      %v3939 = vpop.xlane.xlu0 %3938
      %v3940 = vsel %vm3777, %v3703, 0.0
      %3941 = vadd.xlane.f32.xlu0 %v3940
      %v3942 = vpop.xlane.xlu0 %3941
      %v3943 = vsel %vm3777, %v3704, 0.0
      %3944 = vadd.xlane.f32.xlu0 %v3943
      %v3945 = vpop.xlane.xlu0 %3944
      %v3946 = vsel %vm3777, %v3705, 0.0
      %3947 = vadd.xlane.f32.xlu0 %v3946
      %v3948 = vpop.xlane.xlu0 %3947
      %v3949 = vsel %vm3777, %v3706, 0.0
      %3950 = vadd.xlane.f32.xlu0 %v3949
      %v3951 = vpop.xlane.xlu0 %3950
      %v3952 = vsel %vm3777, %v3707, 0.0
      %3953 = vadd.xlane.f32.xlu0 %v3952
      %v3954 = vpop.xlane.xlu0 %3953
      %v3955 = vsel %vm3777, %v3708, 0.0
      %3956 = vadd.xlane.f32.xlu0 %v3955
      %v3957 = vpop.xlane.xlu0 %3956
      %v3958 = vsel %vm3777, %v3709, 0.0
      %3959 = vadd.xlane.f32.xlu0 %v3958
      %v3960 = vpop.xlane.xlu0 %3959
      %v3961 = vsel %vm3777, %v3710, 0.0
      %3962 = vadd.xlane.f32.xlu0 %v3961
      %v3963 = vpop.xlane.xlu0 %3962
      %v3964 = vsel %vm3777, %v3711, 0.0
      %3965 = vadd.xlane.f32.xlu0 %v3964
      %v3966 = vpop.xlane.xlu0 %3965
      %v3967 = vsel %vm3777, %v3712, 0.0
      %3968 = vadd.xlane.f32.xlu0 %v3967
      %v3969 = vpop.xlane.xlu0 %3968
      %v3970 = vsel %vm3777, %v3713, 0.0
      %3971 = vadd.xlane.f32.xlu0 %v3970
      %v3972 = vpop.xlane.xlu0 %3971
      %v3973 = vsel %vm3777, %v3714, 0.0
      %3974 = vadd.xlane.f32.xlu0 %v3973
      %v3975 = vpop.xlane.xlu0 %3974
      %v3976 = vsel %vm3777, %v3715, 0.0
      %3977 = vadd.xlane.f32.xlu0 %v3976
      %v3978 = vpop.xlane.xlu0 %3977
      %v3979 = vsel %vm3777, %v3716, 0.0
      %3980 = vadd.xlane.f32.xlu0 %v3979
      %v3981 = vpop.xlane.xlu0 %3980
      %v3982 = vsel %vm3777, %v3717, 0.0
      %3983 = vadd.xlane.f32.xlu0 %v3982
      %v3984 = vpop.xlane.xlu0 %3983
      %v3985 = vsel %vm3777, %v3718, 0.0
      %3986 = vadd.xlane.f32.xlu0 %v3985
      %v3987 = vpop.xlane.xlu0 %3986
      %v3988 = vsel %vm3777, %v3719, 0.0
      %3989 = vadd.xlane.f32.xlu0 %v3988
      %v3990 = vpop.xlane.xlu0 %3989
      %v3991 = vsel %vm3777, %v3720, 0.0
      %3992 = vadd.xlane.f32.xlu0 %v3991
      %v3993 = vpop.xlane.xlu0 %3992
      %v3994 = vsel %vm3777, %v3721, 0.0
      %3995 = vadd.xlane.f32.xlu0 %v3994
      %v3996 = vpop.xlane.xlu0 %3995
      %v3997 = vsel %vm3777, %v3722, 0.0
      %3998 = vadd.xlane.f32.xlu0 %v3997
      %v3999 = vpop.xlane.xlu0 %3998
      %v4000 = vsel %vm3777, %v3723, 0.0
      %4001 = vadd.xlane.f32.xlu0 %v4000
      %v4002 = vpop.xlane.xlu0 %4001
      %v4003 = vsel %vm3777, %v3724, 0.0
      %4004 = vadd.xlane.f32.xlu0 %v4003
      %v4005 = vpop.xlane.xlu0 %4004
      %v4006 = vsel %vm3777, %v3725, 0.0
      %4007 = vadd.xlane.f32.xlu0 %v4006
      %v4008 = vpop.xlane.xlu0 %4007
      %v4009 = vsel %vm3777, %v3726, 0.0
      %4010 = vadd.xlane.f32.xlu0 %v4009
      %v4011 = vpop.xlane.xlu0 %4010
      %v4012 = vsel %vm3777, %v3727, 0.0
      %4013 = vadd.xlane.f32.xlu0 %v4012
      %v4014 = vpop.xlane.xlu0 %4013
      %v4015 = vsel %vm3777, %v3728, 0.0
      %4016 = vadd.xlane.f32.xlu0 %v4015
      %v4017 = vpop.xlane.xlu0 %4016
      %v4018 = vsel %vm3777, %v3729, 0.0
      %4019 = vadd.xlane.f32.xlu0 %v4018
      %v4020 = vpop.xlane.xlu0 %4019
      %v4021 = vsel %vm3777, %v3730, 0.0
      %4022 = vadd.xlane.f32.xlu0 %v4021
      %v4023 = vpop.xlane.xlu0 %4022
      %v4024 = vsel %vm3777, %v3731, 0.0
      %4025 = vadd.xlane.f32.xlu0 %v4024
      %v4026 = vpop.xlane.xlu0 %4025
      %v4027 = vsel %vm3777, %v3732, 0.0
      %4028 = vadd.xlane.f32.xlu0 %v4027
      %v4029 = vpop.xlane.xlu0 %4028
      %v4030 = vsel %vm3777, %v3733, 0.0
      %4031 = vadd.xlane.f32.xlu0 %v4030
      %v4032 = vpop.xlane.xlu0 %4031
      %v4033 = vsel %vm3777, %v3734, 0.0
      %4034 = vadd.xlane.f32.xlu0 %v4033
      %v4035 = vpop.xlane.xlu0 %4034
      %v4036 = vsel %vm3777, %v3735, 0.0
      %4037 = vadd.xlane.f32.xlu0 %v4036
      %v4038 = vpop.xlane.xlu0 %4037
      %v4039 = vsel %vm3777, %v3736, 0.0
      %4040 = vadd.xlane.f32.xlu0 %v4039
      %v4041 = vpop.xlane.xlu0 %4040
      %v4042 = vsel %vm3777, %v3737, 0.0
      %4043 = vadd.xlane.f32.xlu0 %v4042
      %v4044 = vpop.xlane.xlu0 %4043
      %v4045 = vsel %vm3777, %v3738, 0.0
      %4046 = vadd.xlane.f32.xlu0 %v4045
      %v4047 = vpop.xlane.xlu0 %4046
      %v4048 = vsel %vm3777, %v3739, 0.0
      %4049 = vadd.xlane.f32.xlu0 %v4048
      %v4050 = vpop.xlane.xlu0 %4049
      %v4051 = vsel %vm3777, %v3740, 0.0
      %4052 = vadd.xlane.f32.xlu0 %v4051
      %v4053 = vpop.xlane.xlu0 %4052
      %v4054 = vsel %vm3777, %v3741, 0.0
      %4055 = vadd.xlane.f32.xlu0 %v4054
      %v4056 = vpop.xlane.xlu0 %4055
      %v4057 = vsel %vm3777, %v3742, 0.0
      %4058 = vadd.xlane.f32.xlu0 %v4057
      %v4059 = vpop.xlane.xlu0 %4058
      %v4060 = vsel %vm3777, %v3743, 0.0
      %4061 = vadd.xlane.f32.xlu0 %v4060
      %v4062 = vpop.xlane.xlu0 %4061
      %v4063 = vsel %vm3777, %v3744, 0.0
      %4064 = vadd.xlane.f32.xlu0 %v4063
      %v4065 = vpop.xlane.xlu0 %4064
      %v4066 = vsel %vm3777, %v3745, 0.0
      %4067 = vadd.xlane.f32.xlu0 %v4066
      %v4068 = vpop.xlane.xlu0 %4067
      %v4069 = vsel %vm3777, %v3746, 0.0
      %4070 = vadd.xlane.f32.xlu0 %v4069
      %v4071 = vpop.xlane.xlu0 %4070
      %v4072 = vsel %vm3777, %v3747, 0.0
      %4073 = vadd.xlane.f32.xlu0 %v4072
      %v4074 = vpop.xlane.xlu0 %4073
      %v4075 = vsel %vm3777, %v3748, 0.0
      %4076 = vadd.xlane.f32.xlu0 %v4075
      %v4077 = vpop.xlane.xlu0 %4076
      %v4078 = vsel %vm3777, %v3749, 0.0
      %4079 = vadd.xlane.f32.xlu0 %v4078
      %v4080 = vpop.xlane.xlu0 %4079
      %v4081 = vsel %vm3777, %v3750, 0.0
      %4082 = vadd.xlane.f32.xlu0 %v4081
      %v4083 = vpop.xlane.xlu0 %4082
      %v4084 = vsel %vm3777, %v3751, 0.0
      %4085 = vadd.xlane.f32.xlu0 %v4084
      %v4086 = vpop.xlane.xlu0 %4085
      %v4087 = vsel %vm3777, %v3752, 0.0
      %4088 = vadd.xlane.f32.xlu0 %v4087
      %v4089 = vpop.xlane.xlu0 %4088
      %v4090 = vsel %vm3777, %v3753, 0.0
      %4091 = vadd.xlane.f32.xlu0 %v4090
      %v4092 = vpop.xlane.xlu0 %4091
      %v4093 = vsel %vm3777, %v3754, 0.0
      %4094 = vadd.xlane.f32.xlu0 %v4093
      %v4095 = vpop.xlane.xlu0 %4094
      %v4096 = vsel %vm3777, %v3755, 0.0
      %4097 = vadd.xlane.f32.xlu0 %v4096
      %v4098 = vpop.xlane.xlu0 %4097
      %v4099 = vsel %vm3777, %v3756, 0.0
      %4100 = vadd.xlane.f32.xlu0 %v4099
      %v4101 = vpop.xlane.xlu0 %4100
      %v4102 = vsel %vm3777, %v3757, 0.0
      %4103 = vadd.xlane.f32.xlu0 %v4102
      %v4104 = vpop.xlane.xlu0 %4103
      %v4105 = vsel %vm3777, %v3758, 0.0
      %4106 = vadd.xlane.f32.xlu0 %v4105
      %v4107 = vpop.xlane.xlu0 %4106
      %v4108 = vsel %vm3777, %v3759, 0.0
      %4109 = vadd.xlane.f32.xlu0 %v4108
      %v4110 = vpop.xlane.xlu0 %4109
      %v4111 = vsel %vm3777, %v3760, 0.0
      %4112 = vadd.xlane.f32.xlu0 %v4111
      %v4113 = vpop.xlane.xlu0 %4112
      %v4114 = vsel %vm3777, %v3761, 0.0
      %4115 = vadd.xlane.f32.xlu0 %v4114
      %v4116 = vpop.xlane.xlu0 %4115
      %v4117 = vsel %vm3777, %v3762, 0.0
      %4118 = vadd.xlane.f32.xlu0 %v4117
      %v4119 = vpop.xlane.xlu0 %4118
      %v4120 = vsel %vm3777, %v3763, 0.0
      %4121 = vadd.xlane.f32.xlu0 %v4120
      %v4122 = vpop.xlane.xlu0 %4121
      %v4123 = vsel %vm3777, %v3764, 0.0
      %4124 = vadd.xlane.f32.xlu0 %v4123
      %v4125 = vpop.xlane.xlu0 %4124
      %v4126 = vsel %vm3777, %v3765, 0.0
      %4127 = vadd.xlane.f32.xlu0 %v4126
      %v4128 = vpop.xlane.xlu0 %4127
      %v4129 = vsel %vm3777, %v3766, 0.0
      %4130 = vadd.xlane.f32.xlu0 %v4129
      %v4131 = vpop.xlane.xlu0 %4130
      %v4132 = vsel %vm3777, %v3767, 0.0
      %4133 = vadd.xlane.f32.xlu0 %v4132
      %v4134 = vpop.xlane.xlu0 %4133
      %v4135 = vsel %vm3777, %v3768, 0.0
      %4136 = vadd.xlane.f32.xlu0 %v4135
      %v4137 = vpop.xlane.xlu0 %4136
      %v4138 = vsel %vm3777, %v3769, 0.0
      %4139 = vadd.xlane.f32.xlu0 %v4138
      %v4140 = vpop.xlane.xlu0 %4139
      %v4141 = vsel %vm3777, %v3770, 0.0
      %4142 = vadd.xlane.f32.xlu0 %v4141
      %v4143 = vpop.xlane.xlu0 %4142
      %v4144 = vsel %vm3777, %v3771, 0.0
      %4145 = vadd.xlane.f32.xlu0 %v4144
      %v4146 = vpop.xlane.xlu0 %4145
      %v4147 = vsel %vm3777, %v3772, 0.0
      %4148 = vadd.xlane.f32.xlu0 %v4147
      %v4149 = vpop.xlane.xlu0 %4148
      %v4150 = vsel %vm3777, %v3773, 0.0
      %4151 = vadd.xlane.f32.xlu0 %v4150
      %v4152 = vpop.xlane.xlu0 %4151
      %v4153 = vsel %vm3777, %v3774, 0.0
      %4154 = vadd.xlane.f32.xlu0 %v4153
      %v4155 = vpop.xlane.xlu0 %4154
      %v4156 = vsel %vm3777, %v3775, 0.0
      %4157 = vadd.xlane.f32.xlu0 %v4156
      %v4158 = vpop.xlane.xlu0 %4157
      %v4159 = vsel %vm3777, %v3776, 0.0
      %4160 = vadd.xlane.f32.xlu0 %v4159
      %v4161 = vpop.xlane.xlu0 %4160
      %v4162 = vadd.f32 %v3780, 1e-24
      %v4163 = vadd.f32 %v3783, 1e-24
      %v4164 = vadd.f32 %v3786, 1e-24
      %v4165 = vadd.f32 %v3789, 1e-24
      %v4166 = vadd.f32 %v3792, 1e-24
      %v4167 = vadd.f32 %v3795, 1e-24
      %v4168 = vadd.f32 %v3798, 1e-24
      %v4169 = vadd.f32 %v3801, 1e-24
      %v4170 = vadd.f32 %v3804, 1e-24
      %v4171 = vadd.f32 %v3807, 1e-24
      %v4172 = vadd.f32 %v3810, 1e-24
      %v4173 = vadd.f32 %v3813, 1e-24
      %v4174 = vadd.f32 %v3816, 1e-24
      %v4175 = vadd.f32 %v3819, 1e-24
      %v4176 = vadd.f32 %v3822, 1e-24
      %v4177 = vadd.f32 %v3825, 1e-24
      %v4178 = vadd.f32 %v3828, 1e-24
      %v4179 = vadd.f32 %v3831, 1e-24
      %v4180 = vadd.f32 %v3834, 1e-24
      %v4181 = vadd.f32 %v3837, 1e-24
      %v4182 = vadd.f32 %v3840, 1e-24
      %v4183 = vadd.f32 %v3843, 1e-24
      %v4184 = vadd.f32 %v3846, 1e-24
      %v4185 = vadd.f32 %v3849, 1e-24
      %v4186 = vadd.f32 %v3852, 1e-24
      %v4187 = vadd.f32 %v3855, 1e-24
      %v4188 = vadd.f32 %v3858, 1e-24
      %v4189 = vadd.f32 %v3861, 1e-24
      %v4190 = vadd.f32 %v3864, 1e-24
      %v4191 = vadd.f32 %v3867, 1e-24
      %v4192 = vadd.f32 %v3870, 1e-24
      %v4193 = vadd.f32 %v3873, 1e-24
      %v4194 = vadd.f32 %v3876, 1e-24
      %v4195 = vadd.f32 %v3879, 1e-24
      %v4196 = vadd.f32 %v3882, 1e-24
      %v4197 = vadd.f32 %v3885, 1e-24
      %v4198 = vadd.f32 %v3888, 1e-24
      %v4199 = vadd.f32 %v3891, 1e-24
      %v4200 = vadd.f32 %v3894, 1e-24
      %v4201 = vadd.f32 %v3897, 1e-24
      %v4202 = vadd.f32 %v3900, 1e-24
      %v4203 = vadd.f32 %v3903, 1e-24
      %v4204 = vadd.f32 %v3906, 1e-24
      %v4205 = vadd.f32 %v3909, 1e-24
      %v4206 = vadd.f32 %v3912, 1e-24
      %v4207 = vadd.f32 %v3915, 1e-24
      %v4208 = vadd.f32 %v3918, 1e-24
      %v4209 = vadd.f32 %v3921, 1e-24
      %v4210 = vadd.f32 %v3924, 1e-24
      %v4211 = vadd.f32 %v3927, 1e-24
      %v4212 = vadd.f32 %v3930, 1e-24
      %v4213 = vadd.f32 %v3933, 1e-24
      %v4214 = vadd.f32 %v3936, 1e-24
      %v4215 = vadd.f32 %v3939, 1e-24
      %v4216 = vadd.f32 %v3942, 1e-24
      %v4217 = vadd.f32 %v3945, 1e-24
      %v4218 = vadd.f32 %v3948, 1e-24
      %v4219 = vadd.f32 %v3951, 1e-24
      %v4220 = vadd.f32 %v3954, 1e-24
      %v4221 = vadd.f32 %v3957, 1e-24
      %v4222 = vadd.f32 %v3960, 1e-24
      %v4223 = vadd.f32 %v3963, 1e-24
      %v4224 = vadd.f32 %v3966, 1e-24
      %v4225 = vadd.f32 %v3969, 1e-24
      %v4226 = vadd.f32 %v3972, 1e-24
      %v4227 = vadd.f32 %v3975, 1e-24
      %v4228 = vadd.f32 %v3978, 1e-24
      %v4229 = vadd.f32 %v3981, 1e-24
      %v4230 = vadd.f32 %v3984, 1e-24
      %v4231 = vadd.f32 %v3987, 1e-24
      %v4232 = vadd.f32 %v3990, 1e-24
      %v4233 = vadd.f32 %v3993, 1e-24
      %v4234 = vadd.f32 %v3996, 1e-24
      %v4235 = vadd.f32 %v3999, 1e-24
      %v4236 = vadd.f32 %v4002, 1e-24
      %v4237 = vadd.f32 %v4005, 1e-24
      %v4238 = vadd.f32 %v4008, 1e-24
      %v4239 = vadd.f32 %v4011, 1e-24
      %v4240 = vadd.f32 %v4014, 1e-24
      %v4241 = vadd.f32 %v4017, 1e-24
      %v4242 = vadd.f32 %v4020, 1e-24
      %v4243 = vadd.f32 %v4023, 1e-24
      %v4244 = vadd.f32 %v4026, 1e-24
      %v4245 = vadd.f32 %v4029, 1e-24
      %v4246 = vadd.f32 %v4032, 1e-24
      %v4247 = vadd.f32 %v4035, 1e-24
      %v4248 = vadd.f32 %v4038, 1e-24
      %v4249 = vadd.f32 %v4041, 1e-24
      %v4250 = vadd.f32 %v4044, 1e-24
      %v4251 = vadd.f32 %v4047, 1e-24
      %v4252 = vadd.f32 %v4050, 1e-24
      %v4253 = vadd.f32 %v4053, 1e-24
      %v4254 = vadd.f32 %v4056, 1e-24
      %v4255 = vadd.f32 %v4059, 1e-24
      %v4256 = vadd.f32 %v4062, 1e-24
      %v4257 = vadd.f32 %v4065, 1e-24
      %v4258 = vadd.f32 %v4068, 1e-24
      %v4259 = vadd.f32 %v4071, 1e-24
      %v4260 = vadd.f32 %v4074, 1e-24
      %v4261 = vadd.f32 %v4077, 1e-24
      %v4262 = vadd.f32 %v4080, 1e-24
      %v4263 = vadd.f32 %v4083, 1e-24
      %v4264 = vadd.f32 %v4086, 1e-24
      %v4265 = vadd.f32 %v4089, 1e-24
      %v4266 = vadd.f32 %v4092, 1e-24
      %v4267 = vadd.f32 %v4095, 1e-24
      %v4268 = vadd.f32 %v4098, 1e-24
      %v4269 = vadd.f32 %v4101, 1e-24
      %v4270 = vadd.f32 %v4104, 1e-24
      %v4271 = vadd.f32 %v4107, 1e-24
      %v4272 = vadd.f32 %v4110, 1e-24
      %v4273 = vadd.f32 %v4113, 1e-24
      %v4274 = vadd.f32 %v4116, 1e-24
      %v4275 = vadd.f32 %v4119, 1e-24
      %v4276 = vadd.f32 %v4122, 1e-24
      %v4277 = vadd.f32 %v4125, 1e-24
      %v4278 = vadd.f32 %v4128, 1e-24
      %v4279 = vadd.f32 %v4131, 1e-24
      %v4280 = vadd.f32 %v4134, 1e-24
      %v4281 = vadd.f32 %v4137, 1e-24
      %v4282 = vadd.f32 %v4140, 1e-24
      %v4283 = vadd.f32 %v4143, 1e-24
      %v4284 = vadd.f32 %v4146, 1e-24
      %v4285 = vadd.f32 %v4149, 1e-24
      %v4286 = vadd.f32 %v4152, 1e-24
      %v4287 = vadd.f32 %v4155, 1e-24
      %v4288 = vadd.f32 %v4158, 1e-24
      %v4289 = vadd.f32 %v4161, 1e-24
      %v4290 = vrsqrt.pop %v4162
      %v4291 = vmul.f32 %v4290, %v4162
      %v4292 = vmul.f32 %v4291, %v4290
      %v4293 = vmul.f32 0.5, %v4292
      %v4294 = vsub.f32 1.5, %v4293
      %v4295 = vmul.f32 %v4290, %v4294
      %vm4296 = vweird.f32 %v4162
      %vm4297 = vweird.f32 %v4290
      %vm4298 = vmor %vm4296, %vm4297
      %v4299 = vsel %vm4298, %v4290, %v4295
      %v4300 = vrsqrt.pop %v4163
      %v4301 = vmul.f32 %v4300, %v4163
      %v4302 = vmul.f32 %v4301, %v4300
      %v4303 = vmul.f32 0.5, %v4302
      %v4304 = vsub.f32 1.5, %v4303
      %v4305 = vmul.f32 %v4300, %v4304
      %vm4306 = vweird.f32 %v4163
      %vm4307 = vweird.f32 %v4300
      %vm4308 = vmor %vm4306, %vm4307
      %v4309 = vsel %vm4308, %v4300, %v4305
      %v4310 = vrsqrt.pop %v4164
      %v4311 = vmul.f32 %v4310, %v4164
      %v4312 = vmul.f32 %v4311, %v4310
      %v4313 = vmul.f32 0.5, %v4312
      %v4314 = vsub.f32 1.5, %v4313
      %v4315 = vmul.f32 %v4310, %v4314
      %vm4316 = vweird.f32 %v4164
      %vm4317 = vweird.f32 %v4310
      %vm4318 = vmor %vm4316, %vm4317
      %v4319 = vsel %vm4318, %v4310, %v4315
      %v4320 = vrsqrt.pop %v4165
      %v4321 = vmul.f32 %v4320, %v4165
      %v4322 = vmul.f32 %v4321, %v4320
      %v4323 = vmul.f32 0.5, %v4322
      %v4324 = vsub.f32 1.5, %v4323
      %v4325 = vmul.f32 %v4320, %v4324
      %vm4326 = vweird.f32 %v4165
      %vm4327 = vweird.f32 %v4320
      %vm4328 = vmor %vm4326, %vm4327
      %v4329 = vsel %vm4328, %v4320, %v4325
      %v4330 = vrsqrt.pop %v4166
      %v4331 = vmul.f32 %v4330, %v4166
      %v4332 = vmul.f32 %v4331, %v4330
      %v4333 = vmul.f32 0.5, %v4332
      %v4334 = vsub.f32 1.5, %v4333
      %v4335 = vmul.f32 %v4330, %v4334
      %vm4336 = vweird.f32 %v4166
      %vm4337 = vweird.f32 %v4330
      %vm4338 = vmor %vm4336, %vm4337
      %v4339 = vsel %vm4338, %v4330, %v4335
      %v4340 = vrsqrt.pop %v4167
      %v4341 = vmul.f32 %v4340, %v4167
      %v4342 = vmul.f32 %v4341, %v4340
      %v4343 = vmul.f32 0.5, %v4342
      %v4344 = vsub.f32 1.5, %v4343
      %v4345 = vmul.f32 %v4340, %v4344
      %vm4346 = vweird.f32 %v4167
      %vm4347 = vweird.f32 %v4340
      %vm4348 = vmor %vm4346, %vm4347
      %v4349 = vsel %vm4348, %v4340, %v4345
      %v4350 = vrsqrt.pop %v4168
      %v4351 = vmul.f32 %v4350, %v4168
      %v4352 = vmul.f32 %v4351, %v4350
      %v4353 = vmul.f32 0.5, %v4352
      %v4354 = vsub.f32 1.5, %v4353
      %v4355 = vmul.f32 %v4350, %v4354
      %vm4356 = vweird.f32 %v4168
      %vm4357 = vweird.f32 %v4350
      %vm4358 = vmor %vm4356, %vm4357
      %v4359 = vsel %vm4358, %v4350, %v4355
      %v4360 = vrsqrt.pop %v4169
      %v4361 = vmul.f32 %v4360, %v4169
      %v4362 = vmul.f32 %v4361, %v4360
      %v4363 = vmul.f32 0.5, %v4362
      %v4364 = vsub.f32 1.5, %v4363
      %v4365 = vmul.f32 %v4360, %v4364
      %vm4366 = vweird.f32 %v4169
      %vm4367 = vweird.f32 %v4360
      %vm4368 = vmor %vm4366, %vm4367
      %v4369 = vsel %vm4368, %v4360, %v4365
      %v4370 = vrsqrt.pop %v4170
      %v4371 = vmul.f32 %v4370, %v4170
      %v4372 = vmul.f32 %v4371, %v4370
      %v4373 = vmul.f32 0.5, %v4372
      %v4374 = vsub.f32 1.5, %v4373
      %v4375 = vmul.f32 %v4370, %v4374
      %vm4376 = vweird.f32 %v4170
      %vm4377 = vweird.f32 %v4370
      %vm4378 = vmor %vm4376, %vm4377
      %v4379 = vsel %vm4378, %v4370, %v4375
      %v4380 = vrsqrt.pop %v4171
      %v4381 = vmul.f32 %v4380, %v4171
      %v4382 = vmul.f32 %v4381, %v4380
      %v4383 = vmul.f32 0.5, %v4382
      %v4384 = vsub.f32 1.5, %v4383
      %v4385 = vmul.f32 %v4380, %v4384
      %vm4386 = vweird.f32 %v4171
      %vm4387 = vweird.f32 %v4380
      %vm4388 = vmor %vm4386, %vm4387
      %v4389 = vsel %vm4388, %v4380, %v4385
      %v4390 = vrsqrt.pop %v4172
      %v4391 = vmul.f32 %v4390, %v4172
      %v4392 = vmul.f32 %v4391, %v4390
      %v4393 = vmul.f32 0.5, %v4392
      %v4394 = vsub.f32 1.5, %v4393
      %v4395 = vmul.f32 %v4390, %v4394
      %vm4396 = vweird.f32 %v4172
      %vm4397 = vweird.f32 %v4390
      %vm4398 = vmor %vm4396, %vm4397
      %v4399 = vsel %vm4398, %v4390, %v4395
      %v4400 = vrsqrt.pop %v4173
      %v4401 = vmul.f32 %v4400, %v4173
      %v4402 = vmul.f32 %v4401, %v4400
      %v4403 = vmul.f32 0.5, %v4402
      %v4404 = vsub.f32 1.5, %v4403
      %v4405 = vmul.f32 %v4400, %v4404
      %vm4406 = vweird.f32 %v4173
      %vm4407 = vweird.f32 %v4400
      %vm4408 = vmor %vm4406, %vm4407
      %v4409 = vsel %vm4408, %v4400, %v4405
      %v4410 = vrsqrt.pop %v4174
      %v4411 = vmul.f32 %v4410, %v4174
      %v4412 = vmul.f32 %v4411, %v4410
      %v4413 = vmul.f32 0.5, %v4412
      %v4414 = vsub.f32 1.5, %v4413
      %v4415 = vmul.f32 %v4410, %v4414
      %vm4416 = vweird.f32 %v4174
      %vm4417 = vweird.f32 %v4410
      %vm4418 = vmor %vm4416, %vm4417
      %v4419 = vsel %vm4418, %v4410, %v4415
      %v4420 = vrsqrt.pop %v4175
      %v4421 = vmul.f32 %v4420, %v4175
      %v4422 = vmul.f32 %v4421, %v4420
      %v4423 = vmul.f32 0.5, %v4422
      %v4424 = vsub.f32 1.5, %v4423
      %v4425 = vmul.f32 %v4420, %v4424
      %vm4426 = vweird.f32 %v4175
      %vm4427 = vweird.f32 %v4420
      %vm4428 = vmor %vm4426, %vm4427
      %v4429 = vsel %vm4428, %v4420, %v4425
      %v4430 = vrsqrt.pop %v4176
      %v4431 = vmul.f32 %v4430, %v4176
      %v4432 = vmul.f32 %v4431, %v4430
      %v4433 = vmul.f32 0.5, %v4432
      %v4434 = vsub.f32 1.5, %v4433
      %v4435 = vmul.f32 %v4430, %v4434
      %vm4436 = vweird.f32 %v4176
      %vm4437 = vweird.f32 %v4430
      %vm4438 = vmor %vm4436, %vm4437
      %v4439 = vsel %vm4438, %v4430, %v4435
      %v4440 = vrsqrt.pop %v4177
      %v4441 = vmul.f32 %v4440, %v4177
      %v4442 = vmul.f32 %v4441, %v4440
      %v4443 = vmul.f32 0.5, %v4442
      %v4444 = vsub.f32 1.5, %v4443
      %v4445 = vmul.f32 %v4440, %v4444
      %vm4446 = vweird.f32 %v4177
      %vm4447 = vweird.f32 %v4440
      %vm4448 = vmor %vm4446, %vm4447
      %v4449 = vsel %vm4448, %v4440, %v4445
      %v4450 = vrsqrt.pop %v4178
      %v4451 = vmul.f32 %v4450, %v4178
      %v4452 = vmul.f32 %v4451, %v4450
      %v4453 = vmul.f32 0.5, %v4452
      %v4454 = vsub.f32 1.5, %v4453
      %v4455 = vmul.f32 %v4450, %v4454
      %vm4456 = vweird.f32 %v4178
      %vm4457 = vweird.f32 %v4450
      %vm4458 = vmor %vm4456, %vm4457
      %v4459 = vsel %vm4458, %v4450, %v4455
      %v4460 = vrsqrt.pop %v4179
      %v4461 = vmul.f32 %v4460, %v4179
      %v4462 = vmul.f32 %v4461, %v4460
      %v4463 = vmul.f32 0.5, %v4462
      %v4464 = vsub.f32 1.5, %v4463
      %v4465 = vmul.f32 %v4460, %v4464
      %vm4466 = vweird.f32 %v4179
      %vm4467 = vweird.f32 %v4460
      %vm4468 = vmor %vm4466, %vm4467
      %v4469 = vsel %vm4468, %v4460, %v4465
      %v4470 = vrsqrt.pop %v4180
      %v4471 = vmul.f32 %v4470, %v4180
      %v4472 = vmul.f32 %v4471, %v4470
      %v4473 = vmul.f32 0.5, %v4472
      %v4474 = vsub.f32 1.5, %v4473
      %v4475 = vmul.f32 %v4470, %v4474
      %vm4476 = vweird.f32 %v4180
      %vm4477 = vweird.f32 %v4470
      %vm4478 = vmor %vm4476, %vm4477
      %v4479 = vsel %vm4478, %v4470, %v4475
      %v4480 = vrsqrt.pop %v4181
      %v4481 = vmul.f32 %v4480, %v4181
      %v4482 = vmul.f32 %v4481, %v4480
      %v4483 = vmul.f32 0.5, %v4482
      %v4484 = vsub.f32 1.5, %v4483
      %v4485 = vmul.f32 %v4480, %v4484
      %vm4486 = vweird.f32 %v4181
      %vm4487 = vweird.f32 %v4480
      %vm4488 = vmor %vm4486, %vm4487
      %v4489 = vsel %vm4488, %v4480, %v4485
      %v4490 = vrsqrt.pop %v4182
      %v4491 = vmul.f32 %v4490, %v4182
      %v4492 = vmul.f32 %v4491, %v4490
      %v4493 = vmul.f32 0.5, %v4492
      %v4494 = vsub.f32 1.5, %v4493
      %v4495 = vmul.f32 %v4490, %v4494
      %vm4496 = vweird.f32 %v4182
      %vm4497 = vweird.f32 %v4490
      %vm4498 = vmor %vm4496, %vm4497
      %v4499 = vsel %vm4498, %v4490, %v4495
      %v4500 = vrsqrt.pop %v4183
      %v4501 = vmul.f32 %v4500, %v4183
      %v4502 = vmul.f32 %v4501, %v4500
      %v4503 = vmul.f32 0.5, %v4502
      %v4504 = vsub.f32 1.5, %v4503
      %v4505 = vmul.f32 %v4500, %v4504
      %vm4506 = vweird.f32 %v4183
      %vm4507 = vweird.f32 %v4500
      %vm4508 = vmor %vm4506, %vm4507
      %v4509 = vsel %vm4508, %v4500, %v4505
      %v4510 = vrsqrt.pop %v4184
      %v4511 = vmul.f32 %v4510, %v4184
      %v4512 = vmul.f32 %v4511, %v4510
      %v4513 = vmul.f32 0.5, %v4512
      %v4514 = vsub.f32 1.5, %v4513
      %v4515 = vmul.f32 %v4510, %v4514
      %vm4516 = vweird.f32 %v4184
      %vm4517 = vweird.f32 %v4510
      %vm4518 = vmor %vm4516, %vm4517
      %v4519 = vsel %vm4518, %v4510, %v4515
      %v4520 = vrsqrt.pop %v4185
      %v4521 = vmul.f32 %v4520, %v4185
      %v4522 = vmul.f32 %v4521, %v4520
      %v4523 = vmul.f32 0.5, %v4522
      %v4524 = vsub.f32 1.5, %v4523
      %v4525 = vmul.f32 %v4520, %v4524
      %vm4526 = vweird.f32 %v4185
      %vm4527 = vweird.f32 %v4520
      %vm4528 = vmor %vm4526, %vm4527
      %v4529 = vsel %vm4528, %v4520, %v4525
      %v4530 = vrsqrt.pop %v4186
      %v4531 = vmul.f32 %v4530, %v4186
      %v4532 = vmul.f32 %v4531, %v4530
      %v4533 = vmul.f32 0.5, %v4532
      %v4534 = vsub.f32 1.5, %v4533
      %v4535 = vmul.f32 %v4530, %v4534
      %vm4536 = vweird.f32 %v4186
      %vm4537 = vweird.f32 %v4530
      %vm4538 = vmor %vm4536, %vm4537
      %v4539 = vsel %vm4538, %v4530, %v4535
      %v4540 = vrsqrt.pop %v4187
      %v4541 = vmul.f32 %v4540, %v4187
      %v4542 = vmul.f32 %v4541, %v4540
      %v4543 = vmul.f32 0.5, %v4542
      %v4544 = vsub.f32 1.5, %v4543
      %v4545 = vmul.f32 %v4540, %v4544
      %vm4546 = vweird.f32 %v4187
      %vm4547 = vweird.f32 %v4540
      %vm4548 = vmor %vm4546, %vm4547
      %v4549 = vsel %vm4548, %v4540, %v4545
      %v4550 = vrsqrt.pop %v4188
      %v4551 = vmul.f32 %v4550, %v4188
      %v4552 = vmul.f32 %v4551, %v4550
      %v4553 = vmul.f32 0.5, %v4552
      %v4554 = vsub.f32 1.5, %v4553
      %v4555 = vmul.f32 %v4550, %v4554
      %vm4556 = vweird.f32 %v4188
      %vm4557 = vweird.f32 %v4550
      %vm4558 = vmor %vm4556, %vm4557
      %v4559 = vsel %vm4558, %v4550, %v4555
      %v4560 = vrsqrt.pop %v4189
      %v4561 = vmul.f32 %v4560, %v4189
      %v4562 = vmul.f32 %v4561, %v4560
      %v4563 = vmul.f32 0.5, %v4562
      %v4564 = vsub.f32 1.5, %v4563
      %v4565 = vmul.f32 %v4560, %v4564
      %vm4566 = vweird.f32 %v4189
      %vm4567 = vweird.f32 %v4560
      %vm4568 = vmor %vm4566, %vm4567
      %v4569 = vsel %vm4568, %v4560, %v4565
      %v4570 = vrsqrt.pop %v4190
      %v4571 = vmul.f32 %v4570, %v4190
      %v4572 = vmul.f32 %v4571, %v4570
      %v4573 = vmul.f32 0.5, %v4572
      %v4574 = vsub.f32 1.5, %v4573
      %v4575 = vmul.f32 %v4570, %v4574
      %vm4576 = vweird.f32 %v4190
      %vm4577 = vweird.f32 %v4570
      %vm4578 = vmor %vm4576, %vm4577
      %v4579 = vsel %vm4578, %v4570, %v4575
      %v4580 = vrsqrt.pop %v4191
      %v4581 = vmul.f32 %v4580, %v4191
      %v4582 = vmul.f32 %v4581, %v4580
      %v4583 = vmul.f32 0.5, %v4582
      %v4584 = vsub.f32 1.5, %v4583
      %v4585 = vmul.f32 %v4580, %v4584
      %vm4586 = vweird.f32 %v4191
      %vm4587 = vweird.f32 %v4580
      %vm4588 = vmor %vm4586, %vm4587
      %v4589 = vsel %vm4588, %v4580, %v4585
      %v4590 = vrsqrt.pop %v4192
      %v4591 = vmul.f32 %v4590, %v4192
      %v4592 = vmul.f32 %v4591, %v4590
      %v4593 = vmul.f32 0.5, %v4592
      %v4594 = vsub.f32 1.5, %v4593
      %v4595 = vmul.f32 %v4590, %v4594
      %vm4596 = vweird.f32 %v4192
      %vm4597 = vweird.f32 %v4590
      %vm4598 = vmor %vm4596, %vm4597
      %v4599 = vsel %vm4598, %v4590, %v4595
      %v4600 = vrsqrt.pop %v4193
      %v4601 = vmul.f32 %v4600, %v4193
      %v4602 = vmul.f32 %v4601, %v4600
      %v4603 = vmul.f32 0.5, %v4602
      %v4604 = vsub.f32 1.5, %v4603
      %v4605 = vmul.f32 %v4600, %v4604
      %vm4606 = vweird.f32 %v4193
      %vm4607 = vweird.f32 %v4600
      %vm4608 = vmor %vm4606, %vm4607
      %v4609 = vsel %vm4608, %v4600, %v4605
      %v4610 = vrsqrt.pop %v4194
      %v4611 = vmul.f32 %v4610, %v4194
      %v4612 = vmul.f32 %v4611, %v4610
      %v4613 = vmul.f32 0.5, %v4612
      %v4614 = vsub.f32 1.5, %v4613
      %v4615 = vmul.f32 %v4610, %v4614
      %vm4616 = vweird.f32 %v4194
      %vm4617 = vweird.f32 %v4610
      %vm4618 = vmor %vm4616, %vm4617
      %v4619 = vsel %vm4618, %v4610, %v4615
      %v4620 = vrsqrt.pop %v4195
      %v4621 = vmul.f32 %v4620, %v4195
      %v4622 = vmul.f32 %v4621, %v4620
      %v4623 = vmul.f32 0.5, %v4622
      %v4624 = vsub.f32 1.5, %v4623
      %v4625 = vmul.f32 %v4620, %v4624
      %vm4626 = vweird.f32 %v4195
      %vm4627 = vweird.f32 %v4620
      %vm4628 = vmor %vm4626, %vm4627
      %v4629 = vsel %vm4628, %v4620, %v4625
      %v4630 = vrsqrt.pop %v4196
      %v4631 = vmul.f32 %v4630, %v4196
      %v4632 = vmul.f32 %v4631, %v4630
      %v4633 = vmul.f32 0.5, %v4632
      %v4634 = vsub.f32 1.5, %v4633
      %v4635 = vmul.f32 %v4630, %v4634
      %vm4636 = vweird.f32 %v4196
      %vm4637 = vweird.f32 %v4630
      %vm4638 = vmor %vm4636, %vm4637
      %v4639 = vsel %vm4638, %v4630, %v4635
      %v4640 = vrsqrt.pop %v4197
      %v4641 = vmul.f32 %v4640, %v4197
      %v4642 = vmul.f32 %v4641, %v4640
      %v4643 = vmul.f32 0.5, %v4642
      %v4644 = vsub.f32 1.5, %v4643
      %v4645 = vmul.f32 %v4640, %v4644
      %vm4646 = vweird.f32 %v4197
      %vm4647 = vweird.f32 %v4640
      %vm4648 = vmor %vm4646, %vm4647
      %v4649 = vsel %vm4648, %v4640, %v4645
      %v4650 = vrsqrt.pop %v4198
      %v4651 = vmul.f32 %v4650, %v4198
      %v4652 = vmul.f32 %v4651, %v4650
      %v4653 = vmul.f32 0.5, %v4652
      %v4654 = vsub.f32 1.5, %v4653
      %v4655 = vmul.f32 %v4650, %v4654
      %vm4656 = vweird.f32 %v4198
      %vm4657 = vweird.f32 %v4650
      %vm4658 = vmor %vm4656, %vm4657
      %v4659 = vsel %vm4658, %v4650, %v4655
      %v4660 = vrsqrt.pop %v4199
      %v4661 = vmul.f32 %v4660, %v4199
      %v4662 = vmul.f32 %v4661, %v4660
      %v4663 = vmul.f32 0.5, %v4662
      %v4664 = vsub.f32 1.5, %v4663
      %v4665 = vmul.f32 %v4660, %v4664
      %vm4666 = vweird.f32 %v4199
      %vm4667 = vweird.f32 %v4660
      %vm4668 = vmor %vm4666, %vm4667
      %v4669 = vsel %vm4668, %v4660, %v4665
      %v4670 = vrsqrt.pop %v4200
      %v4671 = vmul.f32 %v4670, %v4200
      %v4672 = vmul.f32 %v4671, %v4670
      %v4673 = vmul.f32 0.5, %v4672
      %v4674 = vsub.f32 1.5, %v4673
      %v4675 = vmul.f32 %v4670, %v4674
      %vm4676 = vweird.f32 %v4200
      %vm4677 = vweird.f32 %v4670
      %vm4678 = vmor %vm4676, %vm4677
      %v4679 = vsel %vm4678, %v4670, %v4675
      %v4680 = vrsqrt.pop %v4201
      %v4681 = vmul.f32 %v4680, %v4201
      %v4682 = vmul.f32 %v4681, %v4680
      %v4683 = vmul.f32 0.5, %v4682
      %v4684 = vsub.f32 1.5, %v4683
      %v4685 = vmul.f32 %v4680, %v4684
      %vm4686 = vweird.f32 %v4201
      %vm4687 = vweird.f32 %v4680
      %vm4688 = vmor %vm4686, %vm4687
      %v4689 = vsel %vm4688, %v4680, %v4685
      %v4690 = vrsqrt.pop %v4202
      %v4691 = vmul.f32 %v4690, %v4202
      %v4692 = vmul.f32 %v4691, %v4690
      %v4693 = vmul.f32 0.5, %v4692
      %v4694 = vsub.f32 1.5, %v4693
      %v4695 = vmul.f32 %v4690, %v4694
      %vm4696 = vweird.f32 %v4202
      %vm4697 = vweird.f32 %v4690
      %vm4698 = vmor %vm4696, %vm4697
      %v4699 = vsel %vm4698, %v4690, %v4695
      %v4700 = vrsqrt.pop %v4203
      %v4701 = vmul.f32 %v4700, %v4203
      %v4702 = vmul.f32 %v4701, %v4700
      %v4703 = vmul.f32 0.5, %v4702
      %v4704 = vsub.f32 1.5, %v4703
      %v4705 = vmul.f32 %v4700, %v4704
      %vm4706 = vweird.f32 %v4203
      %vm4707 = vweird.f32 %v4700
      %vm4708 = vmor %vm4706, %vm4707
      %v4709 = vsel %vm4708, %v4700, %v4705
      %v4710 = vrsqrt.pop %v4204
      %v4711 = vmul.f32 %v4710, %v4204
      %v4712 = vmul.f32 %v4711, %v4710
      %v4713 = vmul.f32 0.5, %v4712
      %v4714 = vsub.f32 1.5, %v4713
      %v4715 = vmul.f32 %v4710, %v4714
      %vm4716 = vweird.f32 %v4204
      %vm4717 = vweird.f32 %v4710
      %vm4718 = vmor %vm4716, %vm4717
      %v4719 = vsel %vm4718, %v4710, %v4715
      %v4720 = vrsqrt.pop %v4205
      %v4721 = vmul.f32 %v4720, %v4205
      %v4722 = vmul.f32 %v4721, %v4720
      %v4723 = vmul.f32 0.5, %v4722
      %v4724 = vsub.f32 1.5, %v4723
      %v4725 = vmul.f32 %v4720, %v4724
      %vm4726 = vweird.f32 %v4205
      %vm4727 = vweird.f32 %v4720
      %vm4728 = vmor %vm4726, %vm4727
      %v4729 = vsel %vm4728, %v4720, %v4725
      %v4730 = vrsqrt.pop %v4206
      %v4731 = vmul.f32 %v4730, %v4206
      %v4732 = vmul.f32 %v4731, %v4730
      %v4733 = vmul.f32 0.5, %v4732
      %v4734 = vsub.f32 1.5, %v4733
      %v4735 = vmul.f32 %v4730, %v4734
      %vm4736 = vweird.f32 %v4206
      %vm4737 = vweird.f32 %v4730
      %vm4738 = vmor %vm4736, %vm4737
      %v4739 = vsel %vm4738, %v4730, %v4735
      %v4740 = vrsqrt.pop %v4207
      %v4741 = vmul.f32 %v4740, %v4207
      %v4742 = vmul.f32 %v4741, %v4740
      %v4743 = vmul.f32 0.5, %v4742
      %v4744 = vsub.f32 1.5, %v4743
      %v4745 = vmul.f32 %v4740, %v4744
      %vm4746 = vweird.f32 %v4207
      %vm4747 = vweird.f32 %v4740
      %vm4748 = vmor %vm4746, %vm4747
      %v4749 = vsel %vm4748, %v4740, %v4745
      %v4750 = vrsqrt.pop %v4208
      %v4751 = vmul.f32 %v4750, %v4208
      %v4752 = vmul.f32 %v4751, %v4750
      %v4753 = vmul.f32 0.5, %v4752
      %v4754 = vsub.f32 1.5, %v4753
      %v4755 = vmul.f32 %v4750, %v4754
      %vm4756 = vweird.f32 %v4208
      %vm4757 = vweird.f32 %v4750
      %vm4758 = vmor %vm4756, %vm4757
      %v4759 = vsel %vm4758, %v4750, %v4755
      %v4760 = vrsqrt.pop %v4209
      %v4761 = vmul.f32 %v4760, %v4209
      %v4762 = vmul.f32 %v4761, %v4760
      %v4763 = vmul.f32 0.5, %v4762
      %v4764 = vsub.f32 1.5, %v4763
      %v4765 = vmul.f32 %v4760, %v4764
      %vm4766 = vweird.f32 %v4209
      %vm4767 = vweird.f32 %v4760
      %vm4768 = vmor %vm4766, %vm4767
      %v4769 = vsel %vm4768, %v4760, %v4765
      %v4770 = vrsqrt.pop %v4210
      %v4771 = vmul.f32 %v4770, %v4210
      %v4772 = vmul.f32 %v4771, %v4770
      %v4773 = vmul.f32 0.5, %v4772
      %v4774 = vsub.f32 1.5, %v4773
      %v4775 = vmul.f32 %v4770, %v4774
      %vm4776 = vweird.f32 %v4210
      %vm4777 = vweird.f32 %v4770
      %vm4778 = vmor %vm4776, %vm4777
      %v4779 = vsel %vm4778, %v4770, %v4775
      %v4780 = vrsqrt.pop %v4211
      %v4781 = vmul.f32 %v4780, %v4211
      %v4782 = vmul.f32 %v4781, %v4780
      %v4783 = vmul.f32 0.5, %v4782
      %v4784 = vsub.f32 1.5, %v4783
      %v4785 = vmul.f32 %v4780, %v4784
      %vm4786 = vweird.f32 %v4211
      %vm4787 = vweird.f32 %v4780
      %vm4788 = vmor %vm4786, %vm4787
      %v4789 = vsel %vm4788, %v4780, %v4785
      %v4790 = vrsqrt.pop %v4212
      %v4791 = vmul.f32 %v4790, %v4212
      %v4792 = vmul.f32 %v4791, %v4790
      %v4793 = vmul.f32 0.5, %v4792
      %v4794 = vsub.f32 1.5, %v4793
      %v4795 = vmul.f32 %v4790, %v4794
      %vm4796 = vweird.f32 %v4212
      %vm4797 = vweird.f32 %v4790
      %vm4798 = vmor %vm4796, %vm4797
      %v4799 = vsel %vm4798, %v4790, %v4795
      %v4800 = vrsqrt.pop %v4213
      %v4801 = vmul.f32 %v4800, %v4213
      %v4802 = vmul.f32 %v4801, %v4800
      %v4803 = vmul.f32 0.5, %v4802
      %v4804 = vsub.f32 1.5, %v4803
      %v4805 = vmul.f32 %v4800, %v4804
      %vm4806 = vweird.f32 %v4213
      %vm4807 = vweird.f32 %v4800
      %vm4808 = vmor %vm4806, %vm4807
      %v4809 = vsel %vm4808, %v4800, %v4805
      %v4810 = vrsqrt.pop %v4214
      %v4811 = vmul.f32 %v4810, %v4214
      %v4812 = vmul.f32 %v4811, %v4810
      %v4813 = vmul.f32 0.5, %v4812
      %v4814 = vsub.f32 1.5, %v4813
      %v4815 = vmul.f32 %v4810, %v4814
      %vm4816 = vweird.f32 %v4214
      %vm4817 = vweird.f32 %v4810
      %vm4818 = vmor %vm4816, %vm4817
      %v4819 = vsel %vm4818, %v4810, %v4815
      %v4820 = vrsqrt.pop %v4215
      %v4821 = vmul.f32 %v4820, %v4215
      %v4822 = vmul.f32 %v4821, %v4820
      %v4823 = vmul.f32 0.5, %v4822
      %v4824 = vsub.f32 1.5, %v4823
      %v4825 = vmul.f32 %v4820, %v4824
      %vm4826 = vweird.f32 %v4215
      %vm4827 = vweird.f32 %v4820
      %vm4828 = vmor %vm4826, %vm4827
      %v4829 = vsel %vm4828, %v4820, %v4825
      %v4830 = vrsqrt.pop %v4216
      %v4831 = vmul.f32 %v4830, %v4216
      %v4832 = vmul.f32 %v4831, %v4830
      %v4833 = vmul.f32 0.5, %v4832
      %v4834 = vsub.f32 1.5, %v4833
      %v4835 = vmul.f32 %v4830, %v4834
      %vm4836 = vweird.f32 %v4216
      %vm4837 = vweird.f32 %v4830
      %vm4838 = vmor %vm4836, %vm4837
      %v4839 = vsel %vm4838, %v4830, %v4835
      %v4840 = vrsqrt.pop %v4217
      %v4841 = vmul.f32 %v4840, %v4217
      %v4842 = vmul.f32 %v4841, %v4840
      %v4843 = vmul.f32 0.5, %v4842
      %v4844 = vsub.f32 1.5, %v4843
      %v4845 = vmul.f32 %v4840, %v4844
      %vm4846 = vweird.f32 %v4217
      %vm4847 = vweird.f32 %v4840
      %vm4848 = vmor %vm4846, %vm4847
      %v4849 = vsel %vm4848, %v4840, %v4845
      %v4850 = vrsqrt.pop %v4218
      %v4851 = vmul.f32 %v4850, %v4218
      %v4852 = vmul.f32 %v4851, %v4850
      %v4853 = vmul.f32 0.5, %v4852
      %v4854 = vsub.f32 1.5, %v4853
      %v4855 = vmul.f32 %v4850, %v4854
      %vm4856 = vweird.f32 %v4218
      %vm4857 = vweird.f32 %v4850
      %vm4858 = vmor %vm4856, %vm4857
      %v4859 = vsel %vm4858, %v4850, %v4855
      %v4860 = vrsqrt.pop %v4219
      %v4861 = vmul.f32 %v4860, %v4219
      %v4862 = vmul.f32 %v4861, %v4860
      %v4863 = vmul.f32 0.5, %v4862
      %v4864 = vsub.f32 1.5, %v4863
      %v4865 = vmul.f32 %v4860, %v4864
      %vm4866 = vweird.f32 %v4219
      %vm4867 = vweird.f32 %v4860
      %vm4868 = vmor %vm4866, %vm4867
      %v4869 = vsel %vm4868, %v4860, %v4865
      %v4870 = vrsqrt.pop %v4220
      %v4871 = vmul.f32 %v4870, %v4220
      %v4872 = vmul.f32 %v4871, %v4870
      %v4873 = vmul.f32 0.5, %v4872
      %v4874 = vsub.f32 1.5, %v4873
      %v4875 = vmul.f32 %v4870, %v4874
      %vm4876 = vweird.f32 %v4220
      %vm4877 = vweird.f32 %v4870
      %vm4878 = vmor %vm4876, %vm4877
      %v4879 = vsel %vm4878, %v4870, %v4875
      %v4880 = vrsqrt.pop %v4221
      %v4881 = vmul.f32 %v4880, %v4221
      %v4882 = vmul.f32 %v4881, %v4880
      %v4883 = vmul.f32 0.5, %v4882
      %v4884 = vsub.f32 1.5, %v4883
      %v4885 = vmul.f32 %v4880, %v4884
      %vm4886 = vweird.f32 %v4221
      %vm4887 = vweird.f32 %v4880
      %vm4888 = vmor %vm4886, %vm4887
      %v4889 = vsel %vm4888, %v4880, %v4885
      %v4890 = vrsqrt.pop %v4222
      %v4891 = vmul.f32 %v4890, %v4222
      %v4892 = vmul.f32 %v4891, %v4890
      %v4893 = vmul.f32 0.5, %v4892
      %v4894 = vsub.f32 1.5, %v4893
      %v4895 = vmul.f32 %v4890, %v4894
      %vm4896 = vweird.f32 %v4222
      %vm4897 = vweird.f32 %v4890
      %vm4898 = vmor %vm4896, %vm4897
      %v4899 = vsel %vm4898, %v4890, %v4895
      %v4900 = vrsqrt.pop %v4223
      %v4901 = vmul.f32 %v4900, %v4223
      %v4902 = vmul.f32 %v4901, %v4900
      %v4903 = vmul.f32 0.5, %v4902
      %v4904 = vsub.f32 1.5, %v4903
      %v4905 = vmul.f32 %v4900, %v4904
      %vm4906 = vweird.f32 %v4223
      %vm4907 = vweird.f32 %v4900
      %vm4908 = vmor %vm4906, %vm4907
      %v4909 = vsel %vm4908, %v4900, %v4905
      %v4910 = vrsqrt.pop %v4224
      %v4911 = vmul.f32 %v4910, %v4224
      %v4912 = vmul.f32 %v4911, %v4910
      %v4913 = vmul.f32 0.5, %v4912
      %v4914 = vsub.f32 1.5, %v4913
      %v4915 = vmul.f32 %v4910, %v4914
      %vm4916 = vweird.f32 %v4224
      %vm4917 = vweird.f32 %v4910
      %vm4918 = vmor %vm4916, %vm4917
      %v4919 = vsel %vm4918, %v4910, %v4915
      %v4920 = vrsqrt.pop %v4225
      %v4921 = vmul.f32 %v4920, %v4225
      %v4922 = vmul.f32 %v4921, %v4920
      %v4923 = vmul.f32 0.5, %v4922
      %v4924 = vsub.f32 1.5, %v4923
      %v4925 = vmul.f32 %v4920, %v4924
      %vm4926 = vweird.f32 %v4225
      %vm4927 = vweird.f32 %v4920
      %vm4928 = vmor %vm4926, %vm4927
      %v4929 = vsel %vm4928, %v4920, %v4925
      %v4930 = vrsqrt.pop %v4226
      %v4931 = vmul.f32 %v4930, %v4226
      %v4932 = vmul.f32 %v4931, %v4930
      %v4933 = vmul.f32 0.5, %v4932
      %v4934 = vsub.f32 1.5, %v4933
      %v4935 = vmul.f32 %v4930, %v4934
      %vm4936 = vweird.f32 %v4226
      %vm4937 = vweird.f32 %v4930
      %vm4938 = vmor %vm4936, %vm4937
      %v4939 = vsel %vm4938, %v4930, %v4935
      %v4940 = vrsqrt.pop %v4227
      %v4941 = vmul.f32 %v4940, %v4227
      %v4942 = vmul.f32 %v4941, %v4940
      %v4943 = vmul.f32 0.5, %v4942
      %v4944 = vsub.f32 1.5, %v4943
      %v4945 = vmul.f32 %v4940, %v4944
      %vm4946 = vweird.f32 %v4227
      %vm4947 = vweird.f32 %v4940
      %vm4948 = vmor %vm4946, %vm4947
      %v4949 = vsel %vm4948, %v4940, %v4945
      %v4950 = vrsqrt.pop %v4228
      %v4951 = vmul.f32 %v4950, %v4228
      %v4952 = vmul.f32 %v4951, %v4950
      %v4953 = vmul.f32 0.5, %v4952
      %v4954 = vsub.f32 1.5, %v4953
      %v4955 = vmul.f32 %v4950, %v4954
      %vm4956 = vweird.f32 %v4228
      %vm4957 = vweird.f32 %v4950
      %vm4958 = vmor %vm4956, %vm4957
      %v4959 = vsel %vm4958, %v4950, %v4955
      %v4960 = vrsqrt.pop %v4229
      %v4961 = vmul.f32 %v4960, %v4229
      %v4962 = vmul.f32 %v4961, %v4960
      %v4963 = vmul.f32 0.5, %v4962
      %v4964 = vsub.f32 1.5, %v4963
      %v4965 = vmul.f32 %v4960, %v4964
      %vm4966 = vweird.f32 %v4229
      %vm4967 = vweird.f32 %v4960
      %vm4968 = vmor %vm4966, %vm4967
      %v4969 = vsel %vm4968, %v4960, %v4965
      %v4970 = vrsqrt.pop %v4230
      %v4971 = vmul.f32 %v4970, %v4230
      %v4972 = vmul.f32 %v4971, %v4970
      %v4973 = vmul.f32 0.5, %v4972
      %v4974 = vsub.f32 1.5, %v4973
      %v4975 = vmul.f32 %v4970, %v4974
      %vm4976 = vweird.f32 %v4230
      %vm4977 = vweird.f32 %v4970
      %vm4978 = vmor %vm4976, %vm4977
      %v4979 = vsel %vm4978, %v4970, %v4975
      %v4980 = vrsqrt.pop %v4231
      %v4981 = vmul.f32 %v4980, %v4231
      %v4982 = vmul.f32 %v4981, %v4980
      %v4983 = vmul.f32 0.5, %v4982
      %v4984 = vsub.f32 1.5, %v4983
      %v4985 = vmul.f32 %v4980, %v4984
      %vm4986 = vweird.f32 %v4231
      %vm4987 = vweird.f32 %v4980
      %vm4988 = vmor %vm4986, %vm4987
      %v4989 = vsel %vm4988, %v4980, %v4985
      %v4990 = vrsqrt.pop %v4232
      %v4991 = vmul.f32 %v4990, %v4232
      %v4992 = vmul.f32 %v4991, %v4990
      %v4993 = vmul.f32 0.5, %v4992
      %v4994 = vsub.f32 1.5, %v4993
      %v4995 = vmul.f32 %v4990, %v4994
      %vm4996 = vweird.f32 %v4232
      %vm4997 = vweird.f32 %v4990
      %vm4998 = vmor %vm4996, %vm4997
      %v4999 = vsel %vm4998, %v4990, %v4995
      %v5000 = vrsqrt.pop %v4233
      %v5001 = vmul.f32 %v5000, %v4233
      %v5002 = vmul.f32 %v5001, %v5000
      %v5003 = vmul.f32 0.5, %v5002
      %v5004 = vsub.f32 1.5, %v5003
      %v5005 = vmul.f32 %v5000, %v5004
      %vm5006 = vweird.f32 %v4233
      %vm5007 = vweird.f32 %v5000
      %vm5008 = vmor %vm5006, %vm5007
      %v5009 = vsel %vm5008, %v5000, %v5005
      %v5010 = vrsqrt.pop %v4234
      %v5011 = vmul.f32 %v5010, %v4234
      %v5012 = vmul.f32 %v5011, %v5010
      %v5013 = vmul.f32 0.5, %v5012
      %v5014 = vsub.f32 1.5, %v5013
      %v5015 = vmul.f32 %v5010, %v5014
      %vm5016 = vweird.f32 %v4234
      %vm5017 = vweird.f32 %v5010
      %vm5018 = vmor %vm5016, %vm5017
      %v5019 = vsel %vm5018, %v5010, %v5015
      %v5020 = vrsqrt.pop %v4235
      %v5021 = vmul.f32 %v5020, %v4235
      %v5022 = vmul.f32 %v5021, %v5020
      %v5023 = vmul.f32 0.5, %v5022
      %v5024 = vsub.f32 1.5, %v5023
      %v5025 = vmul.f32 %v5020, %v5024
      %vm5026 = vweird.f32 %v4235
      %vm5027 = vweird.f32 %v5020
      %vm5028 = vmor %vm5026, %vm5027
      %v5029 = vsel %vm5028, %v5020, %v5025
      %v5030 = vrsqrt.pop %v4236
      %v5031 = vmul.f32 %v5030, %v4236
      %v5032 = vmul.f32 %v5031, %v5030
      %v5033 = vmul.f32 0.5, %v5032
      %v5034 = vsub.f32 1.5, %v5033
      %v5035 = vmul.f32 %v5030, %v5034
      %vm5036 = vweird.f32 %v4236
      %vm5037 = vweird.f32 %v5030
      %vm5038 = vmor %vm5036, %vm5037
      %v5039 = vsel %vm5038, %v5030, %v5035
      %v5040 = vrsqrt.pop %v4237
      %v5041 = vmul.f32 %v5040, %v4237
      %v5042 = vmul.f32 %v5041, %v5040
      %v5043 = vmul.f32 0.5, %v5042
      %v5044 = vsub.f32 1.5, %v5043
      %v5045 = vmul.f32 %v5040, %v5044
      %vm5046 = vweird.f32 %v4237
      %vm5047 = vweird.f32 %v5040
      %vm5048 = vmor %vm5046, %vm5047
      %v5049 = vsel %vm5048, %v5040, %v5045
      %v5050 = vrsqrt.pop %v4238
      %v5051 = vmul.f32 %v5050, %v4238
      %v5052 = vmul.f32 %v5051, %v5050
      %v5053 = vmul.f32 0.5, %v5052
      %v5054 = vsub.f32 1.5, %v5053
      %v5055 = vmul.f32 %v5050, %v5054
      %vm5056 = vweird.f32 %v4238
      %vm5057 = vweird.f32 %v5050
      %vm5058 = vmor %vm5056, %vm5057
      %v5059 = vsel %vm5058, %v5050, %v5055
      %v5060 = vrsqrt.pop %v4239
      %v5061 = vmul.f32 %v5060, %v4239
      %v5062 = vmul.f32 %v5061, %v5060
      %v5063 = vmul.f32 0.5, %v5062
      %v5064 = vsub.f32 1.5, %v5063
      %v5065 = vmul.f32 %v5060, %v5064
      %vm5066 = vweird.f32 %v4239
      %vm5067 = vweird.f32 %v5060
      %vm5068 = vmor %vm5066, %vm5067
      %v5069 = vsel %vm5068, %v5060, %v5065
      %v5070 = vrsqrt.pop %v4240
      %v5071 = vmul.f32 %v5070, %v4240
      %v5072 = vmul.f32 %v5071, %v5070
      %v5073 = vmul.f32 0.5, %v5072
      %v5074 = vsub.f32 1.5, %v5073
      %v5075 = vmul.f32 %v5070, %v5074
      %vm5076 = vweird.f32 %v4240
      %vm5077 = vweird.f32 %v5070
      %vm5078 = vmor %vm5076, %vm5077
      %v5079 = vsel %vm5078, %v5070, %v5075
      %v5080 = vrsqrt.pop %v4241
      %v5081 = vmul.f32 %v5080, %v4241
      %v5082 = vmul.f32 %v5081, %v5080
      %v5083 = vmul.f32 0.5, %v5082
      %v5084 = vsub.f32 1.5, %v5083
      %v5085 = vmul.f32 %v5080, %v5084
      %vm5086 = vweird.f32 %v4241
      %vm5087 = vweird.f32 %v5080
      %vm5088 = vmor %vm5086, %vm5087
      %v5089 = vsel %vm5088, %v5080, %v5085
      %v5090 = vrsqrt.pop %v4242
      %v5091 = vmul.f32 %v5090, %v4242
      %v5092 = vmul.f32 %v5091, %v5090
      %v5093 = vmul.f32 0.5, %v5092
      %v5094 = vsub.f32 1.5, %v5093
      %v5095 = vmul.f32 %v5090, %v5094
      %vm5096 = vweird.f32 %v4242
      %vm5097 = vweird.f32 %v5090
      %vm5098 = vmor %vm5096, %vm5097
      %v5099 = vsel %vm5098, %v5090, %v5095
      %v5100 = vrsqrt.pop %v4243
      %v5101 = vmul.f32 %v5100, %v4243
      %v5102 = vmul.f32 %v5101, %v5100
      %v5103 = vmul.f32 0.5, %v5102
      %v5104 = vsub.f32 1.5, %v5103
      %v5105 = vmul.f32 %v5100, %v5104
      %vm5106 = vweird.f32 %v4243
      %vm5107 = vweird.f32 %v5100
      %vm5108 = vmor %vm5106, %vm5107
      %v5109 = vsel %vm5108, %v5100, %v5105
      %v5110 = vrsqrt.pop %v4244
      %v5111 = vmul.f32 %v5110, %v4244
      %v5112 = vmul.f32 %v5111, %v5110
      %v5113 = vmul.f32 0.5, %v5112
      %v5114 = vsub.f32 1.5, %v5113
      %v5115 = vmul.f32 %v5110, %v5114
      %vm5116 = vweird.f32 %v4244
      %vm5117 = vweird.f32 %v5110
      %vm5118 = vmor %vm5116, %vm5117
      %v5119 = vsel %vm5118, %v5110, %v5115
      %v5120 = vrsqrt.pop %v4245
      %v5121 = vmul.f32 %v5120, %v4245
      %v5122 = vmul.f32 %v5121, %v5120
      %v5123 = vmul.f32 0.5, %v5122
      %v5124 = vsub.f32 1.5, %v5123
      %v5125 = vmul.f32 %v5120, %v5124
      %vm5126 = vweird.f32 %v4245
      %vm5127 = vweird.f32 %v5120
      %vm5128 = vmor %vm5126, %vm5127
      %v5129 = vsel %vm5128, %v5120, %v5125
      %v5130 = vrsqrt.pop %v4246
      %v5131 = vmul.f32 %v5130, %v4246
      %v5132 = vmul.f32 %v5131, %v5130
      %v5133 = vmul.f32 0.5, %v5132
      %v5134 = vsub.f32 1.5, %v5133
      %v5135 = vmul.f32 %v5130, %v5134
      %vm5136 = vweird.f32 %v4246
      %vm5137 = vweird.f32 %v5130
      %vm5138 = vmor %vm5136, %vm5137
      %v5139 = vsel %vm5138, %v5130, %v5135
      %v5140 = vrsqrt.pop %v4247
      %v5141 = vmul.f32 %v5140, %v4247
      %v5142 = vmul.f32 %v5141, %v5140
      %v5143 = vmul.f32 0.5, %v5142
      %v5144 = vsub.f32 1.5, %v5143
      %v5145 = vmul.f32 %v5140, %v5144
      %vm5146 = vweird.f32 %v4247
      %vm5147 = vweird.f32 %v5140
      %vm5148 = vmor %vm5146, %vm5147
      %v5149 = vsel %vm5148, %v5140, %v5145
      %v5150 = vrsqrt.pop %v4248
      %v5151 = vmul.f32 %v5150, %v4248
      %v5152 = vmul.f32 %v5151, %v5150
      %v5153 = vmul.f32 0.5, %v5152
      %v5154 = vsub.f32 1.5, %v5153
      %v5155 = vmul.f32 %v5150, %v5154
      %vm5156 = vweird.f32 %v4248
      %vm5157 = vweird.f32 %v5150
      %vm5158 = vmor %vm5156, %vm5157
      %v5159 = vsel %vm5158, %v5150, %v5155
      %v5160 = vrsqrt.pop %v4249
      %v5161 = vmul.f32 %v5160, %v4249
      %v5162 = vmul.f32 %v5161, %v5160
      %v5163 = vmul.f32 0.5, %v5162
      %v5164 = vsub.f32 1.5, %v5163
      %v5165 = vmul.f32 %v5160, %v5164
      %vm5166 = vweird.f32 %v4249
      %vm5167 = vweird.f32 %v5160
      %vm5168 = vmor %vm5166, %vm5167
      %v5169 = vsel %vm5168, %v5160, %v5165
      %v5170 = vrsqrt.pop %v4250
      %v5171 = vmul.f32 %v5170, %v4250
      %v5172 = vmul.f32 %v5171, %v5170
      %v5173 = vmul.f32 0.5, %v5172
      %v5174 = vsub.f32 1.5, %v5173
      %v5175 = vmul.f32 %v5170, %v5174
      %vm5176 = vweird.f32 %v4250
      %vm5177 = vweird.f32 %v5170
      %vm5178 = vmor %vm5176, %vm5177
      %v5179 = vsel %vm5178, %v5170, %v5175
      %v5180 = vrsqrt.pop %v4251
      %v5181 = vmul.f32 %v5180, %v4251
      %v5182 = vmul.f32 %v5181, %v5180
      %v5183 = vmul.f32 0.5, %v5182
      %v5184 = vsub.f32 1.5, %v5183
      %v5185 = vmul.f32 %v5180, %v5184
      %vm5186 = vweird.f32 %v4251
      %vm5187 = vweird.f32 %v5180
      %vm5188 = vmor %vm5186, %vm5187
      %v5189 = vsel %vm5188, %v5180, %v5185
      %v5190 = vrsqrt.pop %v4252
      %v5191 = vmul.f32 %v5190, %v4252
      %v5192 = vmul.f32 %v5191, %v5190
      %v5193 = vmul.f32 0.5, %v5192
      %v5194 = vsub.f32 1.5, %v5193
      %v5195 = vmul.f32 %v5190, %v5194
      %vm5196 = vweird.f32 %v4252
      %vm5197 = vweird.f32 %v5190
      %vm5198 = vmor %vm5196, %vm5197
      %v5199 = vsel %vm5198, %v5190, %v5195
      %v5200 = vrsqrt.pop %v4253
      %v5201 = vmul.f32 %v5200, %v4253
      %v5202 = vmul.f32 %v5201, %v5200
      %v5203 = vmul.f32 0.5, %v5202
      %v5204 = vsub.f32 1.5, %v5203
      %v5205 = vmul.f32 %v5200, %v5204
      %vm5206 = vweird.f32 %v4253
      %vm5207 = vweird.f32 %v5200
      %vm5208 = vmor %vm5206, %vm5207
      %v5209 = vsel %vm5208, %v5200, %v5205
      %v5210 = vrsqrt.pop %v4254
      %v5211 = vmul.f32 %v5210, %v4254
      %v5212 = vmul.f32 %v5211, %v5210
      %v5213 = vmul.f32 0.5, %v5212
      %v5214 = vsub.f32 1.5, %v5213
      %v5215 = vmul.f32 %v5210, %v5214
      %vm5216 = vweird.f32 %v4254
      %vm5217 = vweird.f32 %v5210
      %vm5218 = vmor %vm5216, %vm5217
      %v5219 = vsel %vm5218, %v5210, %v5215
      %v5220 = vrsqrt.pop %v4255
      %v5221 = vmul.f32 %v5220, %v4255
      %v5222 = vmul.f32 %v5221, %v5220
      %v5223 = vmul.f32 0.5, %v5222
      %v5224 = vsub.f32 1.5, %v5223
      %v5225 = vmul.f32 %v5220, %v5224
      %vm5226 = vweird.f32 %v4255
      %vm5227 = vweird.f32 %v5220
      %vm5228 = vmor %vm5226, %vm5227
      %v5229 = vsel %vm5228, %v5220, %v5225
      %v5230 = vrsqrt.pop %v4256
      %v5231 = vmul.f32 %v5230, %v4256
      %v5232 = vmul.f32 %v5231, %v5230
      %v5233 = vmul.f32 0.5, %v5232
      %v5234 = vsub.f32 1.5, %v5233
      %v5235 = vmul.f32 %v5230, %v5234
      %vm5236 = vweird.f32 %v4256
      %vm5237 = vweird.f32 %v5230
      %vm5238 = vmor %vm5236, %vm5237
      %v5239 = vsel %vm5238, %v5230, %v5235
      %v5240 = vrsqrt.pop %v4257
      %v5241 = vmul.f32 %v5240, %v4257
      %v5242 = vmul.f32 %v5241, %v5240
      %v5243 = vmul.f32 0.5, %v5242
      %v5244 = vsub.f32 1.5, %v5243
      %v5245 = vmul.f32 %v5240, %v5244
      %vm5246 = vweird.f32 %v4257
      %vm5247 = vweird.f32 %v5240
      %vm5248 = vmor %vm5246, %vm5247
      %v5249 = vsel %vm5248, %v5240, %v5245
      %v5250 = vrsqrt.pop %v4258
      %v5251 = vmul.f32 %v5250, %v4258
      %v5252 = vmul.f32 %v5251, %v5250
      %v5253 = vmul.f32 0.5, %v5252
      %v5254 = vsub.f32 1.5, %v5253
      %v5255 = vmul.f32 %v5250, %v5254
      %vm5256 = vweird.f32 %v4258
      %vm5257 = vweird.f32 %v5250
      %vm5258 = vmor %vm5256, %vm5257
      %v5259 = vsel %vm5258, %v5250, %v5255
      %v5260 = vrsqrt.pop %v4259
      %v5261 = vmul.f32 %v5260, %v4259
      %v5262 = vmul.f32 %v5261, %v5260
      %v5263 = vmul.f32 0.5, %v5262
      %v5264 = vsub.f32 1.5, %v5263
      %v5265 = vmul.f32 %v5260, %v5264
      %vm5266 = vweird.f32 %v4259
      %vm5267 = vweird.f32 %v5260
      %vm5268 = vmor %vm5266, %vm5267
      %v5269 = vsel %vm5268, %v5260, %v5265
      %v5270 = vrsqrt.pop %v4260
      %v5271 = vmul.f32 %v5270, %v4260
      %v5272 = vmul.f32 %v5271, %v5270
      %v5273 = vmul.f32 0.5, %v5272
      %v5274 = vsub.f32 1.5, %v5273
      %v5275 = vmul.f32 %v5270, %v5274
      %vm5276 = vweird.f32 %v4260
      %vm5277 = vweird.f32 %v5270
      %vm5278 = vmor %vm5276, %vm5277
      %v5279 = vsel %vm5278, %v5270, %v5275
      %v5280 = vrsqrt.pop %v4261
      %v5281 = vmul.f32 %v5280, %v4261
      %v5282 = vmul.f32 %v5281, %v5280
      %v5283 = vmul.f32 0.5, %v5282
      %v5284 = vsub.f32 1.5, %v5283
      %v5285 = vmul.f32 %v5280, %v5284
      %vm5286 = vweird.f32 %v4261
      %vm5287 = vweird.f32 %v5280
      %vm5288 = vmor %vm5286, %vm5287
      %v5289 = vsel %vm5288, %v5280, %v5285
      %v5290 = vrsqrt.pop %v4262
      %v5291 = vmul.f32 %v5290, %v4262
      %v5292 = vmul.f32 %v5291, %v5290
      %v5293 = vmul.f32 0.5, %v5292
      %v5294 = vsub.f32 1.5, %v5293
      %v5295 = vmul.f32 %v5290, %v5294
      %vm5296 = vweird.f32 %v4262
      %vm5297 = vweird.f32 %v5290
      %vm5298 = vmor %vm5296, %vm5297
      %v5299 = vsel %vm5298, %v5290, %v5295
      %v5300 = vrsqrt.pop %v4263
      %v5301 = vmul.f32 %v5300, %v4263
      %v5302 = vmul.f32 %v5301, %v5300
      %v5303 = vmul.f32 0.5, %v5302
      %v5304 = vsub.f32 1.5, %v5303
      %v5305 = vmul.f32 %v5300, %v5304
      %vm5306 = vweird.f32 %v4263
      %vm5307 = vweird.f32 %v5300
      %vm5308 = vmor %vm5306, %vm5307
      %v5309 = vsel %vm5308, %v5300, %v5305
      %v5310 = vrsqrt.pop %v4264
      %v5311 = vmul.f32 %v5310, %v4264
      %v5312 = vmul.f32 %v5311, %v5310
      %v5313 = vmul.f32 0.5, %v5312
      %v5314 = vsub.f32 1.5, %v5313
      %v5315 = vmul.f32 %v5310, %v5314
      %vm5316 = vweird.f32 %v4264
      %vm5317 = vweird.f32 %v5310
      %vm5318 = vmor %vm5316, %vm5317
      %v5319 = vsel %vm5318, %v5310, %v5315
      %v5320 = vrsqrt.pop %v4265
      %v5321 = vmul.f32 %v5320, %v4265
      %v5322 = vmul.f32 %v5321, %v5320
      %v5323 = vmul.f32 0.5, %v5322
      %v5324 = vsub.f32 1.5, %v5323
      %v5325 = vmul.f32 %v5320, %v5324
      %vm5326 = vweird.f32 %v4265
      %vm5327 = vweird.f32 %v5320
      %vm5328 = vmor %vm5326, %vm5327
      %v5329 = vsel %vm5328, %v5320, %v5325
      %v5330 = vrsqrt.pop %v4266
      %v5331 = vmul.f32 %v5330, %v4266
      %v5332 = vmul.f32 %v5331, %v5330
      %v5333 = vmul.f32 0.5, %v5332
      %v5334 = vsub.f32 1.5, %v5333
      %v5335 = vmul.f32 %v5330, %v5334
      %vm5336 = vweird.f32 %v4266
      %vm5337 = vweird.f32 %v5330
      %vm5338 = vmor %vm5336, %vm5337
      %v5339 = vsel %vm5338, %v5330, %v5335
      %v5340 = vrsqrt.pop %v4267
      %v5341 = vmul.f32 %v5340, %v4267
      %v5342 = vmul.f32 %v5341, %v5340
      %v5343 = vmul.f32 0.5, %v5342
      %v5344 = vsub.f32 1.5, %v5343
      %v5345 = vmul.f32 %v5340, %v5344
      %vm5346 = vweird.f32 %v4267
      %vm5347 = vweird.f32 %v5340
      %vm5348 = vmor %vm5346, %vm5347
      %v5349 = vsel %vm5348, %v5340, %v5345
      %v5350 = vrsqrt.pop %v4268
      %v5351 = vmul.f32 %v5350, %v4268
      %v5352 = vmul.f32 %v5351, %v5350
      %v5353 = vmul.f32 0.5, %v5352
      %v5354 = vsub.f32 1.5, %v5353
      %v5355 = vmul.f32 %v5350, %v5354
      %vm5356 = vweird.f32 %v4268
      %vm5357 = vweird.f32 %v5350
      %vm5358 = vmor %vm5356, %vm5357
      %v5359 = vsel %vm5358, %v5350, %v5355
      %v5360 = vrsqrt.pop %v4269
      %v5361 = vmul.f32 %v5360, %v4269
      %v5362 = vmul.f32 %v5361, %v5360
      %v5363 = vmul.f32 0.5, %v5362
      %v5364 = vsub.f32 1.5, %v5363
      %v5365 = vmul.f32 %v5360, %v5364
      %vm5366 = vweird.f32 %v4269
      %vm5367 = vweird.f32 %v5360
      %vm5368 = vmor %vm5366, %vm5367
      %v5369 = vsel %vm5368, %v5360, %v5365
      %v5370 = vrsqrt.pop %v4270
      %v5371 = vmul.f32 %v5370, %v4270
      %v5372 = vmul.f32 %v5371, %v5370
      %v5373 = vmul.f32 0.5, %v5372
      %v5374 = vsub.f32 1.5, %v5373
      %v5375 = vmul.f32 %v5370, %v5374
      %vm5376 = vweird.f32 %v4270
      %vm5377 = vweird.f32 %v5370
      %vm5378 = vmor %vm5376, %vm5377
      %v5379 = vsel %vm5378, %v5370, %v5375
      %v5380 = vrsqrt.pop %v4271
      %v5381 = vmul.f32 %v5380, %v4271
      %v5382 = vmul.f32 %v5381, %v5380
      %v5383 = vmul.f32 0.5, %v5382
      %v5384 = vsub.f32 1.5, %v5383
      %v5385 = vmul.f32 %v5380, %v5384
      %vm5386 = vweird.f32 %v4271
      %vm5387 = vweird.f32 %v5380
      %vm5388 = vmor %vm5386, %vm5387
      %v5389 = vsel %vm5388, %v5380, %v5385
      %v5390 = vrsqrt.pop %v4272
      %v5391 = vmul.f32 %v5390, %v4272
      %v5392 = vmul.f32 %v5391, %v5390
      %v5393 = vmul.f32 0.5, %v5392
      %v5394 = vsub.f32 1.5, %v5393
      %v5395 = vmul.f32 %v5390, %v5394
      %vm5396 = vweird.f32 %v4272
      %vm5397 = vweird.f32 %v5390
      %vm5398 = vmor %vm5396, %vm5397
      %v5399 = vsel %vm5398, %v5390, %v5395
      %v5400 = vrsqrt.pop %v4273
      %v5401 = vmul.f32 %v5400, %v4273
      %v5402 = vmul.f32 %v5401, %v5400
      %v5403 = vmul.f32 0.5, %v5402
      %v5404 = vsub.f32 1.5, %v5403
      %v5405 = vmul.f32 %v5400, %v5404
      %vm5406 = vweird.f32 %v4273
      %vm5407 = vweird.f32 %v5400
      %vm5408 = vmor %vm5406, %vm5407
      %v5409 = vsel %vm5408, %v5400, %v5405
      %v5410 = vrsqrt.pop %v4274
      %v5411 = vmul.f32 %v5410, %v4274
      %v5412 = vmul.f32 %v5411, %v5410
      %v5413 = vmul.f32 0.5, %v5412
      %v5414 = vsub.f32 1.5, %v5413
      %v5415 = vmul.f32 %v5410, %v5414
      %vm5416 = vweird.f32 %v4274
      %vm5417 = vweird.f32 %v5410
      %vm5418 = vmor %vm5416, %vm5417
      %v5419 = vsel %vm5418, %v5410, %v5415
      %v5420 = vrsqrt.pop %v4275
      %v5421 = vmul.f32 %v5420, %v4275
      %v5422 = vmul.f32 %v5421, %v5420
      %v5423 = vmul.f32 0.5, %v5422
      %v5424 = vsub.f32 1.5, %v5423
      %v5425 = vmul.f32 %v5420, %v5424
      %vm5426 = vweird.f32 %v4275
      %vm5427 = vweird.f32 %v5420
      %vm5428 = vmor %vm5426, %vm5427
      %v5429 = vsel %vm5428, %v5420, %v5425
      %v5430 = vrsqrt.pop %v4276
      %v5431 = vmul.f32 %v5430, %v4276
      %v5432 = vmul.f32 %v5431, %v5430
      %v5433 = vmul.f32 0.5, %v5432
      %v5434 = vsub.f32 1.5, %v5433
      %v5435 = vmul.f32 %v5430, %v5434
      %vm5436 = vweird.f32 %v4276
      %vm5437 = vweird.f32 %v5430
      %vm5438 = vmor %vm5436, %vm5437
      %v5439 = vsel %vm5438, %v5430, %v5435
      %v5440 = vrsqrt.pop %v4277
      %v5441 = vmul.f32 %v5440, %v4277
      %v5442 = vmul.f32 %v5441, %v5440
      %v5443 = vmul.f32 0.5, %v5442
      %v5444 = vsub.f32 1.5, %v5443
      %v5445 = vmul.f32 %v5440, %v5444
      %vm5446 = vweird.f32 %v4277
      %vm5447 = vweird.f32 %v5440
      %vm5448 = vmor %vm5446, %vm5447
      %v5449 = vsel %vm5448, %v5440, %v5445
      %v5450 = vrsqrt.pop %v4278
      %v5451 = vmul.f32 %v5450, %v4278
      %v5452 = vmul.f32 %v5451, %v5450
      %v5453 = vmul.f32 0.5, %v5452
      %v5454 = vsub.f32 1.5, %v5453
      %v5455 = vmul.f32 %v5450, %v5454
      %vm5456 = vweird.f32 %v4278
      %vm5457 = vweird.f32 %v5450
      %vm5458 = vmor %vm5456, %vm5457
      %v5459 = vsel %vm5458, %v5450, %v5455
      %v5460 = vrsqrt.pop %v4279
      %v5461 = vmul.f32 %v5460, %v4279
      %v5462 = vmul.f32 %v5461, %v5460
      %v5463 = vmul.f32 0.5, %v5462
      %v5464 = vsub.f32 1.5, %v5463
      %v5465 = vmul.f32 %v5460, %v5464
      %vm5466 = vweird.f32 %v4279
      %vm5467 = vweird.f32 %v5460
      %vm5468 = vmor %vm5466, %vm5467
      %v5469 = vsel %vm5468, %v5460, %v5465
      %v5470 = vrsqrt.pop %v4280
      %v5471 = vmul.f32 %v5470, %v4280
      %v5472 = vmul.f32 %v5471, %v5470
      %v5473 = vmul.f32 0.5, %v5472
      %v5474 = vsub.f32 1.5, %v5473
      %v5475 = vmul.f32 %v5470, %v5474
      %vm5476 = vweird.f32 %v4280
      %vm5477 = vweird.f32 %v5470
      %vm5478 = vmor %vm5476, %vm5477
      %v5479 = vsel %vm5478, %v5470, %v5475
      %v5480 = vrsqrt.pop %v4281
      %v5481 = vmul.f32 %v5480, %v4281
      %v5482 = vmul.f32 %v5481, %v5480
      %v5483 = vmul.f32 0.5, %v5482
      %v5484 = vsub.f32 1.5, %v5483
      %v5485 = vmul.f32 %v5480, %v5484
      %vm5486 = vweird.f32 %v4281
      %vm5487 = vweird.f32 %v5480
      %vm5488 = vmor %vm5486, %vm5487
      %v5489 = vsel %vm5488, %v5480, %v5485
      %v5490 = vrsqrt.pop %v4282
      %v5491 = vmul.f32 %v5490, %v4282
      %v5492 = vmul.f32 %v5491, %v5490
      %v5493 = vmul.f32 0.5, %v5492
      %v5494 = vsub.f32 1.5, %v5493
      %v5495 = vmul.f32 %v5490, %v5494
      %vm5496 = vweird.f32 %v4282
      %vm5497 = vweird.f32 %v5490
      %vm5498 = vmor %vm5496, %vm5497
      %v5499 = vsel %vm5498, %v5490, %v5495
      %v5500 = vrsqrt.pop %v4283
      %v5501 = vmul.f32 %v5500, %v4283
      %v5502 = vmul.f32 %v5501, %v5500
      %v5503 = vmul.f32 0.5, %v5502
      %v5504 = vsub.f32 1.5, %v5503
      %v5505 = vmul.f32 %v5500, %v5504
      %vm5506 = vweird.f32 %v4283
      %vm5507 = vweird.f32 %v5500
      %vm5508 = vmor %vm5506, %vm5507
      %v5509 = vsel %vm5508, %v5500, %v5505
      %v5510 = vrsqrt.pop %v4284
      %v5511 = vmul.f32 %v5510, %v4284
      %v5512 = vmul.f32 %v5511, %v5510
      %v5513 = vmul.f32 0.5, %v5512
      %v5514 = vsub.f32 1.5, %v5513
      %v5515 = vmul.f32 %v5510, %v5514
      %vm5516 = vweird.f32 %v4284
      %vm5517 = vweird.f32 %v5510
      %vm5518 = vmor %vm5516, %vm5517
      %v5519 = vsel %vm5518, %v5510, %v5515
      %v5520 = vrsqrt.pop %v4285
      %v5521 = vmul.f32 %v5520, %v4285
      %v5522 = vmul.f32 %v5521, %v5520
      %v5523 = vmul.f32 0.5, %v5522
      %v5524 = vsub.f32 1.5, %v5523
      %v5525 = vmul.f32 %v5520, %v5524
      %vm5526 = vweird.f32 %v4285
      %vm5527 = vweird.f32 %v5520
      %vm5528 = vmor %vm5526, %vm5527
      %v5529 = vsel %vm5528, %v5520, %v5525
      %v5530 = vrsqrt.pop %v4286
      %v5531 = vmul.f32 %v5530, %v4286
      %v5532 = vmul.f32 %v5531, %v5530
      %v5533 = vmul.f32 0.5, %v5532
      %v5534 = vsub.f32 1.5, %v5533
      %v5535 = vmul.f32 %v5530, %v5534
      %vm5536 = vweird.f32 %v4286
      %vm5537 = vweird.f32 %v5530
      %vm5538 = vmor %vm5536, %vm5537
      %v5539 = vsel %vm5538, %v5530, %v5535
      %v5540 = vrsqrt.pop %v4287
      %v5541 = vmul.f32 %v5540, %v4287
      %v5542 = vmul.f32 %v5541, %v5540
      %v5543 = vmul.f32 0.5, %v5542
      %v5544 = vsub.f32 1.5, %v5543
      %v5545 = vmul.f32 %v5540, %v5544
      %vm5546 = vweird.f32 %v4287
      %vm5547 = vweird.f32 %v5540
      %vm5548 = vmor %vm5546, %vm5547
      %v5549 = vsel %vm5548, %v5540, %v5545
      %v5550 = vrsqrt.pop %v4288
      %v5551 = vmul.f32 %v5550, %v4288
      %v5552 = vmul.f32 %v5551, %v5550
      %v5553 = vmul.f32 0.5, %v5552
      %v5554 = vsub.f32 1.5, %v5553
      %v5555 = vmul.f32 %v5550, %v5554
      %vm5556 = vweird.f32 %v4288
      %vm5557 = vweird.f32 %v5550
      %vm5558 = vmor %vm5556, %vm5557
      %v5559 = vsel %vm5558, %v5550, %v5555
      %v5560 = vrsqrt.pop %v4289
      %v5561 = vmul.f32 %v5560, %v4289
      %v5562 = vmul.f32 %v5561, %v5560
      %v5563 = vmul.f32 0.5, %v5562
      %v5564 = vsub.f32 1.5, %v5563
      %v5565 = vmul.f32 %v5560, %v5564
      %vm5566 = vweird.f32 %v4289
      %vm5567 = vweird.f32 %v5560
      %vm5568 = vmor %vm5566, %vm5567
      %v5569 = vsel %vm5568, %v5560, %v5565
      %v5570 = vmul.f32 %v4162, 0.5
      %v5571 = vmul.f32 %v4163, 0.5
      %v5572 = vmul.f32 %v4164, 0.5
      %v5573 = vmul.f32 %v4165, 0.5
      %v5574 = vmul.f32 %v4166, 0.5
      %v5575 = vmul.f32 %v4167, 0.5
      %v5576 = vmul.f32 %v4168, 0.5
      %v5577 = vmul.f32 %v4169, 0.5
      %v5578 = vmul.f32 %v4170, 0.5
      %v5579 = vmul.f32 %v4171, 0.5
      %v5580 = vmul.f32 %v4172, 0.5
      %v5581 = vmul.f32 %v4173, 0.5
      %v5582 = vmul.f32 %v4174, 0.5
      %v5583 = vmul.f32 %v4175, 0.5
      %v5584 = vmul.f32 %v4176, 0.5
      %v5585 = vmul.f32 %v4177, 0.5
      %v5586 = vmul.f32 %v4178, 0.5
      %v5587 = vmul.f32 %v4179, 0.5
      %v5588 = vmul.f32 %v4180, 0.5
      %v5589 = vmul.f32 %v4181, 0.5
      %v5590 = vmul.f32 %v4182, 0.5
      %v5591 = vmul.f32 %v4183, 0.5
      %v5592 = vmul.f32 %v4184, 0.5
      %v5593 = vmul.f32 %v4185, 0.5
      %v5594 = vmul.f32 %v4186, 0.5
      %v5595 = vmul.f32 %v4187, 0.5
      %v5596 = vmul.f32 %v4188, 0.5
      %v5597 = vmul.f32 %v4189, 0.5
      %v5598 = vmul.f32 %v4190, 0.5
      %v5599 = vmul.f32 %v4191, 0.5
      %v5600 = vmul.f32 %v4192, 0.5
      %v5601 = vmul.f32 %v4193, 0.5
      %v5602 = vmul.f32 %v4194, 0.5
      %v5603 = vmul.f32 %v4195, 0.5
      %v5604 = vmul.f32 %v4196, 0.5
      %v5605 = vmul.f32 %v4197, 0.5
      %v5606 = vmul.f32 %v4198, 0.5
      %v5607 = vmul.f32 %v4199, 0.5
      %v5608 = vmul.f32 %v4200, 0.5
      %v5609 = vmul.f32 %v4201, 0.5
      %v5610 = vmul.f32 %v4202, 0.5
      %v5611 = vmul.f32 %v4203, 0.5
      %v5612 = vmul.f32 %v4204, 0.5
      %v5613 = vmul.f32 %v4205, 0.5
      %v5614 = vmul.f32 %v4206, 0.5
      %v5615 = vmul.f32 %v4207, 0.5
      %v5616 = vmul.f32 %v4208, 0.5
      %v5617 = vmul.f32 %v4209, 0.5
      %v5618 = vmul.f32 %v4210, 0.5
      %v5619 = vmul.f32 %v4211, 0.5
      %v5620 = vmul.f32 %v4212, 0.5
      %v5621 = vmul.f32 %v4213, 0.5
      %v5622 = vmul.f32 %v4214, 0.5
      %v5623 = vmul.f32 %v4215, 0.5
      %v5624 = vmul.f32 %v4216, 0.5
      %v5625 = vmul.f32 %v4217, 0.5
      %v5626 = vmul.f32 %v4218, 0.5
      %v5627 = vmul.f32 %v4219, 0.5
      %v5628 = vmul.f32 %v4220, 0.5
      %v5629 = vmul.f32 %v4221, 0.5
      %v5630 = vmul.f32 %v4222, 0.5
      %v5631 = vmul.f32 %v4223, 0.5
      %v5632 = vmul.f32 %v4224, 0.5
      %v5633 = vmul.f32 %v4225, 0.5
      %v5634 = vmul.f32 %v4226, 0.5
      %v5635 = vmul.f32 %v4227, 0.5
      %v5636 = vmul.f32 %v4228, 0.5
      %v5637 = vmul.f32 %v4229, 0.5
      %v5638 = vmul.f32 %v4230, 0.5
      %v5639 = vmul.f32 %v4231, 0.5
      %v5640 = vmul.f32 %v4232, 0.5
      %v5641 = vmul.f32 %v4233, 0.5
      %v5642 = vmul.f32 %v4234, 0.5
      %v5643 = vmul.f32 %v4235, 0.5
      %v5644 = vmul.f32 %v4236, 0.5
      %v5645 = vmul.f32 %v4237, 0.5
      %v5646 = vmul.f32 %v4238, 0.5
      %v5647 = vmul.f32 %v4239, 0.5
      %v5648 = vmul.f32 %v4240, 0.5
      %v5649 = vmul.f32 %v4241, 0.5
      %v5650 = vmul.f32 %v4242, 0.5
      %v5651 = vmul.f32 %v4243, 0.5
      %v5652 = vmul.f32 %v4244, 0.5
      %v5653 = vmul.f32 %v4245, 0.5
      %v5654 = vmul.f32 %v4246, 0.5
      %v5655 = vmul.f32 %v4247, 0.5
      %v5656 = vmul.f32 %v4248, 0.5
      %v5657 = vmul.f32 %v4249, 0.5
      %v5658 = vmul.f32 %v4250, 0.5
      %v5659 = vmul.f32 %v4251, 0.5
      %v5660 = vmul.f32 %v4252, 0.5
      %v5661 = vmul.f32 %v4253, 0.5
      %v5662 = vmul.f32 %v4254, 0.5
      %v5663 = vmul.f32 %v4255, 0.5
      %v5664 = vmul.f32 %v4256, 0.5
      %v5665 = vmul.f32 %v4257, 0.5
      %v5666 = vmul.f32 %v4258, 0.5
      %v5667 = vmul.f32 %v4259, 0.5
      %v5668 = vmul.f32 %v4260, 0.5
      %v5669 = vmul.f32 %v4261, 0.5
      %v5670 = vmul.f32 %v4262, 0.5
      %v5671 = vmul.f32 %v4263, 0.5
      %v5672 = vmul.f32 %v4264, 0.5
      %v5673 = vmul.f32 %v4265, 0.5
      %v5674 = vmul.f32 %v4266, 0.5
      %v5675 = vmul.f32 %v4267, 0.5
      %v5676 = vmul.f32 %v4268, 0.5
      %v5677 = vmul.f32 %v4269, 0.5
      %v5678 = vmul.f32 %v4270, 0.5
      %v5679 = vmul.f32 %v4271, 0.5
      %v5680 = vmul.f32 %v4272, 0.5
      %v5681 = vmul.f32 %v4273, 0.5
      %v5682 = vmul.f32 %v4274, 0.5
      %v5683 = vmul.f32 %v4275, 0.5
      %v5684 = vmul.f32 %v4276, 0.5
      %v5685 = vmul.f32 %v4277, 0.5
      %v5686 = vmul.f32 %v4278, 0.5
      %v5687 = vmul.f32 %v4279, 0.5
      %v5688 = vmul.f32 %v4280, 0.5
      %v5689 = vmul.f32 %v4281, 0.5
      %v5690 = vmul.f32 %v4282, 0.5
      %v5691 = vmul.f32 %v4283, 0.5
      %v5692 = vmul.f32 %v4284, 0.5
      %v5693 = vmul.f32 %v4285, 0.5
      %v5694 = vmul.f32 %v4286, 0.5
      %v5695 = vmul.f32 %v4287, 0.5
      %v5696 = vmul.f32 %v4288, 0.5
      %v5697 = vmul.f32 %v4289, 0.5
      %v5698 = vmul.f32 %v5570, %v4299
      %v5699 = vmul.f32 %v5571, %v4309
      %v5700 = vmul.f32 %v5572, %v4319
      %v5701 = vmul.f32 %v5573, %v4329
      %v5702 = vmul.f32 %v5574, %v4339
      %v5703 = vmul.f32 %v5575, %v4349
      %v5704 = vmul.f32 %v5576, %v4359
      %v5705 = vmul.f32 %v5577, %v4369
      %v5706 = vmul.f32 %v5578, %v4379
      %v5707 = vmul.f32 %v5579, %v4389
      %v5708 = vmul.f32 %v5580, %v4399
      %v5709 = vmul.f32 %v5581, %v4409
      %v5710 = vmul.f32 %v5582, %v4419
      %v5711 = vmul.f32 %v5583, %v4429
      %v5712 = vmul.f32 %v5584, %v4439
      %v5713 = vmul.f32 %v5585, %v4449
      %v5714 = vmul.f32 %v5586, %v4459
      %v5715 = vmul.f32 %v5587, %v4469
      %v5716 = vmul.f32 %v5588, %v4479
      %v5717 = vmul.f32 %v5589, %v4489
      %v5718 = vmul.f32 %v5590, %v4499
      %v5719 = vmul.f32 %v5591, %v4509
      %v5720 = vmul.f32 %v5592, %v4519
      %v5721 = vmul.f32 %v5593, %v4529
      %v5722 = vmul.f32 %v5594, %v4539
      %v5723 = vmul.f32 %v5595, %v4549
      %v5724 = vmul.f32 %v5596, %v4559
      %v5725 = vmul.f32 %v5597, %v4569
      %v5726 = vmul.f32 %v5598, %v4579
      %v5727 = vmul.f32 %v5599, %v4589
      %v5728 = vmul.f32 %v5600, %v4599
      %v5729 = vmul.f32 %v5601, %v4609
      %v5730 = vmul.f32 %v5602, %v4619
      %v5731 = vmul.f32 %v5603, %v4629
      %v5732 = vmul.f32 %v5604, %v4639
      %v5733 = vmul.f32 %v5605, %v4649
      %v5734 = vmul.f32 %v5606, %v4659
      %v5735 = vmul.f32 %v5607, %v4669
      %v5736 = vmul.f32 %v5608, %v4679
      %v5737 = vmul.f32 %v5609, %v4689
      %v5738 = vmul.f32 %v5610, %v4699
      %v5739 = vmul.f32 %v5611, %v4709
      %v5740 = vmul.f32 %v5612, %v4719
      %v5741 = vmul.f32 %v5613, %v4729
      %v5742 = vmul.f32 %v5614, %v4739
      %v5743 = vmul.f32 %v5615, %v4749
      %v5744 = vmul.f32 %v5616, %v4759
      %v5745 = vmul.f32 %v5617, %v4769
      %v5746 = vmul.f32 %v5618, %v4779
      %v5747 = vmul.f32 %v5619, %v4789
      %v5748 = vmul.f32 %v5620, %v4799
      %v5749 = vmul.f32 %v5621, %v4809
      %v5750 = vmul.f32 %v5622, %v4819
      %v5751 = vmul.f32 %v5623, %v4829
      %v5752 = vmul.f32 %v5624, %v4839
      %v5753 = vmul.f32 %v5625, %v4849
      %v5754 = vmul.f32 %v5626, %v4859
      %v5755 = vmul.f32 %v5627, %v4869
      %v5756 = vmul.f32 %v5628, %v4879
      %v5757 = vmul.f32 %v5629, %v4889
      %v5758 = vmul.f32 %v5630, %v4899
      %v5759 = vmul.f32 %v5631, %v4909
      %v5760 = vmul.f32 %v5632, %v4919
      %v5761 = vmul.f32 %v5633, %v4929
      %v5762 = vmul.f32 %v5634, %v4939
      %v5763 = vmul.f32 %v5635, %v4949
      %v5764 = vmul.f32 %v5636, %v4959
      %v5765 = vmul.f32 %v5637, %v4969
      %v5766 = vmul.f32 %v5638, %v4979
      %v5767 = vmul.f32 %v5639, %v4989
      %v5768 = vmul.f32 %v5640, %v4999
      %v5769 = vmul.f32 %v5641, %v5009
      %v5770 = vmul.f32 %v5642, %v5019
      %v5771 = vmul.f32 %v5643, %v5029
      %v5772 = vmul.f32 %v5644, %v5039
      %v5773 = vmul.f32 %v5645, %v5049
      %v5774 = vmul.f32 %v5646, %v5059
      %v5775 = vmul.f32 %v5647, %v5069
      %v5776 = vmul.f32 %v5648, %v5079
      %v5777 = vmul.f32 %v5649, %v5089
      %v5778 = vmul.f32 %v5650, %v5099
      %v5779 = vmul.f32 %v5651, %v5109
      %v5780 = vmul.f32 %v5652, %v5119
      %v5781 = vmul.f32 %v5653, %v5129
      %v5782 = vmul.f32 %v5654, %v5139
      %v5783 = vmul.f32 %v5655, %v5149
      %v5784 = vmul.f32 %v5656, %v5159
      %v5785 = vmul.f32 %v5657, %v5169
      %v5786 = vmul.f32 %v5658, %v5179
      %v5787 = vmul.f32 %v5659, %v5189
      %v5788 = vmul.f32 %v5660, %v5199
      %v5789 = vmul.f32 %v5661, %v5209
      %v5790 = vmul.f32 %v5662, %v5219
      %v5791 = vmul.f32 %v5663, %v5229
      %v5792 = vmul.f32 %v5664, %v5239
      %v5793 = vmul.f32 %v5665, %v5249
      %v5794 = vmul.f32 %v5666, %v5259
      %v5795 = vmul.f32 %v5667, %v5269
      %v5796 = vmul.f32 %v5668, %v5279
      %v5797 = vmul.f32 %v5669, %v5289
      %v5798 = vmul.f32 %v5670, %v5299
      %v5799 = vmul.f32 %v5671, %v5309
      %v5800 = vmul.f32 %v5672, %v5319
      %v5801 = vmul.f32 %v5673, %v5329
      %v5802 = vmul.f32 %v5674, %v5339
      %v5803 = vmul.f32 %v5675, %v5349
      %v5804 = vmul.f32 %v5676, %v5359
      %v5805 = vmul.f32 %v5677, %v5369
      %v5806 = vmul.f32 %v5678, %v5379
      %v5807 = vmul.f32 %v5679, %v5389
      %v5808 = vmul.f32 %v5680, %v5399
      %v5809 = vmul.f32 %v5681, %v5409
      %v5810 = vmul.f32 %v5682, %v5419
      %v5811 = vmul.f32 %v5683, %v5429
      %v5812 = vmul.f32 %v5684, %v5439
      %v5813 = vmul.f32 %v5685, %v5449
      %v5814 = vmul.f32 %v5686, %v5459
      %v5815 = vmul.f32 %v5687, %v5469
      %v5816 = vmul.f32 %v5688, %v5479
      %v5817 = vmul.f32 %v5689, %v5489
      %v5818 = vmul.f32 %v5690, %v5499
      %v5819 = vmul.f32 %v5691, %v5509
      %v5820 = vmul.f32 %v5692, %v5519
      %v5821 = vmul.f32 %v5693, %v5529
      %v5822 = vmul.f32 %v5694, %v5539
      %v5823 = vmul.f32 %v5695, %v5549
      %v5824 = vmul.f32 %v5696, %v5559
      %v5825 = vmul.f32 %v5697, %v5569
      %v5826 = vmul.f32 %v5698, %v4299
      %v5827 = vmul.f32 %v5699, %v4309
      %v5828 = vmul.f32 %v5700, %v4319
      %v5829 = vmul.f32 %v5701, %v4329
      %v5830 = vmul.f32 %v5702, %v4339
      %v5831 = vmul.f32 %v5703, %v4349
      %v5832 = vmul.f32 %v5704, %v4359
      %v5833 = vmul.f32 %v5705, %v4369
      %v5834 = vmul.f32 %v5706, %v4379
      %v5835 = vmul.f32 %v5707, %v4389
      %v5836 = vmul.f32 %v5708, %v4399
      %v5837 = vmul.f32 %v5709, %v4409
      %v5838 = vmul.f32 %v5710, %v4419
      %v5839 = vmul.f32 %v5711, %v4429
      %v5840 = vmul.f32 %v5712, %v4439
      %v5841 = vmul.f32 %v5713, %v4449
      %v5842 = vmul.f32 %v5714, %v4459
      %v5843 = vmul.f32 %v5715, %v4469
      %v5844 = vmul.f32 %v5716, %v4479
      %v5845 = vmul.f32 %v5717, %v4489
      %v5846 = vmul.f32 %v5718, %v4499
      %v5847 = vmul.f32 %v5719, %v4509
      %v5848 = vmul.f32 %v5720, %v4519
      %v5849 = vmul.f32 %v5721, %v4529
      %v5850 = vmul.f32 %v5722, %v4539
      %v5851 = vmul.f32 %v5723, %v4549
      %v5852 = vmul.f32 %v5724, %v4559
      %v5853 = vmul.f32 %v5725, %v4569
      %v5854 = vmul.f32 %v5726, %v4579
      %v5855 = vmul.f32 %v5727, %v4589
      %v5856 = vmul.f32 %v5728, %v4599
      %v5857 = vmul.f32 %v5729, %v4609
      %v5858 = vmul.f32 %v5730, %v4619
      %v5859 = vmul.f32 %v5731, %v4629
      %v5860 = vmul.f32 %v5732, %v4639
      %v5861 = vmul.f32 %v5733, %v4649
      %v5862 = vmul.f32 %v5734, %v4659
      %v5863 = vmul.f32 %v5735, %v4669
      %v5864 = vmul.f32 %v5736, %v4679
      %v5865 = vmul.f32 %v5737, %v4689
      %v5866 = vmul.f32 %v5738, %v4699
      %v5867 = vmul.f32 %v5739, %v4709
      %v5868 = vmul.f32 %v5740, %v4719
      %v5869 = vmul.f32 %v5741, %v4729
      %v5870 = vmul.f32 %v5742, %v4739
      %v5871 = vmul.f32 %v5743, %v4749
      %v5872 = vmul.f32 %v5744, %v4759
      %v5873 = vmul.f32 %v5745, %v4769
      %v5874 = vmul.f32 %v5746, %v4779
      %v5875 = vmul.f32 %v5747, %v4789
      %v5876 = vmul.f32 %v5748, %v4799
      %v5877 = vmul.f32 %v5749, %v4809
      %v5878 = vmul.f32 %v5750, %v4819
      %v5879 = vmul.f32 %v5751, %v4829
      %v5880 = vmul.f32 %v5752, %v4839
      %v5881 = vmul.f32 %v5753, %v4849
      %v5882 = vmul.f32 %v5754, %v4859
      %v5883 = vmul.f32 %v5755, %v4869
      %v5884 = vmul.f32 %v5756, %v4879
      %v5885 = vmul.f32 %v5757, %v4889
      %v5886 = vmul.f32 %v5758, %v4899
      %v5887 = vmul.f32 %v5759, %v4909
      %v5888 = vmul.f32 %v5760, %v4919
      %v5889 = vmul.f32 %v5761, %v4929
      %v5890 = vmul.f32 %v5762, %v4939
      %v5891 = vmul.f32 %v5763, %v4949
      %v5892 = vmul.f32 %v5764, %v4959
      %v5893 = vmul.f32 %v5765, %v4969
      %v5894 = vmul.f32 %v5766, %v4979
      %v5895 = vmul.f32 %v5767, %v4989
      %v5896 = vmul.f32 %v5768, %v4999
      %v5897 = vmul.f32 %v5769, %v5009
      %v5898 = vmul.f32 %v5770, %v5019
      %v5899 = vmul.f32 %v5771, %v5029
      %v5900 = vmul.f32 %v5772, %v5039
      %v5901 = vmul.f32 %v5773, %v5049
      %v5902 = vmul.f32 %v5774, %v5059
      %v5903 = vmul.f32 %v5775, %v5069
      %v5904 = vmul.f32 %v5776, %v5079
      %v5905 = vmul.f32 %v5777, %v5089
      %v5906 = vmul.f32 %v5778, %v5099
      %v5907 = vmul.f32 %v5779, %v5109
      %v5908 = vmul.f32 %v5780, %v5119
      %v5909 = vmul.f32 %v5781, %v5129
      %v5910 = vmul.f32 %v5782, %v5139
      %v5911 = vmul.f32 %v5783, %v5149
      %v5912 = vmul.f32 %v5784, %v5159
      %v5913 = vmul.f32 %v5785, %v5169
      %v5914 = vmul.f32 %v5786, %v5179
      %v5915 = vmul.f32 %v5787, %v5189
      %v5916 = vmul.f32 %v5788, %v5199
      %v5917 = vmul.f32 %v5789, %v5209
      %v5918 = vmul.f32 %v5790, %v5219
      %v5919 = vmul.f32 %v5791, %v5229
      %v5920 = vmul.f32 %v5792, %v5239
      %v5921 = vmul.f32 %v5793, %v5249
      %v5922 = vmul.f32 %v5794, %v5259
      %v5923 = vmul.f32 %v5795, %v5269
      %v5924 = vmul.f32 %v5796, %v5279
      %v5925 = vmul.f32 %v5797, %v5289
      %v5926 = vmul.f32 %v5798, %v5299
      %v5927 = vmul.f32 %v5799, %v5309
      %v5928 = vmul.f32 %v5800, %v5319
      %v5929 = vmul.f32 %v5801, %v5329
      %v5930 = vmul.f32 %v5802, %v5339
      %v5931 = vmul.f32 %v5803, %v5349
      %v5932 = vmul.f32 %v5804, %v5359
      %v5933 = vmul.f32 %v5805, %v5369
      %v5934 = vmul.f32 %v5806, %v5379
      %v5935 = vmul.f32 %v5807, %v5389
      %v5936 = vmul.f32 %v5808, %v5399
      %v5937 = vmul.f32 %v5809, %v5409
      %v5938 = vmul.f32 %v5810, %v5419
      %v5939 = vmul.f32 %v5811, %v5429
      %v5940 = vmul.f32 %v5812, %v5439
      %v5941 = vmul.f32 %v5813, %v5449
      %v5942 = vmul.f32 %v5814, %v5459
      %v5943 = vmul.f32 %v5815, %v5469
      %v5944 = vmul.f32 %v5816, %v5479
      %v5945 = vmul.f32 %v5817, %v5489
      %v5946 = vmul.f32 %v5818, %v5499
      %v5947 = vmul.f32 %v5819, %v5509
      %v5948 = vmul.f32 %v5820, %v5519
      %v5949 = vmul.f32 %v5821, %v5529
      %v5950 = vmul.f32 %v5822, %v5539
      %v5951 = vmul.f32 %v5823, %v5549
      %v5952 = vmul.f32 %v5824, %v5559
      %v5953 = vmul.f32 %v5825, %v5569
      %v5954 = vsub.f32 1.5, %v5826
      %v5955 = vsub.f32 1.5, %v5827
      %v5956 = vsub.f32 1.5, %v5828
      %v5957 = vsub.f32 1.5, %v5829
      %v5958 = vsub.f32 1.5, %v5830
      %v5959 = vsub.f32 1.5, %v5831
      %v5960 = vsub.f32 1.5, %v5832
      %v5961 = vsub.f32 1.5, %v5833
      %v5962 = vsub.f32 1.5, %v5834
      %v5963 = vsub.f32 1.5, %v5835
      %v5964 = vsub.f32 1.5, %v5836
      %v5965 = vsub.f32 1.5, %v5837
      %v5966 = vsub.f32 1.5, %v5838
      %v5967 = vsub.f32 1.5, %v5839
      %v5968 = vsub.f32 1.5, %v5840
      %v5969 = vsub.f32 1.5, %v5841
      %v5970 = vsub.f32 1.5, %v5842
      %v5971 = vsub.f32 1.5, %v5843
      %v5972 = vsub.f32 1.5, %v5844
      %v5973 = vsub.f32 1.5, %v5845
      %v5974 = vsub.f32 1.5, %v5846
      %v5975 = vsub.f32 1.5, %v5847
      %v5976 = vsub.f32 1.5, %v5848
      %v5977 = vsub.f32 1.5, %v5849
      %v5978 = vsub.f32 1.5, %v5850
      %v5979 = vsub.f32 1.5, %v5851
      %v5980 = vsub.f32 1.5, %v5852
      %v5981 = vsub.f32 1.5, %v5853
      %v5982 = vsub.f32 1.5, %v5854
      %v5983 = vsub.f32 1.5, %v5855
      %v5984 = vsub.f32 1.5, %v5856
      %v5985 = vsub.f32 1.5, %v5857
      %v5986 = vsub.f32 1.5, %v5858
      %v5987 = vsub.f32 1.5, %v5859
      %v5988 = vsub.f32 1.5, %v5860
      %v5989 = vsub.f32 1.5, %v5861
      %v5990 = vsub.f32 1.5, %v5862
      %v5991 = vsub.f32 1.5, %v5863
      %v5992 = vsub.f32 1.5, %v5864
      %v5993 = vsub.f32 1.5, %v5865
      %v5994 = vsub.f32 1.5, %v5866
      %v5995 = vsub.f32 1.5, %v5867
      %v5996 = vsub.f32 1.5, %v5868
      %v5997 = vsub.f32 1.5, %v5869
      %v5998 = vsub.f32 1.5, %v5870
      %v5999 = vsub.f32 1.5, %v5871
      %v6000 = vsub.f32 1.5, %v5872
      %v6001 = vsub.f32 1.5, %v5873
      %v6002 = vsub.f32 1.5, %v5874
      %v6003 = vsub.f32 1.5, %v5875
      %v6004 = vsub.f32 1.5, %v5876
      %v6005 = vsub.f32 1.5, %v5877
      %v6006 = vsub.f32 1.5, %v5878
      %v6007 = vsub.f32 1.5, %v5879
      %v6008 = vsub.f32 1.5, %v5880
      %v6009 = vsub.f32 1.5, %v5881
      %v6010 = vsub.f32 1.5, %v5882
      %v6011 = vsub.f32 1.5, %v5883
      %v6012 = vsub.f32 1.5, %v5884
      %v6013 = vsub.f32 1.5, %v5885
      %v6014 = vsub.f32 1.5, %v5886
      %v6015 = vsub.f32 1.5, %v5887
      %v6016 = vsub.f32 1.5, %v5888
      %v6017 = vsub.f32 1.5, %v5889
      %v6018 = vsub.f32 1.5, %v5890
      %v6019 = vsub.f32 1.5, %v5891
      %v6020 = vsub.f32 1.5, %v5892
      %v6021 = vsub.f32 1.5, %v5893
      %v6022 = vsub.f32 1.5, %v5894
      %v6023 = vsub.f32 1.5, %v5895
      %v6024 = vsub.f32 1.5, %v5896
      %v6025 = vsub.f32 1.5, %v5897
      %v6026 = vsub.f32 1.5, %v5898
      %v6027 = vsub.f32 1.5, %v5899
      %v6028 = vsub.f32 1.5, %v5900
      %v6029 = vsub.f32 1.5, %v5901
      %v6030 = vsub.f32 1.5, %v5902
      %v6031 = vsub.f32 1.5, %v5903
      %v6032 = vsub.f32 1.5, %v5904
      %v6033 = vsub.f32 1.5, %v5905
      %v6034 = vsub.f32 1.5, %v5906
      %v6035 = vsub.f32 1.5, %v5907
      %v6036 = vsub.f32 1.5, %v5908
      %v6037 = vsub.f32 1.5, %v5909
      %v6038 = vsub.f32 1.5, %v5910
      %v6039 = vsub.f32 1.5, %v5911
      %v6040 = vsub.f32 1.5, %v5912
      %v6041 = vsub.f32 1.5, %v5913
      %v6042 = vsub.f32 1.5, %v5914
      %v6043 = vsub.f32 1.5, %v5915
      %v6044 = vsub.f32 1.5, %v5916
      %v6045 = vsub.f32 1.5, %v5917
      %v6046 = vsub.f32 1.5, %v5918
      %v6047 = vsub.f32 1.5, %v5919
      %v6048 = vsub.f32 1.5, %v5920
      %v6049 = vsub.f32 1.5, %v5921
      %v6050 = vsub.f32 1.5, %v5922
      %v6051 = vsub.f32 1.5, %v5923
      %v6052 = vsub.f32 1.5, %v5924
      %v6053 = vsub.f32 1.5, %v5925
      %v6054 = vsub.f32 1.5, %v5926
      %v6055 = vsub.f32 1.5, %v5927
      %v6056 = vsub.f32 1.5, %v5928
      %v6057 = vsub.f32 1.5, %v5929
      %v6058 = vsub.f32 1.5, %v5930
      %v6059 = vsub.f32 1.5, %v5931
      %v6060 = vsub.f32 1.5, %v5932
      %v6061 = vsub.f32 1.5, %v5933
      %v6062 = vsub.f32 1.5, %v5934
      %v6063 = vsub.f32 1.5, %v5935
      %v6064 = vsub.f32 1.5, %v5936
      %v6065 = vsub.f32 1.5, %v5937
      %v6066 = vsub.f32 1.5, %v5938
      %v6067 = vsub.f32 1.5, %v5939
      %v6068 = vsub.f32 1.5, %v5940
      %v6069 = vsub.f32 1.5, %v5941
      %v6070 = vsub.f32 1.5, %v5942
      %v6071 = vsub.f32 1.5, %v5943
      %v6072 = vsub.f32 1.5, %v5944
      %v6073 = vsub.f32 1.5, %v5945
      %v6074 = vsub.f32 1.5, %v5946
      %v6075 = vsub.f32 1.5, %v5947
      %v6076 = vsub.f32 1.5, %v5948
      %v6077 = vsub.f32 1.5, %v5949
      %v6078 = vsub.f32 1.5, %v5950
      %v6079 = vsub.f32 1.5, %v5951
      %v6080 = vsub.f32 1.5, %v5952
      %v6081 = vsub.f32 1.5, %v5953
      %v6082 = vmul.f32 %v4299, %v5954
      %v6083 = vmul.f32 %v4309, %v5955
      %v6084 = vmul.f32 %v4319, %v5956
      %v6085 = vmul.f32 %v4329, %v5957
      %v6086 = vmul.f32 %v4339, %v5958
      %v6087 = vmul.f32 %v4349, %v5959
      %v6088 = vmul.f32 %v4359, %v5960
      %v6089 = vmul.f32 %v4369, %v5961
      %v6090 = vmul.f32 %v4379, %v5962
      %v6091 = vmul.f32 %v4389, %v5963
      %v6092 = vmul.f32 %v4399, %v5964
      %v6093 = vmul.f32 %v4409, %v5965
      %v6094 = vmul.f32 %v4419, %v5966
      %v6095 = vmul.f32 %v4429, %v5967
      %v6096 = vmul.f32 %v4439, %v5968
      %v6097 = vmul.f32 %v4449, %v5969
      %v6098 = vmul.f32 %v4459, %v5970
      %v6099 = vmul.f32 %v4469, %v5971
      %v6100 = vmul.f32 %v4479, %v5972
      %v6101 = vmul.f32 %v4489, %v5973
      %v6102 = vmul.f32 %v4499, %v5974
      %v6103 = vmul.f32 %v4509, %v5975
      %v6104 = vmul.f32 %v4519, %v5976
      %v6105 = vmul.f32 %v4529, %v5977
      %v6106 = vmul.f32 %v4539, %v5978
      %v6107 = vmul.f32 %v4549, %v5979
      %v6108 = vmul.f32 %v4559, %v5980
      %v6109 = vmul.f32 %v4569, %v5981
      %v6110 = vmul.f32 %v4579, %v5982
      %v6111 = vmul.f32 %v4589, %v5983
      %v6112 = vmul.f32 %v4599, %v5984
      %v6113 = vmul.f32 %v4609, %v5985
      %v6114 = vmul.f32 %v4619, %v5986
      %v6115 = vmul.f32 %v4629, %v5987
      %v6116 = vmul.f32 %v4639, %v5988
      %v6117 = vmul.f32 %v4649, %v5989
      %v6118 = vmul.f32 %v4659, %v5990
      %v6119 = vmul.f32 %v4669, %v5991
      %v6120 = vmul.f32 %v4679, %v5992
      %v6121 = vmul.f32 %v4689, %v5993
      %v6122 = vmul.f32 %v4699, %v5994
      %v6123 = vmul.f32 %v4709, %v5995
      %v6124 = vmul.f32 %v4719, %v5996
      %v6125 = vmul.f32 %v4729, %v5997
      %v6126 = vmul.f32 %v4739, %v5998
      %v6127 = vmul.f32 %v4749, %v5999
      %v6128 = vmul.f32 %v4759, %v6000
      %v6129 = vmul.f32 %v4769, %v6001
      %v6130 = vmul.f32 %v4779, %v6002
      %v6131 = vmul.f32 %v4789, %v6003
      %v6132 = vmul.f32 %v4799, %v6004
      %v6133 = vmul.f32 %v4809, %v6005
      %v6134 = vmul.f32 %v4819, %v6006
      %v6135 = vmul.f32 %v4829, %v6007
      %v6136 = vmul.f32 %v4839, %v6008
      %v6137 = vmul.f32 %v4849, %v6009
      %v6138 = vmul.f32 %v4859, %v6010
      %v6139 = vmul.f32 %v4869, %v6011
      %v6140 = vmul.f32 %v4879, %v6012
      %v6141 = vmul.f32 %v4889, %v6013
      %v6142 = vmul.f32 %v4899, %v6014
      %v6143 = vmul.f32 %v4909, %v6015
      %v6144 = vmul.f32 %v4919, %v6016
      %v6145 = vmul.f32 %v4929, %v6017
      %v6146 = vmul.f32 %v4939, %v6018
      %v6147 = vmul.f32 %v4949, %v6019
      %v6148 = vmul.f32 %v4959, %v6020
      %v6149 = vmul.f32 %v4969, %v6021
      %v6150 = vmul.f32 %v4979, %v6022
      %v6151 = vmul.f32 %v4989, %v6023
      %v6152 = vmul.f32 %v4999, %v6024
      %v6153 = vmul.f32 %v5009, %v6025
      %v6154 = vmul.f32 %v5019, %v6026
      %v6155 = vmul.f32 %v5029, %v6027
      %v6156 = vmul.f32 %v5039, %v6028
      %v6157 = vmul.f32 %v5049, %v6029
      %v6158 = vmul.f32 %v5059, %v6030
      %v6159 = vmul.f32 %v5069, %v6031
      %v6160 = vmul.f32 %v5079, %v6032
      %v6161 = vmul.f32 %v5089, %v6033
      %v6162 = vmul.f32 %v5099, %v6034
      %v6163 = vmul.f32 %v5109, %v6035
      %v6164 = vmul.f32 %v5119, %v6036
      %v6165 = vmul.f32 %v5129, %v6037
      %v6166 = vmul.f32 %v5139, %v6038
      %v6167 = vmul.f32 %v5149, %v6039
      %v6168 = vmul.f32 %v5159, %v6040
      %v6169 = vmul.f32 %v5169, %v6041
      %v6170 = vmul.f32 %v5179, %v6042
      %v6171 = vmul.f32 %v5189, %v6043
      %v6172 = vmul.f32 %v5199, %v6044
      %v6173 = vmul.f32 %v5209, %v6045
      %v6174 = vmul.f32 %v5219, %v6046
      %v6175 = vmul.f32 %v5229, %v6047
      %v6176 = vmul.f32 %v5239, %v6048
      %v6177 = vmul.f32 %v5249, %v6049
      %v6178 = vmul.f32 %v5259, %v6050
      %v6179 = vmul.f32 %v5269, %v6051
      %v6180 = vmul.f32 %v5279, %v6052
      %v6181 = vmul.f32 %v5289, %v6053
      %v6182 = vmul.f32 %v5299, %v6054
      %v6183 = vmul.f32 %v5309, %v6055
      %v6184 = vmul.f32 %v5319, %v6056
      %v6185 = vmul.f32 %v5329, %v6057
      %v6186 = vmul.f32 %v5339, %v6058
      %v6187 = vmul.f32 %v5349, %v6059
      %v6188 = vmul.f32 %v5359, %v6060
      %v6189 = vmul.f32 %v5369, %v6061
      %v6190 = vmul.f32 %v5379, %v6062
      %v6191 = vmul.f32 %v5389, %v6063
      %v6192 = vmul.f32 %v5399, %v6064
      %v6193 = vmul.f32 %v5409, %v6065
      %v6194 = vmul.f32 %v5419, %v6066
      %v6195 = vmul.f32 %v5429, %v6067
      %v6196 = vmul.f32 %v5439, %v6068
      %v6197 = vmul.f32 %v5449, %v6069
      %v6198 = vmul.f32 %v5459, %v6070
      %v6199 = vmul.f32 %v5469, %v6071
      %v6200 = vmul.f32 %v5479, %v6072
      %v6201 = vmul.f32 %v5489, %v6073
      %v6202 = vmul.f32 %v5499, %v6074
      %v6203 = vmul.f32 %v5509, %v6075
      %v6204 = vmul.f32 %v5519, %v6076
      %v6205 = vmul.f32 %v5529, %v6077
      %v6206 = vmul.f32 %v5539, %v6078
      %v6207 = vmul.f32 %v5549, %v6079
      %v6208 = vmul.f32 %v5559, %v6080
      %v6209 = vmul.f32 %v5569, %v6081
      %v6210 = vmul.f32 %v3330, %v6082
      %v6211 = vmul.f32 %v3332, %v6083
      %v6212 = vmul.f32 %v3335, %v6084
      %v6213 = vmul.f32 %v3337, %v6085
      %v6214 = vmul.f32 %v3340, %v6086
      %v6215 = vmul.f32 %v3342, %v6087
      %v6216 = vmul.f32 %v3345, %v6088
      %v6217 = vmul.f32 %v3347, %v6089
      %v6218 = vmul.f32 %v3350, %v6090
      %v6219 = vmul.f32 %v3352, %v6091
      %v6220 = vmul.f32 %v3355, %v6092
      %v6221 = vmul.f32 %v3357, %v6093
      %v6222 = vmul.f32 %v3360, %v6094
      %v6223 = vmul.f32 %v3362, %v6095
      %v6224 = vmul.f32 %v3365, %v6096
      %v6225 = vmul.f32 %v3367, %v6097
      %v6226 = vmul.f32 %v3370, %v6098
      %v6227 = vmul.f32 %v3372, %v6099
      %v6228 = vmul.f32 %v3375, %v6100
      %v6229 = vmul.f32 %v3377, %v6101
      %v6230 = vmul.f32 %v3380, %v6102
      %v6231 = vmul.f32 %v3382, %v6103
      %v6232 = vmul.f32 %v3385, %v6104
      %v6233 = vmul.f32 %v3387, %v6105
      %v6234 = vmul.f32 %v3390, %v6106
      %v6235 = vmul.f32 %v3392, %v6107
      %v6236 = vmul.f32 %v3395, %v6108
      %v6237 = vmul.f32 %v3397, %v6109
      %v6238 = vmul.f32 %v3400, %v6110
      %v6239 = vmul.f32 %v3402, %v6111
      %v6240 = vmul.f32 %v3405, %v6112
      %v6241 = vmul.f32 %v3407, %v6113
      %v6242 = vmul.f32 %v3410, %v6114
      %v6243 = vmul.f32 %v3412, %v6115
      %v6244 = vmul.f32 %v3415, %v6116
      %v6245 = vmul.f32 %v3417, %v6117
      %v6246 = vmul.f32 %v3420, %v6118
      %v6247 = vmul.f32 %v3422, %v6119
      %v6248 = vmul.f32 %v3425, %v6120
      %v6249 = vmul.f32 %v3427, %v6121
      %v6250 = vmul.f32 %v3430, %v6122
      %v6251 = vmul.f32 %v3432, %v6123
      %v6252 = vmul.f32 %v3435, %v6124
      %v6253 = vmul.f32 %v3437, %v6125
      %v6254 = vmul.f32 %v3440, %v6126
      %v6255 = vmul.f32 %v3442, %v6127
      %v6256 = vmul.f32 %v3445, %v6128
      %v6257 = vmul.f32 %v3447, %v6129
      %v6258 = vmul.f32 %v3450, %v6130
      %v6259 = vmul.f32 %v3452, %v6131
      %v6260 = vmul.f32 %v3455, %v6132
      %v6261 = vmul.f32 %v3457, %v6133
      %v6262 = vmul.f32 %v3460, %v6134
      %v6263 = vmul.f32 %v3462, %v6135
      %v6264 = vmul.f32 %v3465, %v6136
      %v6265 = vmul.f32 %v3467, %v6137
      %v6266 = vmul.f32 %v3470, %v6138
      %v6267 = vmul.f32 %v3472, %v6139
      %v6268 = vmul.f32 %v3475, %v6140
      %v6269 = vmul.f32 %v3477, %v6141
      %v6270 = vmul.f32 %v3480, %v6142
      %v6271 = vmul.f32 %v3482, %v6143
      %v6272 = vmul.f32 %v3485, %v6144
      %v6273 = vmul.f32 %v3487, %v6145
      %v6274 = vmul.f32 %v3490, %v6146
      %v6275 = vmul.f32 %v3492, %v6147
      %v6276 = vmul.f32 %v3495, %v6148
      %v6277 = vmul.f32 %v3497, %v6149
      %v6278 = vmul.f32 %v3500, %v6150
      %v6279 = vmul.f32 %v3502, %v6151
      %v6280 = vmul.f32 %v3505, %v6152
      %v6281 = vmul.f32 %v3507, %v6153
      %v6282 = vmul.f32 %v3510, %v6154
      %v6283 = vmul.f32 %v3512, %v6155
      %v6284 = vmul.f32 %v3515, %v6156
      %v6285 = vmul.f32 %v3517, %v6157
      %v6286 = vmul.f32 %v3520, %v6158
      %v6287 = vmul.f32 %v3522, %v6159
      %v6288 = vmul.f32 %v3525, %v6160
      %v6289 = vmul.f32 %v3527, %v6161
      %v6290 = vmul.f32 %v3530, %v6162
      %v6291 = vmul.f32 %v3532, %v6163
      %v6292 = vmul.f32 %v3535, %v6164
      %v6293 = vmul.f32 %v3537, %v6165
      %v6294 = vmul.f32 %v3540, %v6166
      %v6295 = vmul.f32 %v3542, %v6167
      %v6296 = vmul.f32 %v3545, %v6168
      %v6297 = vmul.f32 %v3547, %v6169
      %v6298 = vmul.f32 %v3550, %v6170
      %v6299 = vmul.f32 %v3552, %v6171
      %v6300 = vmul.f32 %v3555, %v6172
      %v6301 = vmul.f32 %v3557, %v6173
      %v6302 = vmul.f32 %v3560, %v6174
      %v6303 = vmul.f32 %v3562, %v6175
      %v6304 = vmul.f32 %v3565, %v6176
      %v6305 = vmul.f32 %v3567, %v6177
      %v6306 = vmul.f32 %v3570, %v6178
      %v6307 = vmul.f32 %v3572, %v6179
      %v6308 = vmul.f32 %v3575, %v6180
      %v6309 = vmul.f32 %v3577, %v6181
      %v6310 = vmul.f32 %v3580, %v6182
      %v6311 = vmul.f32 %v3582, %v6183
      %v6312 = vmul.f32 %v3585, %v6184
      %v6313 = vmul.f32 %v3587, %v6185
      %v6314 = vmul.f32 %v3590, %v6186
      %v6315 = vmul.f32 %v3592, %v6187
      %v6316 = vmul.f32 %v3595, %v6188
      %v6317 = vmul.f32 %v3597, %v6189
      %v6318 = vmul.f32 %v3600, %v6190
      %v6319 = vmul.f32 %v3602, %v6191
      %v6320 = vmul.f32 %v3605, %v6192
      %v6321 = vmul.f32 %v3607, %v6193
      %v6322 = vmul.f32 %v3610, %v6194
      %v6323 = vmul.f32 %v3612, %v6195
      %v6324 = vmul.f32 %v3615, %v6196
      %v6325 = vmul.f32 %v3617, %v6197
      %v6326 = vmul.f32 %v3620, %v6198
      %v6327 = vmul.f32 %v3622, %v6199
      %v6328 = vmul.f32 %v3625, %v6200
      %v6329 = vmul.f32 %v3627, %v6201
      %v6330 = vmul.f32 %v3630, %v6202
      %v6331 = vmul.f32 %v3632, %v6203
      %v6332 = vmul.f32 %v3635, %v6204
      %v6333 = vmul.f32 %v3637, %v6205
      %v6334 = vmul.f32 %v3640, %v6206
      %v6335 = vmul.f32 %v3642, %v6207
      %v6336 = vmul.f32 %v3645, %v6208
      %v6337 = vmul.f32 %v3647, %v6209
      %6338 = vst.msk [vmem:[%s329] sm:$0xff] %vm3777, %v6210
      %6339 = vst.msk [vmem:[%s329 + $0x8] sm:$0xff] %vm3777, %v6211
      %6340 = vst.msk [vmem:[%s329 + $0x10] sm:$0xff] %vm3777, %v6212
      %6341 = vst.msk [vmem:[%s329 + $0x18] sm:$0xff] %vm3777, %v6213
      %6342 = vst.msk [vmem:[%s329 + $0x20] sm:$0xff] %vm3777, %v6214
      %6343 = vst.msk [vmem:[%s329 + $0x28] sm:$0xff] %vm3777, %v6215
      %6344 = vst.msk [vmem:[%s329 + $0x30] sm:$0xff] %vm3777, %v6216
      %6345 = vst.msk [vmem:[%s329 + $0x38] sm:$0xff] %vm3777, %v6217
      %6346 = vst.msk [vmem:[%s329 + $0x40] sm:$0xff] %vm3777, %v6218
      %6347 = vst.msk [vmem:[%s329 + $0x48] sm:$0xff] %vm3777, %v6219
      %6348 = vst.msk [vmem:[%s329 + $0x50] sm:$0xff] %vm3777, %v6220
      %6349 = vst.msk [vmem:[%s329 + $0x58] sm:$0xff] %vm3777, %v6221
      %6350 = vst.msk [vmem:[%s329 + $0x60] sm:$0xff] %vm3777, %v6222
      %6351 = vst.msk [vmem:[%s329 + $0x68] sm:$0xff] %vm3777, %v6223
      %6352 = vst.msk [vmem:[%s329 + $0x70] sm:$0xff] %vm3777, %v6224
      %6353 = vst.msk [vmem:[%s329 + $0x78] sm:$0xff] %vm3777, %v6225
      %6354 = vst.msk [vmem:[%s329 + $0x80] sm:$0xff] %vm3777, %v6226
      %6355 = vst.msk [vmem:[%s329 + $0x88] sm:$0xff] %vm3777, %v6227
      %6356 = vst.msk [vmem:[%s329 + $0x90] sm:$0xff] %vm3777, %v6228
      %6357 = vst.msk [vmem:[%s329 + $0x98] sm:$0xff] %vm3777, %v6229
      %6358 = vst.msk [vmem:[%s329 + $0xa0] sm:$0xff] %vm3777, %v6230
      %6359 = vst.msk [vmem:[%s329 + $0xa8] sm:$0xff] %vm3777, %v6231
      %6360 = vst.msk [vmem:[%s329 + $0xb0] sm:$0xff] %vm3777, %v6232
      %6361 = vst.msk [vmem:[%s329 + $0xb8] sm:$0xff] %vm3777, %v6233
      %6362 = vst.msk [vmem:[%s329 + $0xc0] sm:$0xff] %vm3777, %v6234
      %6363 = vst.msk [vmem:[%s329 + $0xc8] sm:$0xff] %vm3777, %v6235
      %6364 = vst.msk [vmem:[%s329 + $0xd0] sm:$0xff] %vm3777, %v6236
      %6365 = vst.msk [vmem:[%s329 + $0xd8] sm:$0xff] %vm3777, %v6237
      %6366 = vst.msk [vmem:[%s329 + $0xe0] sm:$0xff] %vm3777, %v6238
      %6367 = vst.msk [vmem:[%s329 + $0xe8] sm:$0xff] %vm3777, %v6239
      %6368 = vst.msk [vmem:[%s329 + $0xf0] sm:$0xff] %vm3777, %v6240
      %6369 = vst.msk [vmem:[%s329 + $0xf8] sm:$0xff] %vm3777, %v6241
      %6370 = vst.msk [vmem:[%s329 + $0x100] sm:$0xff] %vm3777, %v6242
      %6371 = vst.msk [vmem:[%s329 + $0x108] sm:$0xff] %vm3777, %v6243
      %6372 = vst.msk [vmem:[%s329 + $0x110] sm:$0xff] %vm3777, %v6244
      %6373 = vst.msk [vmem:[%s329 + $0x118] sm:$0xff] %vm3777, %v6245
      %6374 = vst.msk [vmem:[%s329 + $0x120] sm:$0xff] %vm3777, %v6246
      %6375 = vst.msk [vmem:[%s329 + $0x128] sm:$0xff] %vm3777, %v6247
      %6376 = vst.msk [vmem:[%s329 + $0x130] sm:$0xff] %vm3777, %v6248
      %6377 = vst.msk [vmem:[%s329 + $0x138] sm:$0xff] %vm3777, %v6249
      %6378 = vst.msk [vmem:[%s329 + $0x140] sm:$0xff] %vm3777, %v6250
      %6379 = vst.msk [vmem:[%s329 + $0x148] sm:$0xff] %vm3777, %v6251
      %6380 = vst.msk [vmem:[%s329 + $0x150] sm:$0xff] %vm3777, %v6252
      %6381 = vst.msk [vmem:[%s329 + $0x158] sm:$0xff] %vm3777, %v6253
      %6382 = vst.msk [vmem:[%s329 + $0x160] sm:$0xff] %vm3777, %v6254
      %6383 = vst.msk [vmem:[%s329 + $0x168] sm:$0xff] %vm3777, %v6255
      %6384 = vst.msk [vmem:[%s329 + $0x170] sm:$0xff] %vm3777, %v6256
      %6385 = vst.msk [vmem:[%s329 + $0x178] sm:$0xff] %vm3777, %v6257
      %6386 = vst.msk [vmem:[%s329 + $0x180] sm:$0xff] %vm3777, %v6258
      %6387 = vst.msk [vmem:[%s329 + $0x188] sm:$0xff] %vm3777, %v6259
      %6388 = vst.msk [vmem:[%s329 + $0x190] sm:$0xff] %vm3777, %v6260
      %6389 = vst.msk [vmem:[%s329 + $0x198] sm:$0xff] %vm3777, %v6261
      %6390 = vst.msk [vmem:[%s329 + $0x1a0] sm:$0xff] %vm3777, %v6262
      %6391 = vst.msk [vmem:[%s329 + $0x1a8] sm:$0xff] %vm3777, %v6263
      %6392 = vst.msk [vmem:[%s329 + $0x1b0] sm:$0xff] %vm3777, %v6264
      %6393 = vst.msk [vmem:[%s329 + $0x1b8] sm:$0xff] %vm3777, %v6265
      %6394 = vst.msk [vmem:[%s329 + $0x1c0] sm:$0xff] %vm3777, %v6266
      %6395 = vst.msk [vmem:[%s329 + $0x1c8] sm:$0xff] %vm3777, %v6267
      %6396 = vst.msk [vmem:[%s329 + $0x1d0] sm:$0xff] %vm3777, %v6268
      %6397 = vst.msk [vmem:[%s329 + $0x1d8] sm:$0xff] %vm3777, %v6269
      %6398 = vst.msk [vmem:[%s329 + $0x1e0] sm:$0xff] %vm3777, %v6270
      %6399 = vst.msk [vmem:[%s329 + $0x1e8] sm:$0xff] %vm3777, %v6271
      %6400 = vst.msk [vmem:[%s329 + $0x1f0] sm:$0xff] %vm3777, %v6272
      %6401 = vst.msk [vmem:[%s329 + $0x1f8] sm:$0xff] %vm3777, %v6273
      %6402 = vst.msk [vmem:[%s329 + $0x200] sm:$0xff] %vm3777, %v6274
      %6403 = vst.msk [vmem:[%s329 + $0x208] sm:$0xff] %vm3777, %v6275
      %6404 = vst.msk [vmem:[%s329 + $0x210] sm:$0xff] %vm3777, %v6276
      %6405 = vst.msk [vmem:[%s329 + $0x218] sm:$0xff] %vm3777, %v6277
      %6406 = vst.msk [vmem:[%s329 + $0x220] sm:$0xff] %vm3777, %v6278
      %6407 = vst.msk [vmem:[%s329 + $0x228] sm:$0xff] %vm3777, %v6279
      %6408 = vst.msk [vmem:[%s329 + $0x230] sm:$0xff] %vm3777, %v6280
      %6409 = vst.msk [vmem:[%s329 + $0x238] sm:$0xff] %vm3777, %v6281
      %6410 = vst.msk [vmem:[%s329 + $0x240] sm:$0xff] %vm3777, %v6282
      %6411 = vst.msk [vmem:[%s329 + $0x248] sm:$0xff] %vm3777, %v6283
      %6412 = vst.msk [vmem:[%s329 + $0x250] sm:$0xff] %vm3777, %v6284
      %6413 = vst.msk [vmem:[%s329 + $0x258] sm:$0xff] %vm3777, %v6285
      %6414 = vst.msk [vmem:[%s329 + $0x260] sm:$0xff] %vm3777, %v6286
      %6415 = vst.msk [vmem:[%s329 + $0x268] sm:$0xff] %vm3777, %v6287
      %6416 = vst.msk [vmem:[%s329 + $0x270] sm:$0xff] %vm3777, %v6288
      %6417 = vst.msk [vmem:[%s329 + $0x278] sm:$0xff] %vm3777, %v6289
      %6418 = vst.msk [vmem:[%s329 + $0x280] sm:$0xff] %vm3777, %v6290
      %6419 = vst.msk [vmem:[%s329 + $0x288] sm:$0xff] %vm3777, %v6291
      %6420 = vst.msk [vmem:[%s329 + $0x290] sm:$0xff] %vm3777, %v6292
      %6421 = vst.msk [vmem:[%s329 + $0x298] sm:$0xff] %vm3777, %v6293
      %6422 = vst.msk [vmem:[%s329 + $0x2a0] sm:$0xff] %vm3777, %v6294
      %6423 = vst.msk [vmem:[%s329 + $0x2a8] sm:$0xff] %vm3777, %v6295
      %6424 = vst.msk [vmem:[%s329 + $0x2b0] sm:$0xff] %vm3777, %v6296
      %6425 = vst.msk [vmem:[%s329 + $0x2b8] sm:$0xff] %vm3777, %v6297
      %6426 = vst.msk [vmem:[%s329 + $0x2c0] sm:$0xff] %vm3777, %v6298
      %6427 = vst.msk [vmem:[%s329 + $0x2c8] sm:$0xff] %vm3777, %v6299
      %6428 = vst.msk [vmem:[%s329 + $0x2d0] sm:$0xff] %vm3777, %v6300
      %6429 = vst.msk [vmem:[%s329 + $0x2d8] sm:$0xff] %vm3777, %v6301
      %6430 = vst.msk [vmem:[%s329 + $0x2e0] sm:$0xff] %vm3777, %v6302
      %6431 = vst.msk [vmem:[%s329 + $0x2e8] sm:$0xff] %vm3777, %v6303
      %6432 = vst.msk [vmem:[%s329 + $0x2f0] sm:$0xff] %vm3777, %v6304
      %6433 = vst.msk [vmem:[%s329 + $0x2f8] sm:$0xff] %vm3777, %v6305
      %6434 = vst.msk [vmem:[%s329 + $0x300] sm:$0xff] %vm3777, %v6306
      %6435 = vst.msk [vmem:[%s329 + $0x308] sm:$0xff] %vm3777, %v6307
      %6436 = vst.msk [vmem:[%s329 + $0x310] sm:$0xff] %vm3777, %v6308
      %6437 = vst.msk [vmem:[%s329 + $0x318] sm:$0xff] %vm3777, %v6309
      %6438 = vst.msk [vmem:[%s329 + $0x320] sm:$0xff] %vm3777, %v6310
      %6439 = vst.msk [vmem:[%s329 + $0x328] sm:$0xff] %vm3777, %v6311
      %6440 = vst.msk [vmem:[%s329 + $0x330] sm:$0xff] %vm3777, %v6312
      %6441 = vst.msk [vmem:[%s329 + $0x338] sm:$0xff] %vm3777, %v6313
      %6442 = vst.msk [vmem:[%s329 + $0x340] sm:$0xff] %vm3777, %v6314
      %6443 = vst.msk [vmem:[%s329 + $0x348] sm:$0xff] %vm3777, %v6315
      %6444 = vst.msk [vmem:[%s329 + $0x350] sm:$0xff] %vm3777, %v6316
      %6445 = vst.msk [vmem:[%s329 + $0x358] sm:$0xff] %vm3777, %v6317
      %6446 = vst.msk [vmem:[%s329 + $0x360] sm:$0xff] %vm3777, %v6318
      %6447 = vst.msk [vmem:[%s329 + $0x368] sm:$0xff] %vm3777, %v6319
      %6448 = vst.msk [vmem:[%s329 + $0x370] sm:$0xff] %vm3777, %v6320
      %6449 = vst.msk [vmem:[%s329 + $0x378] sm:$0xff] %vm3777, %v6321
      %6450 = vst.msk [vmem:[%s329 + $0x380] sm:$0xff] %vm3777, %v6322
      %6451 = vst.msk [vmem:[%s329 + $0x388] sm:$0xff] %vm3777, %v6323
      %6452 = vst.msk [vmem:[%s329 + $0x390] sm:$0xff] %vm3777, %v6324
      %6453 = vst.msk [vmem:[%s329 + $0x398] sm:$0xff] %vm3777, %v6325
      %6454 = vst.msk [vmem:[%s329 + $0x3a0] sm:$0xff] %vm3777, %v6326
      %6455 = vst.msk [vmem:[%s329 + $0x3a8] sm:$0xff] %vm3777, %v6327
      %6456 = vst.msk [vmem:[%s329 + $0x3b0] sm:$0xff] %vm3777, %v6328
      %6457 = vst.msk [vmem:[%s329 + $0x3b8] sm:$0xff] %vm3777, %v6329
      %6458 = vst.msk [vmem:[%s329 + $0x3c0] sm:$0xff] %vm3777, %v6330
      %6459 = vst.msk [vmem:[%s329 + $0x3c8] sm:$0xff] %vm3777, %v6331
      %6460 = vst.msk [vmem:[%s329 + $0x3d0] sm:$0xff] %vm3777, %v6332
      %6461 = vst.msk [vmem:[%s329 + $0x3d8] sm:$0xff] %vm3777, %v6333
      %6462 = vst.msk [vmem:[%s329 + $0x3e0] sm:$0xff] %vm3777, %v6334
      %6463 = vst.msk [vmem:[%s329 + $0x3e8] sm:$0xff] %vm3777, %v6335
      %6464 = vst.msk [vmem:[%s329 + $0x3f0] sm:$0xff] %vm3777, %v6336
      %6465 = vst.msk [vmem:[%s329 + $0x3f8] sm:$0xff] %vm3777, %v6337
      %s6466 = smul.u32 128, %s19
      %p6467 = scmp.lt.s32.totalorder %s6466, 255
      %s6468 = scalar_select %p6467, %s6466, 255
      %s6469 = smul.addr %s6468, 8
      %s6470 = scalar_lea.vmem %s8, %s6469
      // Predicated region
      $region53: #{nbfield_forward.1} parent=51 // pred_check
        %p6471 = pneg %p215
      $region54: #{nbfield_forward.1} parent=51 // pred_check_branch
        %6473 = sbr.rel (%p6471) target = $region56
      $region55: #{nbfield_forward.1} parent=51 // pred_region
        %s6474 = smul.u32 128, %s19
      $region56: #{nbfield_forward.1} parent=51 // pred_fallthru
        _
    $region52: #{nbfield_forward.1} parent=5 // pred_fallthru
      _
    %p6475 = scmp.le.s32.totalorder 2, %s14
    // Predicated region
    $region57: #{nbfield_forward.1} parent=5 // pred_check
      %p6476 = pneg %p6475
    $region58: #{nbfield_forward.1} parent=5 // pred_check_branch
      %6478 = sbr.rel (%p6476) target = $region60
    $region59: #{nbfield_forward.1} parent=5 // pred_region
      %s6479 = ssub.s32 %s14, 2
      // Predicated region
      $region61: #{nbfield_forward.1} parent=59 // pred_check
        %p6480 = pneg %p221
      $region62: #{nbfield_forward.1} parent=59 // pred_check_branch
        %6482 = sbr.rel (%p6480) target = $region64
      $region63: #{nbfield_forward.1} parent=59 // pred_region
        %s6483 = smul.u32 128, %s20
        %p6484 = scmp.lt.s32.totalorder %s6483, 255
        %s6485 = scalar_select %p6484, %s6483, 255
        %s6486 = smul.addr %s6485, 8
        %s6487 = scalar_lea.vmem %s8, %s6486
      $region64: #{nbfield_forward.1} parent=59 // pred_fallthru
        _
    $region60: #{nbfield_forward.1} parent=5 // pred_fallthru
      _
  $region6: #{nbfield_forward.1} parent=0 // loop_footer
    %s18 = sadd.s32 1, %s14
  $region7: #{nbfield_forward.1} parent=0 // loop_footer_branch
    %13 = sbr.rel target = $region3
  $region8: #{nbfield_forward.1} parent=0 // loop_exit
    _

</llo_original>
